<compile_context>
chip_gen: v6e
topology: v6e:2x2x1
jax: 0.10.0
libtpu: 0.0.40
codegen_flags: <defaults>
</compile_context>

<pallas_src>
import functools
import math

import jax
import jax.numpy as jnp
from jax.experimental import pallas as pl
from jax.experimental.pallas import tpu as pltpu


def _round_up(x, m):
    return ((x + m - 1) // m) * m


# ----------------------------------------------------------------------------
# Recurrent Pallas kernel: one bidirectional LSTM layer, input proj hoisted.
# ----------------------------------------------------------------------------
def _bilstm_layer_kernel(gxf_ref, gxb_ref, whf_ref, whb_ref,
                         yf_ref, yb_ref,
                         hf_sc, cf_sc, hb_sc, cb_sc,
                         *, tc, hp, tp, t_valid):
    """Grid axis = time chunks (sequential). Each grid step runs tc timesteps
    of both directions; backward blocks arrive/depart in reverse time order.
    Padded timesteps (global time >= t_valid) are masked so carries are not
    polluted (matters for the backward direction, which sees them first)."""
    c = pl.program_id(0)
    nc = tp // tc                      # static
    needs_mask = (tp != t_valid)       # static python bool

    @pl.when(c == 0)
    def _():
        hf_sc[...] = jnp.zeros_like(hf_sc)
        cf_sc[...] = jnp.zeros_like(cf_sc)
        hb_sc[...] = jnp.zeros_like(hb_sc)
        cb_sc[...] = jnp.zeros_like(cb_sc)

    w_hh_f = whf_ref[...]          # (Hp, 4Hp) bf16 — loop invariant
    w_hh_b = whb_ref[...]          # (Hp, 4Hp) bf16

    def cell(gates, c_prev):
        # Gate slices are lane-aligned: hp is a multiple of 128.
        i_g = jax.nn.sigmoid(gates[:, 0 * hp:1 * hp])
        f_g = jax.nn.sigmoid(gates[:, 1 * hp:2 * hp])
        g_g = jnp.tanh(gates[:, 2 * hp:3 * hp])
        o_g = jax.nn.sigmoid(gates[:, 3 * hp:4 * hp])
        c_new = f_g * c_prev + i_g * g_g
        h_new = o_g * jnp.tanh(c_new)
        return h_new, c_new

    def step(i, carry):
        h_f, c_f, h_b, c_b = carry

        # ---- forward direction: chunk row i (ascending global time) --------
        g_f = gxf_ref[i].astype(jnp.float32) + jnp.dot(
            h_f.astype(jnp.bfloat16), w_hh_f, preferred_element_type=jnp.float32)
        h_f_n, c_f_n = cell(g_f, c_f)
        if needs_mask:
            m = ((c * tc + i) < t_valid).astype(jnp.float32)
            h_f_n = m * h_f_n + (1.0 - m) * h_f
            c_f_n = m * c_f_n + (1.0 - m) * c_f
        yf_ref[i] = h_f_n.astype(yf_ref.dtype)

        # ---- backward direction: chunk row tc-1-i (descending global time) -
        j = tc - 1 - i
        g_b = gxb_ref[j].astype(jnp.float32) + jnp.dot(
            h_b.astype(jnp.bfloat16), w_hh_b, preferred_element_type=jnp.float32)
        h_b_n, c_b_n = cell(g_b, c_b)
        if needs_mask:
            mb = (((nc - 1 - c) * tc + j) < t_valid).astype(jnp.float32)
            h_b_n = mb * h_b_n + (1.0 - mb) * h_b
            c_b_n = mb * c_b_n + (1.0 - mb) * c_b
        yb_ref[j] = h_b_n.astype(yb_ref.dtype)

        return (h_f_n, c_f_n, h_b_n, c_b_n)

    carry0 = (hf_sc[...], cf_sc[...], hb_sc[...], cb_sc[...])
    h_f, c_f, h_b, c_b = jax.lax.fori_loop(0, tc, step, carry0,
                                           unroll=min(tc, 8))
    hf_sc[...] = h_f
    cf_sc[...] = c_f
    hb_sc[...] = h_b
    cb_sc[...] = c_b


def _vmem_limit_bytes(tc, bp, hp, g):
    """Explicit scoped-VMEM budget (double-buffered blocks + scratch), clamped
    to [32 MiB, 64 MiB] so it is valid on v5e / v6e / v7x."""
    bf16, f32 = 2, 4
    gx_bufs = 2 * 2 * tc * bp * g * bf16   # fwd+bwd gate blocks, double buffered
    w_bufs = 2 * 2 * hp * g * bf16         # TODO(synk): pl.Buffered(1) would halve this
    y_bufs = 2 * 2 * tc * bp * hp * bf16
    scratch = 4 * bp * hp * f32
    needed = gx_bufs + w_bufs + y_bufs + scratch
    return int(min(64 << 20, max(32 << 20, 2 * needed + (8 << 20))))


def bilstm_layer(gx_all, w_hh_f, w_hh_b, hp, tc, t_valid):
    """gx_all: (Tp, Bp, 2*4Hp) bf16 precomputed gate pre-activations — forward
    direction in columns [:4Hp], backward in [4Hp:] (selected via BlockSpec
    block index, no HBM slicing). w_hh_*: (Hp, 4Hp) bf16.
    Returns (y_fwd, y_bwd), each (Tp, Bp, Hp) bf16, both in original time
    order."""
    tp, bp, g2 = gx_all.shape
    g = g2 // 2
    nc = tp // tc
    kernel = functools.partial(_bilstm_layer_kernel, tc=tc, hp=hp, tp=tp,
                               t_valid=t_valid)
    return pl.pallas_call(
        kernel,
        out_shape=(jax.ShapeDtypeStruct((tp, bp, hp), jnp.bfloat16),
                   jax.ShapeDtypeStruct((tp, bp, hp), jnp.bfloat16)),
        grid_spec=pltpu.PrefetchScalarGridSpec(
            num_scalar_prefetch=0,
            grid=(nc,),
            in_specs=[
                pl.BlockSpec((tc, bp, g), lambda c: (c, 0, 0)),            # fwd gx cols
                pl.BlockSpec((tc, bp, g), lambda c: (nc - 1 - c, 0, 1)),   # bwd gx cols
                pl.BlockSpec((hp, g), lambda c: (0, 0)),                   # W_hh fwd
                pl.BlockSpec((hp, g), lambda c: (0, 0)),                   # W_hh bwd
            ],
            out_specs=[
                pl.BlockSpec((tc, bp, hp), lambda c: (c, 0, 0)),           # y fwd
                pl.BlockSpec((tc, bp, hp), lambda c: (nc - 1 - c, 0, 0)),  # y bwd
            ],
            scratch_shapes=[
                pltpu.VMEM((bp, hp), jnp.float32),  # h fwd carry
                pltpu.VMEM((bp, hp), jnp.float32),  # c fwd carry
                pltpu.VMEM((bp, hp), jnp.float32),  # h bwd carry
                pltpu.VMEM((bp, hp), jnp.float32),  # c bwd carry
            ],
        ),
        compiler_params=pltpu.CompilerParams(
            # Time chunks carry recurrent state -> strictly sequential grid.
            dimension_semantics=("arbitrary",),
            vmem_limit_bytes=_vmem_limit_bytes(tc, bp, hp, g),
        ),
    )(gx_all, gx_all, w_hh_f, w_hh_b)


# ----------------------------------------------------------------------------
# Parameters (PyTorch-style init, internally transposed: W_ih (D_in,4H),
# W_hh (H,4H), bias = b_ih + b_hh, gate column order i,f,g,o).
# ----------------------------------------------------------------------------
def init_decoder_params(key, input_dim, hidden_dim, rnn_layers=3):
    H = hidden_dim
    bound = 1.0 / math.sqrt(float(H))
    params = []
    for layer in range(rnn_layers):
        d_in = input_dim if layer == 0 else 2 * H
        layer_params = {}
        for direction in ("fwd", "bwd"):
            key, k1, k2, k3, k4 = jax.random.split(key, 5)
            w_ih = jax.random.uniform(k1, (d_in, 4 * H), jnp.float32, -bound, bound)
            w_hh = jax.random.uniform(k2, (H, 4 * H), jnp.float32, -bound, bound)
            b_ih = jax.random.uniform(k3, (1, 4 * H), jnp.float32, -bound, bound)
            b_hh = jax.random.uniform(k4, (1, 4 * H), jnp.float32, -bound, bound)
            layer_params[direction] = (w_ih, w_hh, b_ih + b_hh)
        params.append(layer_params)
    return params


def _pad_gate_cols(w, H, Hp):
    """(..., 4H) -> (..., 4Hp): each of the 4 gate blocks zero-padded H->Hp."""
    pad = [(0, 0)] * (w.ndim - 1) + [(0, Hp - H)]
    parts = [jnp.pad(w[..., k * H:(k + 1) * H], pad) for k in range(4)]
    return jnp.concatenate(parts, axis=-1)


def _pad_row_blocks(w, H, Hp, n_blocks):
    """(n_blocks*H, G) -> (n_blocks*Hp, G): each row block zero-padded H->Hp."""
    G = w.shape[1]
    out = jnp.zeros((n_blocks * Hp, G), w.dtype)
    for k in range(n_blocks):
        out = out.at[k * Hp:k * Hp + H].set(w[k * H:(k + 1) * H])
    return out


def _pad_decoder_params(params, H, Hp):
    """Gate-blocked zero padding so padded hidden units remain exactly zero
    (zero gate pre-activations -> c stays 0, h stays 0; invariant relies on
    zero-padded biases and zero h0/c0)."""
    padded = []
    for li, lp in enumerate(params):
        new_lp = {}
        for d in ("fwd", "bwd"):
            w_ih, w_hh, b = lp[d]
            w_ih_p = _pad_gate_cols(w_ih, H, Hp)
            if li > 0:  # input is [y_fwd ; y_bwd] -> pad both row blocks
                w_ih_p = _pad_row_blocks(w_ih_p, H, Hp, 2)
            w_hh_p = _pad_row_blocks(_pad_gate_cols(w_hh, H, Hp), H, Hp, 1)
            b_p = _pad_gate_cols(b, H, Hp)
            new_lp[d] = (w_ih_p, w_hh_p, b_p)
        padded.append(new_lp)
    return padded


# ----------------------------------------------------------------------------
# Decoder.forward
# ----------------------------------------------------------------------------
def decoder_forward(batch_data, seq_lengths, params, hidden_dim, time_chunk_cap=32):
    """batch_data: (B, T, inputDim) f32; seq_lengths: (B,) i32.
    Returns (output (B, T, 2*hiddenDim), seq_lengths)."""
    B, T, _ = batch_data.shape
    H = hidden_dim
    Hp = _round_up(H, 128)          # lane-aligned gate blocks & lane-dense stores
    Bp = _round_up(B, 8)            # sublane-aligned batch
    G = 4 * Hp
    tc = min(T, time_chunk_cap)     # never degrades to 1 for awkward T
    nc = (T + tc - 1) // tc
    Tp = nc * tc                    # padded timesteps are masked in the kernel

    params_p = _pad_decoder_params(params, H, Hp)

    # time-major, batch- and time-padded input; bf16 for the MXU projection
    x = jnp.transpose(batch_data, (1, 0, 2))                       # (T, B, D)
    x = jnp.pad(x, ((0, Tp - T), (0, Bp - B), (0, 0)))             # (Tp, Bp, D)
    x = x.astype(jnp.bfloat16)

    y_f = y_b = None
    for li, lp in enumerate(params_p):
        w_ih_f, w_hh_f, b_f = lp["fwd"]
        w_ih_b, w_hh_b, b_b = lp["bwd"]
        # Merge fwd/bwd input projections: one weight matrix of width 2*G.
        w_ih_cat = jnp.concatenate([w_ih_f, w_ih_b], axis=1).astype(jnp.bfloat16)
        b_cat = jnp.concatenate([b_f, b_b], axis=1)                # (1, 2G) f32
        if li == 0:
            # Hoisted input projection: one big MXU-friendly matmul (XLA).
            gx = jnp.einsum("tbd,dg->tbg", x, w_ih_cat,
                            preferred_element_type=jnp.float32)
        else:
            # Split matmul over (y_fwd, y_bwd) -> no concatenate copy.
            gx = (jnp.einsum("tbh,hg->tbg", y_f, w_ih_cat[:Hp],
                             preferred_element_type=jnp.float32) +
                  jnp.einsum("tbh,hg->tbg", y_b, w_ih_cat[Hp:],
                             preferred_element_type=jnp.float32))
        gx = (gx + b_cat).astype(jnp.bfloat16)                     # (Tp, Bp, 2G)
        y_f, y_b = bilstm_layer(gx,
                                w_hh_f.astype(jnp.bfloat16),
                                w_hh_b.astype(jnp.bfloat16),
                                Hp, tc, T)

    out = jnp.concatenate([y_f[:T, :B, :H], y_b[:T, :B, :H]], axis=-1)  # (T,B,2H)
    output = jnp.transpose(out, (1, 0, 2)).astype(jnp.float32)          # (B,T,2H)
    # TODO(synk): packed-sequence masking of padded steps is not reproduced.
    return output, seq_lengths


# ----------------------------------------------------------------------------
# Pure-JAX (lax.scan) f32 reference for correctness checking (unpadded params).
# ----------------------------------------------------------------------------
def _reference_forward(batch_data, seq_lengths, params, hidden_dim):
    H = hidden_dim

    def cell_scan(x_tbd, w_ih, w_hh, b):
        B = x_tbd.shape[1]

        def step(carry, x_t):
            h, c = carry
            gates = x_t @ w_ih + h @ w_hh + b
            i = jax.nn.sigmoid(gates[:, 0 * H:1 * H])
            f = jax.nn.sigmoid(gates[:, 1 * H:2 * H])
            g = jnp.tanh(gates[:, 2 * H:3 * H])
            o = jax.nn.sigmoid(gates[:, 3 * H:4 * H])
            c = f * c + i * g
            h = o * jnp.tanh(c)
            return (h, c), h

        init = (jnp.zeros((B, H), jnp.float32), jnp.zeros((B, H), jnp.float32))
        _, ys = jax.lax.scan(step, init, x_tbd)
        return ys

    x = jnp.transpose(batch_data, (1, 0, 2))
    for layer_params in params:
        w_ih_f, w_hh_f, b_f = layer_params["fwd"]
        w_ih_b, w_hh_b, b_b = layer_params["bwd"]
        y_f = cell_scan(x, w_ih_f, w_hh_f, b_f)
        y_b = jnp.flip(cell_scan(jnp.flip(x, 0), w_ih_b, w_hh_b, b_b), 0)
        x = jnp.concatenate([y_f, y_b], axis=-1)
    return jnp.transpose(x, (1, 0, 2)), seq_lengths


if __name__ == "__main__":
    # Small shapes consistent with the module: LSTM(embDim=inputDim,
    # hiddenDim, layerNum=3, bidirectional=True), batch_first input.
    B, T, INPUT_DIM, HIDDEN_DIM, LAYERS = 2, 8, 16, 32, 3

    key = jax.random.PRNGKey(0)
    key, kx, kx2 = jax.random.split(key, 3)
    batch_data = jax.random.normal(kx, (B, T, INPUT_DIM), jnp.float32)
    seq_lengths = jnp.full((B,), T, dtype=jnp.int32)

    params = init_decoder_params(key, INPUT_DIM, HIDDEN_DIM, LAYERS)

    fwd = jax.jit(functools.partial(decoder_forward, hidden_dim=HIDDEN_DIM))
    output, seq_out = fwd(batch_data, seq_lengths, params)
    output = jax.block_until_ready(output)
    seq_out = jax.block_until_ready(seq_out)

    assert output.shape == (B, T, 2 * HIDDEN_DIM)
    assert seq_out.shape == (B,)
    assert float(jnp.max(jnp.abs(output))) > 1e-3  # not degenerate zeros

    ref_out, _ = _reference_forward(batch_data, seq_lengths, params, HIDDEN_DIM)
    err = float(jnp.max(jnp.abs(output - ref_out)))
    # bf16 matmul operands (f32 accumulation / carries) => loosened tolerance
    # vs. the f32 lax.scan reference.
    assert err < 1e-1, f"max abs err vs f32 reference: {err}"

    # Second config: T not a multiple of the time chunk -> exercises the
    # padded-timestep masking path (backward carry must stay clean).
    T2, CAP2 = 11, 4
    batch2 = jax.random.normal(kx2, (B, T2, INPUT_DIM), jnp.float32)
    seq2 = jnp.full((B,), T2, dtype=jnp.int32)
    fwd2 = jax.jit(functools.partial(decoder_forward, hidden_dim=HIDDEN_DIM,
                                     time_chunk_cap=CAP2))
    out2, _ = fwd2(batch2, seq2, params)
    out2 = jax.block_until_ready(out2)
    ref2, _ = _reference_forward(batch2, seq2, params, HIDDEN_DIM)
    err2 = float(jnp.max(jnp.abs(out2 - ref2)))
    assert out2.shape == (B, T2, 2 * HIDDEN_DIM)
    assert err2 < 1e-1, f"max abs err (masked-T path) vs f32 reference: {err2}"

    print("KERNEL_OK")
</pallas_src>

<mosaic_0001>
module attributes {stable_mosaic.version = 11 : i64} {
  func.func @_bilstm_layer_kernel(%arg0: i32, %arg1: memref<8x8x512xbf16, #tpu.memory_space<vmem>>, %arg2: memref<8x8x512xbf16, #tpu.memory_space<vmem>>, %arg3: memref<128x512xbf16, #tpu.memory_space<vmem>>, %arg4: memref<128x512xbf16, #tpu.memory_space<vmem>>, %arg5: memref<8x8x128xbf16, #tpu.memory_space<vmem>>, %arg6: memref<8x8x128xbf16, #tpu.memory_space<vmem>>, %arg7: memref<8x128xf32, #tpu.memory_space<vmem>>, %arg8: memref<8x128xf32, #tpu.memory_space<vmem>>, %arg9: memref<8x128xf32, #tpu.memory_space<vmem>>, %arg10: memref<8x128xf32, #tpu.memory_space<vmem>>) attributes {dimension_semantics = [#tpu.dimension_semantics<arbitrary>], iteration_bounds = array<i64: 1>, scalar_prefetch = 0 : i64, scratch_operands = 4 : i64, tpu.core_type = #tpu.core_type<tc>, window_params = [{transform_indices = @transform_0, window_bounds = array<i64: 8, 8, 512>}, {transform_indices = @transform_1, window_bounds = array<i64: 8, 8, 512>}, {pipeline_mode = #tpu.pipeline_mode<synchronous>, transform_indices = @transform_2, window_bounds = array<i64: 128, 512>}, {pipeline_mode = #tpu.pipeline_mode<synchronous>, transform_indices = @transform_3, window_bounds = array<i64: 128, 512>}, {transform_indices = @transform_4, window_bounds = array<i64: 8, 8, 128>}, {transform_indices = @transform_5, window_bounds = array<i64: 8, 8, 128>}]} {
    %c0_i32 = arith.constant 0 : i32
    %0 = arith.cmpi eq, %arg0, %c0_i32 : i32
    %1 = arith.extui %0 : i1 to i32
    %c0_i32_0 = arith.constant 0 : i32
    %2 = arith.cmpi ne, %1, %c0_i32_0 : i32
    scf.if %2 {
      %cst_156 = arith.constant 0.000000e+00 : f32
      %613 = vector.broadcast %cst_156 : f32 to vector<8x128xf32>
      %c0_157 = arith.constant 0 : index
      %c0_158 = arith.constant 0 : index
      %614 = vector.load %arg7[%c0_157, %c0_158] : memref<8x128xf32, #tpu.memory_space<vmem>>, vector<8x128xf32>
      tpu.vector_store %arg7[%c0_157, %c0_158], %613 {strides = array<i32>} : memref<8x128xf32, #tpu.memory_space<vmem>>, vector<8x128xf32>,
      %cst_159 = arith.constant 0.000000e+00 : f32
      %615 = vector.broadcast %cst_159 : f32 to vector<8x128xf32>
      %c0_160 = arith.constant 0 : index
      %c0_161 = arith.constant 0 : index
      %616 = vector.load %arg8[%c0_160, %c0_161] : memref<8x128xf32, #tpu.memory_space<vmem>>, vector<8x128xf32>
      tpu.vector_store %arg8[%c0_160, %c0_161], %615 {strides = array<i32>} : memref<8x128xf32, #tpu.memory_space<vmem>>, vector<8x128xf32>,
      %cst_162 = arith.constant 0.000000e+00 : f32
      %617 = vector.broadcast %cst_162 : f32 to vector<8x128xf32>
      %c0_163 = arith.constant 0 : index
      %c0_164 = arith.constant 0 : index
      %618 = vector.load %arg9[%c0_163, %c0_164] : memref<8x128xf32, #tpu.memory_space<vmem>>, vector<8x128xf32>
      tpu.vector_store %arg9[%c0_163, %c0_164], %617 {strides = array<i32>} : memref<8x128xf32, #tpu.memory_space<vmem>>, vector<8x128xf32>,
      %cst_165 = arith.constant 0.000000e+00 : f32
      %619 = vector.broadcast %cst_165 : f32 to vector<8x128xf32>
      %c0_166 = arith.constant 0 : index
      %c0_167 = arith.constant 0 : index
      %620 = vector.load %arg10[%c0_166, %c0_167] : memref<8x128xf32, #tpu.memory_space<vmem>>, vector<8x128xf32>
      tpu.vector_store %arg10[%c0_166, %c0_167], %619 {strides = array<i32>} : memref<8x128xf32, #tpu.memory_space<vmem>>, vector<8x128xf32>,
    } else {
    }
    %c0 = arith.constant 0 : index
    %c0_1 = arith.constant 0 : index
    %3 = vector.load %arg3[%c0, %c0_1] : memref<128x512xbf16, #tpu.memory_space<vmem>>, vector<128x512xbf16>
    %c0_2 = arith.constant 0 : index
    %c0_3 = arith.constant 0 : index
    %4 = vector.load %arg4[%c0_2, %c0_3] : memref<128x512xbf16, #tpu.memory_space<vmem>>, vector<128x512xbf16>
    %c0_4 = arith.constant 0 : index
    %c0_5 = arith.constant 0 : index
    %5 = vector.load %arg7[%c0_4, %c0_5] : memref<8x128xf32, #tpu.memory_space<vmem>>, vector<8x128xf32>
    %c0_6 = arith.constant 0 : index
    %c0_7 = arith.constant 0 : index
    %6 = vector.load %arg8[%c0_6, %c0_7] : memref<8x128xf32, #tpu.memory_space<vmem>>, vector<8x128xf32>
    %c0_8 = arith.constant 0 : index
    %c0_9 = arith.constant 0 : index
    %7 = vector.load %arg9[%c0_8, %c0_9] : memref<8x128xf32, #tpu.memory_space<vmem>>, vector<8x128xf32>
    %c0_10 = arith.constant 0 : index
    %c0_11 = arith.constant 0 : index
    %8 = vector.load %arg10[%c0_10, %c0_11] : memref<8x128xf32, #tpu.memory_space<vmem>>, vector<8x128xf32>
    %c0_i32_12 = arith.constant 0 : i32
    %9 = arith.index_cast %c0_i32_12 : i32 to index
    %c0_13 = arith.constant 0 : index
    %c0_14 = arith.constant 0 : index
    %10 = vector.load %arg1[%9, %c0_13, %c0_14] : memref<8x8x512xbf16, #tpu.memory_space<vmem>>, vector<1x8x512xbf16>
    %11 = vector.shape_cast %10 : vector<1x8x512xbf16> to vector<8x512xbf16>
    %12 = arith.extf %11 : vector<8x512xbf16> to vector<8x512xf32>
    %13 = arith.truncf %5 : vector<8x128xf32> to vector<8x128xbf16>
    %cst = arith.constant dense<0.000000e+00> : vector<8x512xf32>
    %14 = tpu.matmul %13, %3, %cst {dimension_numbers = #tpu.dot_dimension_numbers<[1], [0], [0], [1], [0, 0, 1, 1], [], []>} : vector<8x128xbf16>, vector<128x512xbf16>, vector<8x512xf32> -> vector<8x512xf32>
    %15 = arith.addf %12, %14 : vector<8x512xf32>
    %16 = vector.extract_strided_slice %15 {offsets = [0, 0], sizes = [8, 128], strides = [1, 1]} : vector<8x512xf32> to vector<8x128xf32>
    %17 = arith.negf %16 : vector<8x128xf32>
    %18 = math.exp %17 : vector<8x128xf32>
    %cst_15 = arith.constant 1.000000e+00 : f32
    %19 = vector.broadcast %cst_15 : f32 to vector<8x128xf32>
    %20 = arith.addf %19, %18 : vector<8x128xf32>
    %21 = arith.divf %19, %20 : vector<8x128xf32>
    %22 = vector.extract_strided_slice %15 {offsets = [0, 128], sizes = [8, 128], strides = [1, 1]} : vector<8x512xf32> to vector<8x128xf32>
    %23 = arith.negf %22 : vector<8x128xf32>
    %24 = math.exp %23 : vector<8x128xf32>
    %cst_16 = arith.constant 1.000000e+00 : f32
    %25 = vector.broadcast %cst_16 : f32 to vector<8x128xf32>
    %26 = arith.addf %25, %24 : vector<8x128xf32>
    %27 = arith.divf %25, %26 : vector<8x128xf32>
    %28 = vector.extract_strided_slice %15 {offsets = [0, 256], sizes = [8, 128], strides = [1, 1]} : vector<8x512xf32> to vector<8x128xf32>
    %29 = math.tanh %28 : vector<8x128xf32>
    %30 = vector.extract_strided_slice %15 {offsets = [0, 384], sizes = [8, 128], strides = [1, 1]} : vector<8x512xf32> to vector<8x128xf32>
    %31 = arith.negf %30 : vector<8x128xf32>
    %32 = math.exp %31 : vector<8x128xf32>
    %cst_17 = arith.constant 1.000000e+00 : f32
    %33 = vector.broadcast %cst_17 : f32 to vector<8x128xf32>
    %34 = arith.addf %33, %32 : vector<8x128xf32>
    %35 = arith.divf %33, %34 : vector<8x128xf32>
    %36 = arith.mulf %27, %6 : vector<8x128xf32>
    %37 = arith.mulf %21, %29 : vector<8x128xf32>
    %38 = arith.addf %36, %37 : vector<8x128xf32>
    %39 = math.tanh %38 : vector<8x128xf32>
    %40 = arith.mulf %35, %39 : vector<8x128xf32>
    %41 = arith.truncf %40 : vector<8x128xf32> to vector<8x128xbf16>
    %42 = arith.index_cast %c0_i32_12 : i32 to index
    %c0_18 = arith.constant 0 : index
    %c0_19 = arith.constant 0 : index
    %43 = vector.load %arg5[%42, %c0_18, %c0_19] : memref<8x8x128xbf16, #tpu.memory_space<vmem>>, vector<1x8x128xbf16>
    %44 = vector.shape_cast %43 : vector<1x8x128xbf16> to vector<8x128xbf16>
    %45 = vector.shape_cast %41 : vector<8x128xbf16> to vector<1x8x128xbf16>
    tpu.vector_store %arg5[%42, %c0_18, %c0_19], %45 {strides = array<i32>} : memref<8x8x128xbf16, #tpu.memory_space<vmem>>, vector<1x8x128xbf16>,
    %c7_i32 = arith.constant 7 : i32
    %46 = arith.subi %c7_i32, %c0_i32_12 : i32
    %47 = arith.index_cast %46 : i32 to index
    %c0_20 = arith.constant 0 : index
    %c0_21 = arith.constant 0 : index
    %48 = vector.load %arg2[%47, %c0_20, %c0_21] : memref<8x8x512xbf16, #tpu.memory_space<vmem>>, vector<1x8x512xbf16>
    %49 = vector.shape_cast %48 : vector<1x8x512xbf16> to vector<8x512xbf16>
    %50 = arith.extf %49 : vector<8x512xbf16> to vector<8x512xf32>
    %51 = arith.truncf %7 : vector<8x128xf32> to vector<8x128xbf16>
    %cst_22 = arith.constant dense<0.000000e+00> : vector<8x512xf32>
    %52 = tpu.matmul %51, %4, %cst_22 {dimension_numbers = #tpu.dot_dimension_numbers<[1], [0], [0], [1], [0, 0, 1, 1], [], []>} : vector<8x128xbf16>, vector<128x512xbf16>, vector<8x512xf32> -> vector<8x512xf32>
    %53 = arith.addf %50, %52 : vector<8x512xf32>
    %54 = vector.extract_strided_slice %53 {offsets = [0, 0], sizes = [8, 128], strides = [1, 1]} : vector<8x512xf32> to vector<8x128xf32>
    %55 = arith.negf %54 : vector<8x128xf32>
    %56 = math.exp %55 : vector<8x128xf32>
    %cst_23 = arith.constant 1.000000e+00 : f32
    %57 = vector.broadcast %cst_23 : f32 to vector<8x128xf32>
    %58 = arith.addf %57, %56 : vector<8x128xf32>
    %59 = arith.divf %57, %58 : vector<8x128xf32>
    %60 = vector.extract_strided_slice %53 {offsets = [0, 128], sizes = [8, 128], strides = [1, 1]} : vector<8x512xf32> to vector<8x128xf32>
    %61 = arith.negf %60 : vector<8x128xf32>
    %62 = math.exp %61 : vector<8x128xf32>
    %cst_24 = arith.constant 1.000000e+00 : f32
    %63 = vector.broadcast %cst_24 : f32 to vector<8x128xf32>
    %64 = arith.addf %63, %62 : vector<8x128xf32>
    %65 = arith.divf %63, %64 : vector<8x128xf32>
    %66 = vector.extract_strided_slice %53 {offsets = [0, 256], sizes = [8, 128], strides = [1, 1]} : vector<8x512xf32> to vector<8x128xf32>
    %67 = math.tanh %66 : vector<8x128xf32>
    %68 = vector.extract_strided_slice %53 {offsets = [0, 384], sizes = [8, 128], strides = [1, 1]} : vector<8x512xf32> to vector<8x128xf32>
    %69 = arith.negf %68 : vector<8x128xf32>
    %70 = math.exp %69 : vector<8x128xf32>
    %cst_25 = arith.constant 1.000000e+00 : f32
    %71 = vector.broadcast %cst_25 : f32 to vector<8x128xf32>
    %72 = arith.addf %71, %70 : vector<8x128xf32>
    %73 = arith.divf %71, %72 : vector<8x128xf32>
    %74 = arith.mulf %65, %8 : vector<8x128xf32>
    %75 = arith.mulf %59, %67 : vector<8x128xf32>
    %76 = arith.addf %74, %75 : vector<8x128xf32>
    %77 = math.tanh %76 : vector<8x128xf32>
    %78 = arith.mulf %73, %77 : vector<8x128xf32>
    %79 = arith.truncf %78 : vector<8x128xf32> to vector<8x128xbf16>
    %80 = arith.index_cast %46 : i32 to index
    %c0_26 = arith.constant 0 : index
    %c0_27 = arith.constant 0 : index
    %81 = vector.load %arg6[%80, %c0_26, %c0_27] : memref<8x8x128xbf16, #tpu.memory_space<vmem>>, vector<1x8x128xbf16>
    %82 = vector.shape_cast %81 : vector<1x8x128xbf16> to vector<8x128xbf16>
    %83 = vector.shape_cast %79 : vector<8x128xbf16> to vector<1x8x128xbf16>
    tpu.vector_store %arg6[%80, %c0_26, %c0_27], %83 {strides = array<i32>} : memref<8x8x128xbf16, #tpu.memory_space<vmem>>, vector<1x8x128xbf16>,
    %c1_i32 = arith.constant 1 : i32
    %84 = arith.index_cast %c1_i32 : i32 to index
    %c0_28 = arith.constant 0 : index
    %c0_29 = arith.constant 0 : index
    %85 = vector.load %arg1[%84, %c0_28, %c0_29] : memref<8x8x512xbf16, #tpu.memory_space<vmem>>, vector<1x8x512xbf16>
    %86 = vector.shape_cast %85 : vector<1x8x512xbf16> to vector<8x512xbf16>
    %87 = arith.extf %86 : vector<8x512xbf16> to vector<8x512xf32>
    %88 = arith.truncf %40 : vector<8x128xf32> to vector<8x128xbf16>
    %cst_30 = arith.constant dense<0.000000e+00> : vector<8x512xf32>
    %89 = tpu.matmul %88, %3, %cst_30 {dimension_numbers = #tpu.dot_dimension_numbers<[1], [0], [0], [1], [0, 0, 1, 1], [], []>} : vector<8x128xbf16>, vector<128x512xbf16>, vector<8x512xf32> -> vector<8x512xf32>
    %90 = arith.addf %87, %89 : vector<8x512xf32>
    %91 = vector.extract_strided_slice %90 {offsets = [0, 0], sizes = [8, 128], strides = [1, 1]} : vector<8x512xf32> to vector<8x128xf32>
    %92 = arith.negf %91 : vector<8x128xf32>
    %93 = math.exp %92 : vector<8x128xf32>
    %cst_31 = arith.constant 1.000000e+00 : f32
    %94 = vector.broadcast %cst_31 : f32 to vector<8x128xf32>
    %95 = arith.addf %94, %93 : vector<8x128xf32>
    %96 = arith.divf %94, %95 : vector<8x128xf32>
    %97 = vector.extract_strided_slice %90 {offsets = [0, 128], sizes = [8, 128], strides = [1, 1]} : vector<8x512xf32> to vector<8x128xf32>
    %98 = arith.negf %97 : vector<8x128xf32>
    %99 = math.exp %98 : vector<8x128xf32>
    %cst_32 = arith.constant 1.000000e+00 : f32
    %100 = vector.broadcast %cst_32 : f32 to vector<8x128xf32>
    %101 = arith.addf %100, %99 : vector<8x128xf32>
    %102 = arith.divf %100, %101 : vector<8x128xf32>
    %103 = vector.extract_strided_slice %90 {offsets = [0, 256], sizes = [8, 128], strides = [1, 1]} : vector<8x512xf32> to vector<8x128xf32>
    %104 = math.tanh %103 : vector<8x128xf32>
    %105 = vector.extract_strided_slice %90 {offsets = [0, 384], sizes = [8, 128], strides = [1, 1]} : vector<8x512xf32> to vector<8x128xf32>
    %106 = arith.negf %105 : vector<8x128xf32>
    %107 = math.exp %106 : vector<8x128xf32>
    %cst_33 = arith.constant 1.000000e+00 : f32
    %108 = vector.broadcast %cst_33 : f32 to vector<8x128xf32>
    %109 = arith.addf %108, %107 : vector<8x128xf32>
    %110 = arith.divf %108, %109 : vector<8x128xf32>
    %111 = arith.mulf %102, %38 : vector<8x128xf32>
    %112 = arith.mulf %96, %104 : vector<8x128xf32>
    %113 = arith.addf %111, %112 : vector<8x128xf32>
    %114 = math.tanh %113 : vector<8x128xf32>
    %115 = arith.mulf %110, %114 : vector<8x128xf32>
    %116 = arith.truncf %115 : vector<8x128xf32> to vector<8x128xbf16>
    %117 = arith.index_cast %c1_i32 : i32 to index
    %c0_34 = arith.constant 0 : index
    %c0_35 = arith.constant 0 : index
    %118 = vector.load %arg5[%117, %c0_34, %c0_35] : memref<8x8x128xbf16, #tpu.memory_space<vmem>>, vector<1x8x128xbf16>
    %119 = vector.shape_cast %118 : vector<1x8x128xbf16> to vector<8x128xbf16>
    %120 = vector.shape_cast %116 : vector<8x128xbf16> to vector<1x8x128xbf16>
    tpu.vector_store %arg5[%117, %c0_34, %c0_35], %120 {strides = array<i32>} : memref<8x8x128xbf16, #tpu.memory_space<vmem>>, vector<1x8x128xbf16>,
    %c7_i32_36 = arith.constant 7 : i32
    %121 = arith.subi %c7_i32_36, %c1_i32 : i32
    %122 = arith.index_cast %121 : i32 to index
    %c0_37 = arith.constant 0 : index
    %c0_38 = arith.constant 0 : index
    %123 = vector.load %arg2[%122, %c0_37, %c0_38] : memref<8x8x512xbf16, #tpu.memory_space<vmem>>, vector<1x8x512xbf16>
    %124 = vector.shape_cast %123 : vector<1x8x512xbf16> to vector<8x512xbf16>
    %125 = arith.extf %124 : vector<8x512xbf16> to vector<8x512xf32>
    %126 = arith.truncf %78 : vector<8x128xf32> to vector<8x128xbf16>
    %cst_39 = arith.constant dense<0.000000e+00> : vector<8x512xf32>
    %127 = tpu.matmul %126, %4, %cst_39 {dimension_numbers = #tpu.dot_dimension_numbers<[1], [0], [0], [1], [0, 0, 1, 1], [], []>} : vector<8x128xbf16>, vector<128x512xbf16>, vector<8x512xf32> -> vector<8x512xf32>
    %128 = arith.addf %125, %127 : vector<8x512xf32>
    %129 = vector.extract_strided_slice %128 {offsets = [0, 0], sizes = [8, 128], strides = [1, 1]} : vector<8x512xf32> to vector<8x128xf32>
    %130 = arith.negf %129 : vector<8x128xf32>
    %131 = math.exp %130 : vector<8x128xf32>
    %cst_40 = arith.constant 1.000000e+00 : f32
    %132 = vector.broadcast %cst_40 : f32 to vector<8x128xf32>
    %133 = arith.addf %132, %131 : vector<8x128xf32>
    %134 = arith.divf %132, %133 : vector<8x128xf32>
    %135 = vector.extract_strided_slice %128 {offsets = [0, 128], sizes = [8, 128], strides = [1, 1]} : vector<8x512xf32> to vector<8x128xf32>
    %136 = arith.negf %135 : vector<8x128xf32>
    %137 = math.exp %136 : vector<8x128xf32>
    %cst_41 = arith.constant 1.000000e+00 : f32
    %138 = vector.broadcast %cst_41 : f32 to vector<8x128xf32>
    %139 = arith.addf %138, %137 : vector<8x128xf32>
    %140 = arith.divf %138, %139 : vector<8x128xf32>
    %141 = vector.extract_strided_slice %128 {offsets = [0, 256], sizes = [8, 128], strides = [1, 1]} : vector<8x512xf32> to vector<8x128xf32>
    %142 = math.tanh %141 : vector<8x128xf32>
    %143 = vector.extract_strided_slice %128 {offsets = [0, 384], sizes = [8, 128], strides = [1, 1]} : vector<8x512xf32> to vector<8x128xf32>
    %144 = arith.negf %143 : vector<8x128xf32>
    %145 = math.exp %144 : vector<8x128xf32>
    %cst_42 = arith.constant 1.000000e+00 : f32
    %146 = vector.broadcast %cst_42 : f32 to vector<8x128xf32>
    %147 = arith.addf %146, %145 : vector<8x128xf32>
    %148 = arith.divf %146, %147 : vector<8x128xf32>
    %149 = arith.mulf %140, %76 : vector<8x128xf32>
    %150 = arith.mulf %134, %142 : vector<8x128xf32>
    %151 = arith.addf %149, %150 : vector<8x128xf32>
    %152 = math.tanh %151 : vector<8x128xf32>
    %153 = arith.mulf %148, %152 : vector<8x128xf32>
    %154 = arith.truncf %153 : vector<8x128xf32> to vector<8x128xbf16>
    %155 = arith.index_cast %121 : i32 to index
    %c0_43 = arith.constant 0 : index
    %c0_44 = arith.constant 0 : index
    %156 = vector.load %arg6[%155, %c0_43, %c0_44] : memref<8x8x128xbf16, #tpu.memory_space<vmem>>, vector<1x8x128xbf16>
    %157 = vector.shape_cast %156 : vector<1x8x128xbf16> to vector<8x128xbf16>
    %158 = vector.shape_cast %154 : vector<8x128xbf16> to vector<1x8x128xbf16>
    tpu.vector_store %arg6[%155, %c0_43, %c0_44], %158 {strides = array<i32>} : memref<8x8x128xbf16, #tpu.memory_space<vmem>>, vector<1x8x128xbf16>,
    %c2_i32 = arith.constant 2 : i32
    %159 = arith.index_cast %c2_i32 : i32 to index
    %c0_45 = arith.constant 0 : index
    %c0_46 = arith.constant 0 : index
    %160 = vector.load %arg1[%159, %c0_45, %c0_46] : memref<8x8x512xbf16, #tpu.memory_space<vmem>>, vector<1x8x512xbf16>
    %161 = vector.shape_cast %160 : vector<1x8x512xbf16> to vector<8x512xbf16>
    %162 = arith.extf %161 : vector<8x512xbf16> to vector<8x512xf32>
    %163 = arith.truncf %115 : vector<8x128xf32> to vector<8x128xbf16>
    %cst_47 = arith.constant dense<0.000000e+00> : vector<8x512xf32>
    %164 = tpu.matmul %163, %3, %cst_47 {dimension_numbers = #tpu.dot_dimension_numbers<[1], [0], [0], [1], [0, 0, 1, 1], [], []>} : vector<8x128xbf16>, vector<128x512xbf16>, vector<8x512xf32> -> vector<8x512xf32>
    %165 = arith.addf %162, %164 : vector<8x512xf32>
    %166 = vector.extract_strided_slice %165 {offsets = [0, 0], sizes = [8, 128], strides = [1, 1]} : vector<8x512xf32> to vector<8x128xf32>
    %167 = arith.negf %166 : vector<8x128xf32>
    %168 = math.exp %167 : vector<8x128xf32>
    %cst_48 = arith.constant 1.000000e+00 : f32
    %169 = vector.broadcast %cst_48 : f32 to vector<8x128xf32>
    %170 = arith.addf %169, %168 : vector<8x128xf32>
    %171 = arith.divf %169, %170 : vector<8x128xf32>
    %172 = vector.extract_strided_slice %165 {offsets = [0, 128], sizes = [8, 128], strides = [1, 1]} : vector<8x512xf32> to vector<8x128xf32>
    %173 = arith.negf %172 : vector<8x128xf32>
    %174 = math.exp %173 : vector<8x128xf32>
    %cst_49 = arith.constant 1.000000e+00 : f32
    %175 = vector.broadcast %cst_49 : f32 to vector<8x128xf32>
    %176 = arith.addf %175, %174 : vector<8x128xf32>
    %177 = arith.divf %175, %176 : vector<8x128xf32>
    %178 = vector.extract_strided_slice %165 {offsets = [0, 256], sizes = [8, 128], strides = [1, 1]} : vector<8x512xf32> to vector<8x128xf32>
    %179 = math.tanh %178 : vector<8x128xf32>
    %180 = vector.extract_strided_slice %165 {offsets = [0, 384], sizes = [8, 128], strides = [1, 1]} : vector<8x512xf32> to vector<8x128xf32>
    %181 = arith.negf %180 : vector<8x128xf32>
    %182 = math.exp %181 : vector<8x128xf32>
    %cst_50 = arith.constant 1.000000e+00 : f32
    %183 = vector.broadcast %cst_50 : f32 to vector<8x128xf32>
    %184 = arith.addf %183, %182 : vector<8x128xf32>
    %185 = arith.divf %183, %184 : vector<8x128xf32>
    %186 = arith.mulf %177, %113 : vector<8x128xf32>
    %187 = arith.mulf %171, %179 : vector<8x128xf32>
    %188 = arith.addf %186, %187 : vector<8x128xf32>
    %189 = math.tanh %188 : vector<8x128xf32>
    %190 = arith.mulf %185, %189 : vector<8x128xf32>
    %191 = arith.truncf %190 : vector<8x128xf32> to vector<8x128xbf16>
    %192 = arith.index_cast %c2_i32 : i32 to index
    %c0_51 = arith.constant 0 : index
    %c0_52 = arith.constant 0 : index
    %193 = vector.load %arg5[%192, %c0_51, %c0_52] : memref<8x8x128xbf16, #tpu.memory_space<vmem>>, vector<1x8x128xbf16>
    %194 = vector.shape_cast %193 : vector<1x8x128xbf16> to vector<8x128xbf16>
    %195 = vector.shape_cast %191 : vector<8x128xbf16> to vector<1x8x128xbf16>
    tpu.vector_store %arg5[%192, %c0_51, %c0_52], %195 {strides = array<i32>} : memref<8x8x128xbf16, #tpu.memory_space<vmem>>, vector<1x8x128xbf16>,
    %c7_i32_53 = arith.constant 7 : i32
    %196 = arith.subi %c7_i32_53, %c2_i32 : i32
    %197 = arith.index_cast %196 : i32 to index
    %c0_54 = arith.constant 0 : index
    %c0_55 = arith.constant 0 : index
    %198 = vector.load %arg2[%197, %c0_54, %c0_55] : memref<8x8x512xbf16, #tpu.memory_space<vmem>>, vector<1x8x512xbf16>
    %199 = vector.shape_cast %198 : vector<1x8x512xbf16> to vector<8x512xbf16>
    %200 = arith.extf %199 : vector<8x512xbf16> to vector<8x512xf32>
    %201 = arith.truncf %153 : vector<8x128xf32> to vector<8x128xbf16>
    %cst_56 = arith.constant dense<0.000000e+00> : vector<8x512xf32>
    %202 = tpu.matmul %201, %4, %cst_56 {dimension_numbers = #tpu.dot_dimension_numbers<[1], [0], [0], [1], [0, 0, 1, 1], [], []>} : vector<8x128xbf16>, vector<128x512xbf16>, vector<8x512xf32> -> vector<8x512xf32>
    %203 = arith.addf %200, %202 : vector<8x512xf32>
    %204 = vector.extract_strided_slice %203 {offsets = [0, 0], sizes = [8, 128], strides = [1, 1]} : vector<8x512xf32> to vector<8x128xf32>
    %205 = arith.negf %204 : vector<8x128xf32>
    %206 = math.exp %205 : vector<8x128xf32>
    %cst_57 = arith.constant 1.000000e+00 : f32
    %207 = vector.broadcast %cst_57 : f32 to vector<8x128xf32>
    %208 = arith.addf %207, %206 : vector<8x128xf32>
    %209 = arith.divf %207, %208 : vector<8x128xf32>
    %210 = vector.extract_strided_slice %203 {offsets = [0, 128], sizes = [8, 128], strides = [1, 1]} : vector<8x512xf32> to vector<8x128xf32>
    %211 = arith.negf %210 : vector<8x128xf32>
    %212 = math.exp %211 : vector<8x128xf32>
    %cst_58 = arith.constant 1.000000e+00 : f32
    %213 = vector.broadcast %cst_58 : f32 to vector<8x128xf32>
    %214 = arith.addf %213, %212 : vector<8x128xf32>
    %215 = arith.divf %213, %214 : vector<8x128xf32>
    %216 = vector.extract_strided_slice %203 {offsets = [0, 256], sizes = [8, 128], strides = [1, 1]} : vector<8x512xf32> to vector<8x128xf32>
    %217 = math.tanh %216 : vector<8x128xf32>
    %218 = vector.extract_strided_slice %203 {offsets = [0, 384], sizes = [8, 128], strides = [1, 1]} : vector<8x512xf32> to vector<8x128xf32>
    %219 = arith.negf %218 : vector<8x128xf32>
    %220 = math.exp %219 : vector<8x128xf32>
    %cst_59 = arith.constant 1.000000e+00 : f32
    %221 = vector.broadcast %cst_59 : f32 to vector<8x128xf32>
    %222 = arith.addf %221, %220 : vector<8x128xf32>
    %223 = arith.divf %221, %222 : vector<8x128xf32>
    %224 = arith.mulf %215, %151 : vector<8x128xf32>
    %225 = arith.mulf %209, %217 : vector<8x128xf32>
    %226 = arith.addf %224, %225 : vector<8x128xf32>
    %227 = math.tanh %226 : vector<8x128xf32>
    %228 = arith.mulf %223, %227 : vector<8x128xf32>
    %229 = arith.truncf %228 : vector<8x128xf32> to vector<8x128xbf16>
    %230 = arith.index_cast %196 : i32 to index
    %c0_60 = arith.constant 0 : index
    %c0_61 = arith.constant 0 : index
    %231 = vector.load %arg6[%230, %c0_60, %c0_61] : memref<8x8x128xbf16, #tpu.memory_space<vmem>>, vector<1x8x128xbf16>
    %232 = vector.shape_cast %231 : vector<1x8x128xbf16> to vector<8x128xbf16>
    %233 = vector.shape_cast %229 : vector<8x128xbf16> to vector<1x8x128xbf16>
    tpu.vector_store %arg6[%230, %c0_60, %c0_61], %233 {strides = array<i32>} : memref<8x8x128xbf16, #tpu.memory_space<vmem>>, vector<1x8x128xbf16>,
    %c3_i32 = arith.constant 3 : i32
    %234 = arith.index_cast %c3_i32 : i32 to index
    %c0_62 = arith.constant 0 : index
    %c0_63 = arith.constant 0 : index
    %235 = vector.load %arg1[%234, %c0_62, %c0_63] : memref<8x8x512xbf16, #tpu.memory_space<vmem>>, vector<1x8x512xbf16>
    %236 = vector.shape_cast %235 : vector<1x8x512xbf16> to vector<8x512xbf16>
    %237 = arith.extf %236 : vector<8x512xbf16> to vector<8x512xf32>
    %238 = arith.truncf %190 : vector<8x128xf32> to vector<8x128xbf16>
    %cst_64 = arith.constant dense<0.000000e+00> : vector<8x512xf32>
    %239 = tpu.matmul %238, %3, %cst_64 {dimension_numbers = #tpu.dot_dimension_numbers<[1], [0], [0], [1], [0, 0, 1, 1], [], []>} : vector<8x128xbf16>, vector<128x512xbf16>, vector<8x512xf32> -> vector<8x512xf32>
    %240 = arith.addf %237, %239 : vector<8x512xf32>
    %241 = vector.extract_strided_slice %240 {offsets = [0, 0], sizes = [8, 128], strides = [1, 1]} : vector<8x512xf32> to vector<8x128xf32>
    %242 = arith.negf %241 : vector<8x128xf32>
    %243 = math.exp %242 : vector<8x128xf32>
    %cst_65 = arith.constant 1.000000e+00 : f32
    %244 = vector.broadcast %cst_65 : f32 to vector<8x128xf32>
    %245 = arith.addf %244, %243 : vector<8x128xf32>
    %246 = arith.divf %244, %245 : vector<8x128xf32>
    %247 = vector.extract_strided_slice %240 {offsets = [0, 128], sizes = [8, 128], strides = [1, 1]} : vector<8x512xf32> to vector<8x128xf32>
    %248 = arith.negf %247 : vector<8x128xf32>
    %249 = math.exp %248 : vector<8x128xf32>
    %cst_66 = arith.constant 1.000000e+00 : f32
    %250 = vector.broadcast %cst_66 : f32 to vector<8x128xf32>
    %251 = arith.addf %250, %249 : vector<8x128xf32>
    %252 = arith.divf %250, %251 : vector<8x128xf32>
    %253 = vector.extract_strided_slice %240 {offsets = [0, 256], sizes = [8, 128], strides = [1, 1]} : vector<8x512xf32> to vector<8x128xf32>
    %254 = math.tanh %253 : vector<8x128xf32>
    %255 = vector.extract_strided_slice %240 {offsets = [0, 384], sizes = [8, 128], strides = [1, 1]} : vector<8x512xf32> to vector<8x128xf32>
    %256 = arith.negf %255 : vector<8x128xf32>
    %257 = math.exp %256 : vector<8x128xf32>
    %cst_67 = arith.constant 1.000000e+00 : f32
    %258 = vector.broadcast %cst_67 : f32 to vector<8x128xf32>
    %259 = arith.addf %258, %257 : vector<8x128xf32>
    %260 = arith.divf %258, %259 : vector<8x128xf32>
    %261 = arith.mulf %252, %188 : vector<8x128xf32>
    %262 = arith.mulf %246, %254 : vector<8x128xf32>
    %263 = arith.addf %261, %262 : vector<8x128xf32>
    %264 = math.tanh %263 : vector<8x128xf32>
    %265 = arith.mulf %260, %264 : vector<8x128xf32>
    %266 = arith.truncf %265 : vector<8x128xf32> to vector<8x128xbf16>
    %267 = arith.index_cast %c3_i32 : i32 to index
    %c0_68 = arith.constant 0 : index
    %c0_69 = arith.constant 0 : index
    %268 = vector.load %arg5[%267, %c0_68, %c0_69] : memref<8x8x128xbf16, #tpu.memory_space<vmem>>, vector<1x8x128xbf16>
    %269 = vector.shape_cast %268 : vector<1x8x128xbf16> to vector<8x128xbf16>
    %270 = vector.shape_cast %266 : vector<8x128xbf16> to vector<1x8x128xbf16>
    tpu.vector_store %arg5[%267, %c0_68, %c0_69], %270 {strides = array<i32>} : memref<8x8x128xbf16, #tpu.memory_space<vmem>>, vector<1x8x128xbf16>,
    %c7_i32_70 = arith.constant 7 : i32
    %271 = arith.subi %c7_i32_70, %c3_i32 : i32
    %272 = arith.index_cast %271 : i32 to index
    %c0_71 = arith.constant 0 : index
    %c0_72 = arith.constant 0 : index
    %273 = vector.load %arg2[%272, %c0_71, %c0_72] : memref<8x8x512xbf16, #tpu.memory_space<vmem>>, vector<1x8x512xbf16>
    %274 = vector.shape_cast %273 : vector<1x8x512xbf16> to vector<8x512xbf16>
    %275 = arith.extf %274 : vector<8x512xbf16> to vector<8x512xf32>
    %276 = arith.truncf %228 : vector<8x128xf32> to vector<8x128xbf16>
    %cst_73 = arith.constant dense<0.000000e+00> : vector<8x512xf32>
    %277 = tpu.matmul %276, %4, %cst_73 {dimension_numbers = #tpu.dot_dimension_numbers<[1], [0], [0], [1], [0, 0, 1, 1], [], []>} : vector<8x128xbf16>, vector<128x512xbf16>, vector<8x512xf32> -> vector<8x512xf32>
    %278 = arith.addf %275, %277 : vector<8x512xf32>
    %279 = vector.extract_strided_slice %278 {offsets = [0, 0], sizes = [8, 128], strides = [1, 1]} : vector<8x512xf32> to vector<8x128xf32>
    %280 = arith.negf %279 : vector<8x128xf32>
    %281 = math.exp %280 : vector<8x128xf32>
    %cst_74 = arith.constant 1.000000e+00 : f32
    %282 = vector.broadcast %cst_74 : f32 to vector<8x128xf32>
    %283 = arith.addf %282, %281 : vector<8x128xf32>
    %284 = arith.divf %282, %283 : vector<8x128xf32>
    %285 = vector.extract_strided_slice %278 {offsets = [0, 128], sizes = [8, 128], strides = [1, 1]} : vector<8x512xf32> to vector<8x128xf32>
    %286 = arith.negf %285 : vector<8x128xf32>
    %287 = math.exp %286 : vector<8x128xf32>
    %cst_75 = arith.constant 1.000000e+00 : f32
    %288 = vector.broadcast %cst_75 : f32 to vector<8x128xf32>
    %289 = arith.addf %288, %287 : vector<8x128xf32>
    %290 = arith.divf %288, %289 : vector<8x128xf32>
    %291 = vector.extract_strided_slice %278 {offsets = [0, 256], sizes = [8, 128], strides = [1, 1]} : vector<8x512xf32> to vector<8x128xf32>
    %292 = math.tanh %291 : vector<8x128xf32>
    %293 = vector.extract_strided_slice %278 {offsets = [0, 384], sizes = [8, 128], strides = [1, 1]} : vector<8x512xf32> to vector<8x128xf32>
    %294 = arith.negf %293 : vector<8x128xf32>
    %295 = math.exp %294 : vector<8x128xf32>
    %cst_76 = arith.constant 1.000000e+00 : f32
    %296 = vector.broadcast %cst_76 : f32 to vector<8x128xf32>
    %297 = arith.addf %296, %295 : vector<8x128xf32>
    %298 = arith.divf %296, %297 : vector<8x128xf32>
    %299 = arith.mulf %290, %226 : vector<8x128xf32>
    %300 = arith.mulf %284, %292 : vector<8x128xf32>
    %301 = arith.addf %299, %300 : vector<8x128xf32>
    %302 = math.tanh %301 : vector<8x128xf32>
    %303 = arith.mulf %298, %302 : vector<8x128xf32>
    %304 = arith.truncf %303 : vector<8x128xf32> to vector<8x128xbf16>
    %305 = arith.index_cast %271 : i32 to index
    %c0_77 = arith.constant 0 : index
    %c0_78 = arith.constant 0 : index
    %306 = vector.load %arg6[%305, %c0_77, %c0_78] : memref<8x8x128xbf16, #tpu.memory_space<vmem>>, vector<1x8x128xbf16>
    %307 = vector.shape_cast %306 : vector<1x8x128xbf16> to vector<8x128xbf16>
    %308 = vector.shape_cast %304 : vector<8x128xbf16> to vector<1x8x128xbf16>
    tpu.vector_store %arg6[%305, %c0_77, %c0_78], %308 {strides = array<i32>} : memref<8x8x128xbf16, #tpu.memory_space<vmem>>, vector<1x8x128xbf16>,
    %c4_i32 = arith.constant 4 : i32
    %309 = arith.index_cast %c4_i32 : i32 to index
    %c0_79 = arith.constant 0 : index
    %c0_80 = arith.constant 0 : index
    %310 = vector.load %arg1[%309, %c0_79, %c0_80] : memref<8x8x512xbf16, #tpu.memory_space<vmem>>, vector<1x8x512xbf16>
    %311 = vector.shape_cast %310 : vector<1x8x512xbf16> to vector<8x512xbf16>
    %312 = arith.extf %311 : vector<8x512xbf16> to vector<8x512xf32>
    %313 = arith.truncf %265 : vector<8x128xf32> to vector<8x128xbf16>
    %cst_81 = arith.constant dense<0.000000e+00> : vector<8x512xf32>
    %314 = tpu.matmul %313, %3, %cst_81 {dimension_numbers = #tpu.dot_dimension_numbers<[1], [0], [0], [1], [0, 0, 1, 1], [], []>} : vector<8x128xbf16>, vector<128x512xbf16>, vector<8x512xf32> -> vector<8x512xf32>
    %315 = arith.addf %312, %314 : vector<8x512xf32>
    %316 = vector.extract_strided_slice %315 {offsets = [0, 0], sizes = [8, 128], strides = [1, 1]} : vector<8x512xf32> to vector<8x128xf32>
    %317 = arith.negf %316 : vector<8x128xf32>
    %318 = math.exp %317 : vector<8x128xf32>
    %cst_82 = arith.constant 1.000000e+00 : f32
    %319 = vector.broadcast %cst_82 : f32 to vector<8x128xf32>
    %320 = arith.addf %319, %318 : vector<8x128xf32>
    %321 = arith.divf %319, %320 : vector<8x128xf32>
    %322 = vector.extract_strided_slice %315 {offsets = [0, 128], sizes = [8, 128], strides = [1, 1]} : vector<8x512xf32> to vector<8x128xf32>
    %323 = arith.negf %322 : vector<8x128xf32>
    %324 = math.exp %323 : vector<8x128xf32>
    %cst_83 = arith.constant 1.000000e+00 : f32
    %325 = vector.broadcast %cst_83 : f32 to vector<8x128xf32>
    %326 = arith.addf %325, %324 : vector<8x128xf32>
    %327 = arith.divf %325, %326 : vector<8x128xf32>
    %328 = vector.extract_strided_slice %315 {offsets = [0, 256], sizes = [8, 128], strides = [1, 1]} : vector<8x512xf32> to vector<8x128xf32>
    %329 = math.tanh %328 : vector<8x128xf32>
    %330 = vector.extract_strided_slice %315 {offsets = [0, 384], sizes = [8, 128], strides = [1, 1]} : vector<8x512xf32> to vector<8x128xf32>
    %331 = arith.negf %330 : vector<8x128xf32>
    %332 = math.exp %331 : vector<8x128xf32>
    %cst_84 = arith.constant 1.000000e+00 : f32
    %333 = vector.broadcast %cst_84 : f32 to vector<8x128xf32>
    %334 = arith.addf %333, %332 : vector<8x128xf32>
    %335 = arith.divf %333, %334 : vector<8x128xf32>
    %336 = arith.mulf %327, %263 : vector<8x128xf32>
    %337 = arith.mulf %321, %329 : vector<8x128xf32>
    %338 = arith.addf %336, %337 : vector<8x128xf32>
    %339 = math.tanh %338 : vector<8x128xf32>
    %340 = arith.mulf %335, %339 : vector<8x128xf32>
    %341 = arith.truncf %340 : vector<8x128xf32> to vector<8x128xbf16>
    %342 = arith.index_cast %c4_i32 : i32 to index
    %c0_85 = arith.constant 0 : index
    %c0_86 = arith.constant 0 : index
    %343 = vector.load %arg5[%342, %c0_85, %c0_86] : memref<8x8x128xbf16, #tpu.memory_space<vmem>>, vector<1x8x128xbf16>
    %344 = vector.shape_cast %343 : vector<1x8x128xbf16> to vector<8x128xbf16>
    %345 = vector.shape_cast %341 : vector<8x128xbf16> to vector<1x8x128xbf16>
    tpu.vector_store %arg5[%342, %c0_85, %c0_86], %345 {strides = array<i32>} : memref<8x8x128xbf16, #tpu.memory_space<vmem>>, vector<1x8x128xbf16>,
    %c7_i32_87 = arith.constant 7 : i32
    %346 = arith.subi %c7_i32_87, %c4_i32 : i32
    %347 = arith.index_cast %346 : i32 to index
    %c0_88 = arith.constant 0 : index
    %c0_89 = arith.constant 0 : index
    %348 = vector.load %arg2[%347, %c0_88, %c0_89] : memref<8x8x512xbf16, #tpu.memory_space<vmem>>, vector<1x8x512xbf16>
    %349 = vector.shape_cast %348 : vector<1x8x512xbf16> to vector<8x512xbf16>
    %350 = arith.extf %349 : vector<8x512xbf16> to vector<8x512xf32>
    %351 = arith.truncf %303 : vector<8x128xf32> to vector<8x128xbf16>
    %cst_90 = arith.constant dense<0.000000e+00> : vector<8x512xf32>
    %352 = tpu.matmul %351, %4, %cst_90 {dimension_numbers = #tpu.dot_dimension_numbers<[1], [0], [0], [1], [0, 0, 1, 1], [], []>} : vector<8x128xbf16>, vector<128x512xbf16>, vector<8x512xf32> -> vector<8x512xf32>
    %353 = arith.addf %350, %352 : vector<8x512xf32>
    %354 = vector.extract_strided_slice %353 {offsets = [0, 0], sizes = [8, 128], strides = [1, 1]} : vector<8x512xf32> to vector<8x128xf32>
    %355 = arith.negf %354 : vector<8x128xf32>
    %356 = math.exp %355 : vector<8x128xf32>
    %cst_91 = arith.constant 1.000000e+00 : f32
    %357 = vector.broadcast %cst_91 : f32 to vector<8x128xf32>
    %358 = arith.addf %357, %356 : vector<8x128xf32>
    %359 = arith.divf %357, %358 : vector<8x128xf32>
    %360 = vector.extract_strided_slice %353 {offsets = [0, 128], sizes = [8, 128], strides = [1, 1]} : vector<8x512xf32> to vector<8x128xf32>
    %361 = arith.negf %360 : vector<8x128xf32>
    %362 = math.exp %361 : vector<8x128xf32>
    %cst_92 = arith.constant 1.000000e+00 : f32
    %363 = vector.broadcast %cst_92 : f32 to vector<8x128xf32>
    %364 = arith.addf %363, %362 : vector<8x128xf32>
    %365 = arith.divf %363, %364 : vector<8x128xf32>
    %366 = vector.extract_strided_slice %353 {offsets = [0, 256], sizes = [8, 128], strides = [1, 1]} : vector<8x512xf32> to vector<8x128xf32>
    %367 = math.tanh %366 : vector<8x128xf32>
    %368 = vector.extract_strided_slice %353 {offsets = [0, 384], sizes = [8, 128], strides = [1, 1]} : vector<8x512xf32> to vector<8x128xf32>
    %369 = arith.negf %368 : vector<8x128xf32>
    %370 = math.exp %369 : vector<8x128xf32>
    %cst_93 = arith.constant 1.000000e+00 : f32
    %371 = vector.broadcast %cst_93 : f32 to vector<8x128xf32>
    %372 = arith.addf %371, %370 : vector<8x128xf32>
    %373 = arith.divf %371, %372 : vector<8x128xf32>
    %374 = arith.mulf %365, %301 : vector<8x128xf32>
    %375 = arith.mulf %359, %367 : vector<8x128xf32>
    %376 = arith.addf %374, %375 : vector<8x128xf32>
    %377 = math.tanh %376 : vector<8x128xf32>
    %378 = arith.mulf %373, %377 : vector<8x128xf32>
    %379 = arith.truncf %378 : vector<8x128xf32> to vector<8x128xbf16>
    %380 = arith.index_cast %346 : i32 to index
    %c0_94 = arith.constant 0 : index
    %c0_95 = arith.constant 0 : index
    %381 = vector.load %arg6[%380, %c0_94, %c0_95] : memref<8x8x128xbf16, #tpu.memory_space<vmem>>, vector<1x8x128xbf16>
    %382 = vector.shape_cast %381 : vector<1x8x128xbf16> to vector<8x128xbf16>
    %383 = vector.shape_cast %379 : vector<8x128xbf16> to vector<1x8x128xbf16>
    tpu.vector_store %arg6[%380, %c0_94, %c0_95], %383 {strides = array<i32>} : memref<8x8x128xbf16, #tpu.memory_space<vmem>>, vector<1x8x128xbf16>,
    %c5_i32 = arith.constant 5 : i32
    %384 = arith.index_cast %c5_i32 : i32 to index
    %c0_96 = arith.constant 0 : index
    %c0_97 = arith.constant 0 : index
    %385 = vector.load %arg1[%384, %c0_96, %c0_97] : memref<8x8x512xbf16, #tpu.memory_space<vmem>>, vector<1x8x512xbf16>
    %386 = vector.shape_cast %385 : vector<1x8x512xbf16> to vector<8x512xbf16>
    %387 = arith.extf %386 : vector<8x512xbf16> to vector<8x512xf32>
    %388 = arith.truncf %340 : vector<8x128xf32> to vector<8x128xbf16>
    %cst_98 = arith.constant dense<0.000000e+00> : vector<8x512xf32>
    %389 = tpu.matmul %388, %3, %cst_98 {dimension_numbers = #tpu.dot_dimension_numbers<[1], [0], [0], [1], [0, 0, 1, 1], [], []>} : vector<8x128xbf16>, vector<128x512xbf16>, vector<8x512xf32> -> vector<8x512xf32>
    %390 = arith.addf %387, %389 : vector<8x512xf32>
    %391 = vector.extract_strided_slice %390 {offsets = [0, 0], sizes = [8, 128], strides = [1, 1]} : vector<8x512xf32> to vector<8x128xf32>
    %392 = arith.negf %391 : vector<8x128xf32>
    %393 = math.exp %392 : vector<8x128xf32>
    %cst_99 = arith.constant 1.000000e+00 : f32
    %394 = vector.broadcast %cst_99 : f32 to vector<8x128xf32>
    %395 = arith.addf %394, %393 : vector<8x128xf32>
    %396 = arith.divf %394, %395 : vector<8x128xf32>
    %397 = vector.extract_strided_slice %390 {offsets = [0, 128], sizes = [8, 128], strides = [1, 1]} : vector<8x512xf32> to vector<8x128xf32>
    %398 = arith.negf %397 : vector<8x128xf32>
    %399 = math.exp %398 : vector<8x128xf32>
    %cst_100 = arith.constant 1.000000e+00 : f32
    %400 = vector.broadcast %cst_100 : f32 to vector<8x128xf32>
    %401 = arith.addf %400, %399 : vector<8x128xf32>
    %402 = arith.divf %400, %401 : vector<8x128xf32>
    %403 = vector.extract_strided_slice %390 {offsets = [0, 256], sizes = [8, 128], strides = [1, 1]} : vector<8x512xf32> to vector<8x128xf32>
    %404 = math.tanh %403 : vector<8x128xf32>
    %405 = vector.extract_strided_slice %390 {offsets = [0, 384], sizes = [8, 128], strides = [1, 1]} : vector<8x512xf32> to vector<8x128xf32>
    %406 = arith.negf %405 : vector<8x128xf32>
    %407 = math.exp %406 : vector<8x128xf32>
    %cst_101 = arith.constant 1.000000e+00 : f32
    %408 = vector.broadcast %cst_101 : f32 to vector<8x128xf32>
    %409 = arith.addf %408, %407 : vector<8x128xf32>
    %410 = arith.divf %408, %409 : vector<8x128xf32>
    %411 = arith.mulf %402, %338 : vector<8x128xf32>
    %412 = arith.mulf %396, %404 : vector<8x128xf32>
    %413 = arith.addf %411, %412 : vector<8x128xf32>
    %414 = math.tanh %413 : vector<8x128xf32>
    %415 = arith.mulf %410, %414 : vector<8x128xf32>
    %416 = arith.truncf %415 : vector<8x128xf32> to vector<8x128xbf16>
    %417 = arith.index_cast %c5_i32 : i32 to index
    %c0_102 = arith.constant 0 : index
    %c0_103 = arith.constant 0 : index
    %418 = vector.load %arg5[%417, %c0_102, %c0_103] : memref<8x8x128xbf16, #tpu.memory_space<vmem>>, vector<1x8x128xbf16>
    %419 = vector.shape_cast %418 : vector<1x8x128xbf16> to vector<8x128xbf16>
    %420 = vector.shape_cast %416 : vector<8x128xbf16> to vector<1x8x128xbf16>
    tpu.vector_store %arg5[%417, %c0_102, %c0_103], %420 {strides = array<i32>} : memref<8x8x128xbf16, #tpu.memory_space<vmem>>, vector<1x8x128xbf16>,
    %c7_i32_104 = arith.constant 7 : i32
    %421 = arith.subi %c7_i32_104, %c5_i32 : i32
    %422 = arith.index_cast %421 : i32 to index
    %c0_105 = arith.constant 0 : index
    %c0_106 = arith.constant 0 : index
    %423 = vector.load %arg2[%422, %c0_105, %c0_106] : memref<8x8x512xbf16, #tpu.memory_space<vmem>>, vector<1x8x512xbf16>
    %424 = vector.shape_cast %423 : vector<1x8x512xbf16> to vector<8x512xbf16>
    %425 = arith.extf %424 : vector<8x512xbf16> to vector<8x512xf32>
    %426 = arith.truncf %378 : vector<8x128xf32> to vector<8x128xbf16>
    %cst_107 = arith.constant dense<0.000000e+00> : vector<8x512xf32>
    %427 = tpu.matmul %426, %4, %cst_107 {dimension_numbers = #tpu.dot_dimension_numbers<[1], [0], [0], [1], [0, 0, 1, 1], [], []>} : vector<8x128xbf16>, vector<128x512xbf16>, vector<8x512xf32> -> vector<8x512xf32>
    %428 = arith.addf %425, %427 : vector<8x512xf32>
    %429 = vector.extract_strided_slice %428 {offsets = [0, 0], sizes = [8, 128], strides = [1, 1]} : vector<8x512xf32> to vector<8x128xf32>
    %430 = arith.negf %429 : vector<8x128xf32>
    %431 = math.exp %430 : vector<8x128xf32>
    %cst_108 = arith.constant 1.000000e+00 : f32
    %432 = vector.broadcast %cst_108 : f32 to vector<8x128xf32>
    %433 = arith.addf %432, %431 : vector<8x128xf32>
    %434 = arith.divf %432, %433 : vector<8x128xf32>
    %435 = vector.extract_strided_slice %428 {offsets = [0, 128], sizes = [8, 128], strides = [1, 1]} : vector<8x512xf32> to vector<8x128xf32>
    %436 = arith.negf %435 : vector<8x128xf32>
    %437 = math.exp %436 : vector<8x128xf32>
    %cst_109 = arith.constant 1.000000e+00 : f32
    %438 = vector.broadcast %cst_109 : f32 to vector<8x128xf32>
    %439 = arith.addf %438, %437 : vector<8x128xf32>
    %440 = arith.divf %438, %439 : vector<8x128xf32>
    %441 = vector.extract_strided_slice %428 {offsets = [0, 256], sizes = [8, 128], strides = [1, 1]} : vector<8x512xf32> to vector<8x128xf32>
    %442 = math.tanh %441 : vector<8x128xf32>
    %443 = vector.extract_strided_slice %428 {offsets = [0, 384], sizes = [8, 128], strides = [1, 1]} : vector<8x512xf32> to vector<8x128xf32>
    %444 = arith.negf %443 : vector<8x128xf32>
    %445 = math.exp %444 : vector<8x128xf32>
    %cst_110 = arith.constant 1.000000e+00 : f32
    %446 = vector.broadcast %cst_110 : f32 to vector<8x128xf32>
    %447 = arith.addf %446, %445 : vector<8x128xf32>
    %448 = arith.divf %446, %447 : vector<8x128xf32>
    %449 = arith.mulf %440, %376 : vector<8x128xf32>
    %450 = arith.mulf %434, %442 : vector<8x128xf32>
    %451 = arith.addf %449, %450 : vector<8x128xf32>
    %452 = math.tanh %451 : vector<8x128xf32>
    %453 = arith.mulf %448, %452 : vector<8x128xf32>
    %454 = arith.truncf %453 : vector<8x128xf32> to vector<8x128xbf16>
    %455 = arith.index_cast %421 : i32 to index
    %c0_111 = arith.constant 0 : index
    %c0_112 = arith.constant 0 : index
    %456 = vector.load %arg6[%455, %c0_111, %c0_112] : memref<8x8x128xbf16, #tpu.memory_space<vmem>>, vector<1x8x128xbf16>
    %457 = vector.shape_cast %456 : vector<1x8x128xbf16> to vector<8x128xbf16>
    %458 = vector.shape_cast %454 : vector<8x128xbf16> to vector<1x8x128xbf16>
    tpu.vector_store %arg6[%455, %c0_111, %c0_112], %458 {strides = array<i32>} : memref<8x8x128xbf16, #tpu.memory_space<vmem>>, vector<1x8x128xbf16>,
    %c6_i32 = arith.constant 6 : i32
    %459 = arith.index_cast %c6_i32 : i32 to index
    %c0_113 = arith.constant 0 : index
    %c0_114 = arith.constant 0 : index
    %460 = vector.load %arg1[%459, %c0_113, %c0_114] : memref<8x8x512xbf16, #tpu.memory_space<vmem>>, vector<1x8x512xbf16>
    %461 = vector.shape_cast %460 : vector<1x8x512xbf16> to vector<8x512xbf16>
    %462 = arith.extf %461 : vector<8x512xbf16> to vector<8x512xf32>
    %463 = arith.truncf %415 : vector<8x128xf32> to vector<8x128xbf16>
    %cst_115 = arith.constant dense<0.000000e+00> : vector<8x512xf32>
    %464 = tpu.matmul %463, %3, %cst_115 {dimension_numbers = #tpu.dot_dimension_numbers<[1], [0], [0], [1], [0, 0, 1, 1], [], []>} : vector<8x128xbf16>, vector<128x512xbf16>, vector<8x512xf32> -> vector<8x512xf32>
    %465 = arith.addf %462, %464 : vector<8x512xf32>
    %466 = vector.extract_strided_slice %465 {offsets = [0, 0], sizes = [8, 128], strides = [1, 1]} : vector<8x512xf32> to vector<8x128xf32>
    %467 = arith.negf %466 : vector<8x128xf32>
    %468 = math.exp %467 : vector<8x128xf32>
    %cst_116 = arith.constant 1.000000e+00 : f32
    %469 = vector.broadcast %cst_116 : f32 to vector<8x128xf32>
    %470 = arith.addf %469, %468 : vector<8x128xf32>
    %471 = arith.divf %469, %470 : vector<8x128xf32>
    %472 = vector.extract_strided_slice %465 {offsets = [0, 128], sizes = [8, 128], strides = [1, 1]} : vector<8x512xf32> to vector<8x128xf32>
    %473 = arith.negf %472 : vector<8x128xf32>
    %474 = math.exp %473 : vector<8x128xf32>
    %cst_117 = arith.constant 1.000000e+00 : f32
    %475 = vector.broadcast %cst_117 : f32 to vector<8x128xf32>
    %476 = arith.addf %475, %474 : vector<8x128xf32>
    %477 = arith.divf %475, %476 : vector<8x128xf32>
    %478 = vector.extract_strided_slice %465 {offsets = [0, 256], sizes = [8, 128], strides = [1, 1]} : vector<8x512xf32> to vector<8x128xf32>
    %479 = math.tanh %478 : vector<8x128xf32>
    %480 = vector.extract_strided_slice %465 {offsets = [0, 384], sizes = [8, 128], strides = [1, 1]} : vector<8x512xf32> to vector<8x128xf32>
    %481 = arith.negf %480 : vector<8x128xf32>
    %482 = math.exp %481 : vector<8x128xf32>
    %cst_118 = arith.constant 1.000000e+00 : f32
    %483 = vector.broadcast %cst_118 : f32 to vector<8x128xf32>
    %484 = arith.addf %483, %482 : vector<8x128xf32>
    %485 = arith.divf %483, %484 : vector<8x128xf32>
    %486 = arith.mulf %477, %413 : vector<8x128xf32>
    %487 = arith.mulf %471, %479 : vector<8x128xf32>
    %488 = arith.addf %486, %487 : vector<8x128xf32>
    %489 = math.tanh %488 : vector<8x128xf32>
    %490 = arith.mulf %485, %489 : vector<8x128xf32>
    %491 = arith.truncf %490 : vector<8x128xf32> to vector<8x128xbf16>
    %492 = arith.index_cast %c6_i32 : i32 to index
    %c0_119 = arith.constant 0 : index
    %c0_120 = arith.constant 0 : index
    %493 = vector.load %arg5[%492, %c0_119, %c0_120] : memref<8x8x128xbf16, #tpu.memory_space<vmem>>, vector<1x8x128xbf16>
    %494 = vector.shape_cast %493 : vector<1x8x128xbf16> to vector<8x128xbf16>
    %495 = vector.shape_cast %491 : vector<8x128xbf16> to vector<1x8x128xbf16>
    tpu.vector_store %arg5[%492, %c0_119, %c0_120], %495 {strides = array<i32>} : memref<8x8x128xbf16, #tpu.memory_space<vmem>>, vector<1x8x128xbf16>,
    %c7_i32_121 = arith.constant 7 : i32
    %496 = arith.subi %c7_i32_121, %c6_i32 : i32
    %497 = arith.index_cast %496 : i32 to index
    %c0_122 = arith.constant 0 : index
    %c0_123 = arith.constant 0 : index
    %498 = vector.load %arg2[%497, %c0_122, %c0_123] : memref<8x8x512xbf16, #tpu.memory_space<vmem>>, vector<1x8x512xbf16>
    %499 = vector.shape_cast %498 : vector<1x8x512xbf16> to vector<8x512xbf16>
    %500 = arith.extf %499 : vector<8x512xbf16> to vector<8x512xf32>
    %501 = arith.truncf %453 : vector<8x128xf32> to vector<8x128xbf16>
    %cst_124 = arith.constant dense<0.000000e+00> : vector<8x512xf32>
    %502 = tpu.matmul %501, %4, %cst_124 {dimension_numbers = #tpu.dot_dimension_numbers<[1], [0], [0], [1], [0, 0, 1, 1], [], []>} : vector<8x128xbf16>, vector<128x512xbf16>, vector<8x512xf32> -> vector<8x512xf32>
    %503 = arith.addf %500, %502 : vector<8x512xf32>
    %504 = vector.extract_strided_slice %503 {offsets = [0, 0], sizes = [8, 128], strides = [1, 1]} : vector<8x512xf32> to vector<8x128xf32>
    %505 = arith.negf %504 : vector<8x128xf32>
    %506 = math.exp %505 : vector<8x128xf32>
    %cst_125 = arith.constant 1.000000e+00 : f32
    %507 = vector.broadcast %cst_125 : f32 to vector<8x128xf32>
    %508 = arith.addf %507, %506 : vector<8x128xf32>
    %509 = arith.divf %507, %508 : vector<8x128xf32>
    %510 = vector.extract_strided_slice %503 {offsets = [0, 128], sizes = [8, 128], strides = [1, 1]} : vector<8x512xf32> to vector<8x128xf32>
    %511 = arith.negf %510 : vector<8x128xf32>
    %512 = math.exp %511 : vector<8x128xf32>
    %cst_126 = arith.constant 1.000000e+00 : f32
    %513 = vector.broadcast %cst_126 : f32 to vector<8x128xf32>
    %514 = arith.addf %513, %512 : vector<8x128xf32>
    %515 = arith.divf %513, %514 : vector<8x128xf32>
    %516 = vector.extract_strided_slice %503 {offsets = [0, 256], sizes = [8, 128], strides = [1, 1]} : vector<8x512xf32> to vector<8x128xf32>
    %517 = math.tanh %516 : vector<8x128xf32>
    %518 = vector.extract_strided_slice %503 {offsets = [0, 384], sizes = [8, 128], strides = [1, 1]} : vector<8x512xf32> to vector<8x128xf32>
    %519 = arith.negf %518 : vector<8x128xf32>
    %520 = math.exp %519 : vector<8x128xf32>
    %cst_127 = arith.constant 1.000000e+00 : f32
    %521 = vector.broadcast %cst_127 : f32 to vector<8x128xf32>
    %522 = arith.addf %521, %520 : vector<8x128xf32>
    %523 = arith.divf %521, %522 : vector<8x128xf32>
    %524 = arith.mulf %515, %451 : vector<8x128xf32>
    %525 = arith.mulf %509, %517 : vector<8x128xf32>
    %526 = arith.addf %524, %525 : vector<8x128xf32>
    %527 = math.tanh %526 : vector<8x128xf32>
    %528 = arith.mulf %523, %527 : vector<8x128xf32>
    %529 = arith.truncf %528 : vector<8x128xf32> to vector<8x128xbf16>
    %530 = arith.index_cast %496 : i32 to index
    %c0_128 = arith.constant 0 : index
    %c0_129 = arith.constant 0 : index
    %531 = vector.load %arg6[%530, %c0_128, %c0_129] : memref<8x8x128xbf16, #tpu.memory_space<vmem>>, vector<1x8x128xbf16>
    %532 = vector.shape_cast %531 : vector<1x8x128xbf16> to vector<8x128xbf16>
    %533 = vector.shape_cast %529 : vector<8x128xbf16> to vector<1x8x128xbf16>
    tpu.vector_store %arg6[%530, %c0_128, %c0_129], %533 {strides = array<i32>} : memref<8x8x128xbf16, #tpu.memory_space<vmem>>, vector<1x8x128xbf16>,
    %c7_i32_130 = arith.constant 7 : i32
    %534 = arith.index_cast %c7_i32_130 : i32 to index
    %c0_131 = arith.constant 0 : index
    %c0_132 = arith.constant 0 : index
    %535 = vector.load %arg1[%534, %c0_131, %c0_132] : memref<8x8x512xbf16, #tpu.memory_space<vmem>>, vector<1x8x512xbf16>
    %536 = vector.shape_cast %535 : vector<1x8x512xbf16> to vector<8x512xbf16>
    %537 = arith.extf %536 : vector<8x512xbf16> to vector<8x512xf32>
    %538 = arith.truncf %490 : vector<8x128xf32> to vector<8x128xbf16>
    %cst_133 = arith.constant dense<0.000000e+00> : vector<8x512xf32>
    %539 = tpu.matmul %538, %3, %cst_133 {dimension_numbers = #tpu.dot_dimension_numbers<[1], [0], [0], [1], [0, 0, 1, 1], [], []>} : vector<8x128xbf16>, vector<128x512xbf16>, vector<8x512xf32> -> vector<8x512xf32>
    %540 = arith.addf %537, %539 : vector<8x512xf32>
    %541 = vector.extract_strided_slice %540 {offsets = [0, 0], sizes = [8, 128], strides = [1, 1]} : vector<8x512xf32> to vector<8x128xf32>
    %542 = arith.negf %541 : vector<8x128xf32>
    %543 = math.exp %542 : vector<8x128xf32>
    %cst_134 = arith.constant 1.000000e+00 : f32
    %544 = vector.broadcast %cst_134 : f32 to vector<8x128xf32>
    %545 = arith.addf %544, %543 : vector<8x128xf32>
    %546 = arith.divf %544, %545 : vector<8x128xf32>
    %547 = vector.extract_strided_slice %540 {offsets = [0, 128], sizes = [8, 128], strides = [1, 1]} : vector<8x512xf32> to vector<8x128xf32>
    %548 = arith.negf %547 : vector<8x128xf32>
    %549 = math.exp %548 : vector<8x128xf32>
    %cst_135 = arith.constant 1.000000e+00 : f32
    %550 = vector.broadcast %cst_135 : f32 to vector<8x128xf32>
    %551 = arith.addf %550, %549 : vector<8x128xf32>
    %552 = arith.divf %550, %551 : vector<8x128xf32>
    %553 = vector.extract_strided_slice %540 {offsets = [0, 256], sizes = [8, 128], strides = [1, 1]} : vector<8x512xf32> to vector<8x128xf32>
    %554 = math.tanh %553 : vector<8x128xf32>
    %555 = vector.extract_strided_slice %540 {offsets = [0, 384], sizes = [8, 128], strides = [1, 1]} : vector<8x512xf32> to vector<8x128xf32>
    %556 = arith.negf %555 : vector<8x128xf32>
    %557 = math.exp %556 : vector<8x128xf32>
    %cst_136 = arith.constant 1.000000e+00 : f32
    %558 = vector.broadcast %cst_136 : f32 to vector<8x128xf32>
    %559 = arith.addf %558, %557 : vector<8x128xf32>
    %560 = arith.divf %558, %559 : vector<8x128xf32>
    %561 = arith.mulf %552, %488 : vector<8x128xf32>
    %562 = arith.mulf %546, %554 : vector<8x128xf32>
    %563 = arith.addf %561, %562 : vector<8x128xf32>
    %564 = math.tanh %563 : vector<8x128xf32>
    %565 = arith.mulf %560, %564 : vector<8x128xf32>
    %566 = arith.truncf %565 : vector<8x128xf32> to vector<8x128xbf16>
    %567 = arith.index_cast %c7_i32_130 : i32 to index
    %c0_137 = arith.constant 0 : index
    %c0_138 = arith.constant 0 : index
    %568 = vector.load %arg5[%567, %c0_137, %c0_138] : memref<8x8x128xbf16, #tpu.memory_space<vmem>>, vector<1x8x128xbf16>
    %569 = vector.shape_cast %568 : vector<1x8x128xbf16> to vector<8x128xbf16>
    %570 = vector.shape_cast %566 : vector<8x128xbf16> to vector<1x8x128xbf16>
    tpu.vector_store %arg5[%567, %c0_137, %c0_138], %570 {strides = array<i32>} : memref<8x8x128xbf16, #tpu.memory_space<vmem>>, vector<1x8x128xbf16>,
    %c7_i32_139 = arith.constant 7 : i32
    %571 = arith.subi %c7_i32_139, %c7_i32_130 : i32
    %572 = arith.index_cast %571 : i32 to index
    %c0_140 = arith.constant 0 : index
    %c0_141 = arith.constant 0 : index
    %573 = vector.load %arg2[%572, %c0_140, %c0_141] : memref<8x8x512xbf16, #tpu.memory_space<vmem>>, vector<1x8x512xbf16>
    %574 = vector.shape_cast %573 : vector<1x8x512xbf16> to vector<8x512xbf16>
    %575 = arith.extf %574 : vector<8x512xbf16> to vector<8x512xf32>
    %576 = arith.truncf %528 : vector<8x128xf32> to vector<8x128xbf16>
    %cst_142 = arith.constant dense<0.000000e+00> : vector<8x512xf32>
    %577 = tpu.matmul %576, %4, %cst_142 {dimension_numbers = #tpu.dot_dimension_numbers<[1], [0], [0], [1], [0, 0, 1, 1], [], []>} : vector<8x128xbf16>, vector<128x512xbf16>, vector<8x512xf32> -> vector<8x512xf32>
    %578 = arith.addf %575, %577 : vector<8x512xf32>
    %579 = vector.extract_strided_slice %578 {offsets = [0, 0], sizes = [8, 128], strides = [1, 1]} : vector<8x512xf32> to vector<8x128xf32>
    %580 = arith.negf %579 : vector<8x128xf32>
    %581 = math.exp %580 : vector<8x128xf32>
    %cst_143 = arith.constant 1.000000e+00 : f32
    %582 = vector.broadcast %cst_143 : f32 to vector<8x128xf32>
    %583 = arith.addf %582, %581 : vector<8x128xf32>
    %584 = arith.divf %582, %583 : vector<8x128xf32>
    %585 = vector.extract_strided_slice %578 {offsets = [0, 128], sizes = [8, 128], strides = [1, 1]} : vector<8x512xf32> to vector<8x128xf32>
    %586 = arith.negf %585 : vector<8x128xf32>
    %587 = math.exp %586 : vector<8x128xf32>
    %cst_144 = arith.constant 1.000000e+00 : f32
    %588 = vector.broadcast %cst_144 : f32 to vector<8x128xf32>
    %589 = arith.addf %588, %587 : vector<8x128xf32>
    %590 = arith.divf %588, %589 : vector<8x128xf32>
    %591 = vector.extract_strided_slice %578 {offsets = [0, 256], sizes = [8, 128], strides = [1, 1]} : vector<8x512xf32> to vector<8x128xf32>
    %592 = math.tanh %591 : vector<8x128xf32>
    %593 = vector.extract_strided_slice %578 {offsets = [0, 384], sizes = [8, 128], strides = [1, 1]} : vector<8x512xf32> to vector<8x128xf32>
    %594 = arith.negf %593 : vector<8x128xf32>
    %595 = math.exp %594 : vector<8x128xf32>
    %cst_145 = arith.constant 1.000000e+00 : f32
    %596 = vector.broadcast %cst_145 : f32 to vector<8x128xf32>
    %597 = arith.addf %596, %595 : vector<8x128xf32>
    %598 = arith.divf %596, %597 : vector<8x128xf32>
    %599 = arith.mulf %590, %526 : vector<8x128xf32>
    %600 = arith.mulf %584, %592 : vector<8x128xf32>
    %601 = arith.addf %599, %600 : vector<8x128xf32>
    %602 = math.tanh %601 : vector<8x128xf32>
    %603 = arith.mulf %598, %602 : vector<8x128xf32>
    %604 = arith.truncf %603 : vector<8x128xf32> to vector<8x128xbf16>
    %605 = arith.index_cast %571 : i32 to index
    %c0_146 = arith.constant 0 : index
    %c0_147 = arith.constant 0 : index
    %606 = vector.load %arg6[%605, %c0_146, %c0_147] : memref<8x8x128xbf16, #tpu.memory_space<vmem>>, vector<1x8x128xbf16>
    %607 = vector.shape_cast %606 : vector<1x8x128xbf16> to vector<8x128xbf16>
    %608 = vector.shape_cast %604 : vector<8x128xbf16> to vector<1x8x128xbf16>
    tpu.vector_store %arg6[%605, %c0_146, %c0_147], %608 {strides = array<i32>} : memref<8x8x128xbf16, #tpu.memory_space<vmem>>, vector<1x8x128xbf16>,
    %c8_i32 = arith.constant 8 : i32
    %c0_148 = arith.constant 0 : index
    %c0_149 = arith.constant 0 : index
    %609 = vector.load %arg7[%c0_148, %c0_149] : memref<8x128xf32, #tpu.memory_space<vmem>>, vector<8x128xf32>
    tpu.vector_store %arg7[%c0_148, %c0_149], %565 {strides = array<i32>} : memref<8x128xf32, #tpu.memory_space<vmem>>, vector<8x128xf32>,
    %c0_150 = arith.constant 0 : index
    %c0_151 = arith.constant 0 : index
    %610 = vector.load %arg8[%c0_150, %c0_151] : memref<8x128xf32, #tpu.memory_space<vmem>>, vector<8x128xf32>
    tpu.vector_store %arg8[%c0_150, %c0_151], %563 {strides = array<i32>} : memref<8x128xf32, #tpu.memory_space<vmem>>, vector<8x128xf32>,
    %c0_152 = arith.constant 0 : index
    %c0_153 = arith.constant 0 : index
    %611 = vector.load %arg9[%c0_152, %c0_153] : memref<8x128xf32, #tpu.memory_space<vmem>>, vector<8x128xf32>
    tpu.vector_store %arg9[%c0_152, %c0_153], %603 {strides = array<i32>} : memref<8x128xf32, #tpu.memory_space<vmem>>, vector<8x128xf32>,
    %c0_154 = arith.constant 0 : index
    %c0_155 = arith.constant 0 : index
    %612 = vector.load %arg10[%c0_154, %c0_155] : memref<8x128xf32, #tpu.memory_space<vmem>>, vector<8x128xf32>
    tpu.vector_store %arg10[%c0_154, %c0_155], %601 {strides = array<i32>} : memref<8x128xf32, #tpu.memory_space<vmem>>, vector<8x128xf32>,
    return
  }
  func.func @transform_0(%arg0: i32) -> (i32, i32, i32) {
    %c0_i32 = arith.constant 0 : i32
    %c0_i32_0 = arith.constant 0 : i32
    %c0_i32_1 = arith.constant 0 : i32
    return %arg0, %c0_i32, %c0_i32_0 : i32, i32, i32
  }
  func.func @transform_1(%arg0: i32) -> (i32, i32, i32) {
    %c0_i32 = arith.constant 0 : i32
    %0 = arith.subi %c0_i32, %arg0 : i32
    %c0_i32_0 = arith.constant 0 : i32
    %c1_i32 = arith.constant 1 : i32
    %c0_i32_1 = arith.constant 0 : i32
    return %0, %c0_i32_0, %c1_i32 : i32, i32, i32
  }
  func.func @transform_2(%arg0: i32) -> (i32, i32) {
    %c0_i32 = arith.constant 0 : i32
    %c0_i32_0 = arith.constant 0 : i32
    %c0_i32_1 = arith.constant 0 : i32
    return %c0_i32, %c0_i32_0 : i32, i32
  }
  func.func @transform_3(%arg0: i32) -> (i32, i32) {
    %c0_i32 = arith.constant 0 : i32
    %c0_i32_0 = arith.constant 0 : i32
    %c0_i32_1 = arith.constant 0 : i32
    return %c0_i32, %c0_i32_0 : i32, i32
  }
  func.func @transform_4(%arg0: i32) -> (i32, i32, i32) {
    %c0_i32 = arith.constant 0 : i32
    %c0_i32_0 = arith.constant 0 : i32
    %c0_i32_1 = arith.constant 0 : i32
    return %arg0, %c0_i32, %c0_i32_0 : i32, i32, i32
  }
  func.func @transform_5(%arg0: i32) -> (i32, i32, i32) {
    %c0_i32 = arith.constant 0 : i32
    %0 = arith.subi %c0_i32, %arg0 : i32
    %c0_i32_0 = arith.constant 0 : i32
    %c0_i32_1 = arith.constant 0 : i32
    %c0_i32_2 = arith.constant 0 : i32
    return %0, %c0_i32_0, %c0_i32_1 : i32, i32, i32
  }
}

</mosaic_0001>

<llo_original>
// kernel: decoder_forward.3
$region0: #{decoder_forward.3}
  #allocation0 [shape = 'u32[]', space=smem, size = 0x4, offset = 0x4, fixed_abs, tag = 'smem constant byte address 0x4 - core index']
  #allocation1 [shape = 'u32[144,128]{1,0:T(1,128)}', space=vmem, size = 0x12000, scoped, tag = 'internal scratch']
  #allocation2 [shape = 'f32[8,128]{1,0:T(8,128)}', space=vmem, size = 0x1000, scoped, tag = 'scratch operand']
  #allocation3 [shape = 'f32[8,128]{1,0:T(8,128)}', space=vmem, size = 0x1000, scoped, tag = 'scratch operand']
  #allocation4 [shape = 'f32[8,128]{1,0:T(8,128)}', space=vmem, size = 0x1000, scoped, tag = 'scratch operand']
  #allocation5 [shape = 'f32[8,128]{1,0:T(8,128)}', space=vmem, size = 0x1000, scoped, tag = 'scratch operand']
  %s0 = inlined_call_operand.vmem [shape: bf16[8,8,1024], index: 0, kind: input, shape index: {}, may-alias: {0,1}]
  %s1 = inlined_call_operand.vmem [shape: bf16[8,8,1024], index: 1, kind: input, shape index: {}, may-alias: {0,1}]
  %s2 = inlined_call_operand.vmem [shape: bf16[128,512], index: 2, kind: input, shape index: {}]
  %s3 = inlined_call_operand.vmem [shape: bf16[128,512], index: 3, kind: input, shape index: {}]
  %s4 = inlined_call_operand.vmem [shape: bf16[8,8,128], index: 4, kind: output, shape index: {0}]
  %s5 = inlined_call_operand.vmem [shape: bf16[8,8,128], index: 5, kind: output, shape index: {1}]
  %6 = xla_tuple %s4, %s5
  %s7 = sld [smem:[#allocation0]]
  $region84: #{decoder_forward.3} parent=0
    _
  %s9 = ssub.s32 1, %s7
  %s10 = scalar_select 0, %s9, %s7
  $region1: #{decoder_forward.3} parent=0
    #allocation6 [shape = 'u8[65536]{0}', space=vmem, size = 0x10000, scoped, tag = 'input window, operand 0, single buffered']
    #allocation7 [shape = 'u8[65536]{0}', space=vmem, size = 0x10000, scoped, tag = 'input window, operand 1, single buffered']
    // Predicated region
    $region2: #{decoder_forward.3} parent=1 // pred_check
      _
    $region3: #{decoder_forward.3} parent=1 // pred_check_branch
      %12 = sbr.rel (0) target = $region5
    $region4: #{decoder_forward.3} parent=1 // pred_region
      // Predicated region
      $region6: #{decoder_forward.3} parent=4 // pred_check
        _
      $region7: #{decoder_forward.3} parent=4 // pred_check_branch
        %14 = sbr.rel (0) target = $region9
      $region8: #{decoder_forward.3} parent=4 // pred_region
        // Predicated region
        $region10: #{decoder_forward.3} parent=8 // pred_check
          _
        $region11: #{decoder_forward.3} parent=8 // pred_check_branch
          %16 = sbr.rel (0) target = $region13
        $region12: #{decoder_forward.3} parent=8 // pred_region
          loop: start=0, step=1, limit=1
          $region14: #{decoder_forward.3} parent=12 // loop_pre_header
            _
          $region15: #{decoder_forward.3} parent=12 // loop_header
            %s18 = sphi 0, %s22
            %p19 = scmp.ge.s32.totalorder %s18, 1
            %s23 = sphi %s0, %s0
            %s24 = sphi [#allocation6], [#allocation6]
          $region16: #{decoder_forward.3} parent=12 // loop_header_branch
            %21 = sbr.rel (%p19) target = $region20
          $region17: #{decoder_forward.3} parent=12 // loop_body
            %v25 = vld [vmem:[%s23] sm:$0xff]
            %26 = vst [vmem:[%s24] sm:$0xff] %v25
            %v27 = vld [vmem:[%s23 + $0x8] sm:$0xff]
            %28 = vst [vmem:[%s24 + $0x8] sm:$0xff] %v27
            %v29 = vld [vmem:[%s23 + $0x20] sm:$0xff]
            %30 = vst [vmem:[%s24 + $0x10] sm:$0xff] %v29
            %v31 = vld [vmem:[%s23 + $0x28] sm:$0xff]
            %32 = vst [vmem:[%s24 + $0x18] sm:$0xff] %v31
            %v33 = vld [vmem:[%s23 + $0x40] sm:$0xff]
            %34 = vst [vmem:[%s24 + $0x20] sm:$0xff] %v33
            %v35 = vld [vmem:[%s23 + $0x48] sm:$0xff]
            %36 = vst [vmem:[%s24 + $0x28] sm:$0xff] %v35
            %v37 = vld [vmem:[%s23 + $0x60] sm:$0xff]
            %38 = vst [vmem:[%s24 + $0x30] sm:$0xff] %v37
            %v39 = vld [vmem:[%s23 + $0x68] sm:$0xff]
            %40 = vst [vmem:[%s24 + $0x38] sm:$0xff] %v39
            %v41 = vld [vmem:[%s23 + $0x80] sm:$0xff]
            %42 = vst [vmem:[%s24 + $0x40] sm:$0xff] %v41
            %v43 = vld [vmem:[%s23 + $0x88] sm:$0xff]
            %44 = vst [vmem:[%s24 + $0x48] sm:$0xff] %v43
            %v45 = vld [vmem:[%s23 + $0xa0] sm:$0xff]
            %46 = vst [vmem:[%s24 + $0x50] sm:$0xff] %v45
            %v47 = vld [vmem:[%s23 + $0xa8] sm:$0xff]
            %48 = vst [vmem:[%s24 + $0x58] sm:$0xff] %v47
            %v49 = vld [vmem:[%s23 + $0xc0] sm:$0xff]
            %50 = vst [vmem:[%s24 + $0x60] sm:$0xff] %v49
            %v51 = vld [vmem:[%s23 + $0xc8] sm:$0xff]
            %52 = vst [vmem:[%s24 + $0x68] sm:$0xff] %v51
            %v53 = vld [vmem:[%s23 + $0xe0] sm:$0xff]
            %54 = vst [vmem:[%s24 + $0x70] sm:$0xff] %v53
            %v55 = vld [vmem:[%s23 + $0xe8] sm:$0xff]
            %56 = vst [vmem:[%s24 + $0x78] sm:$0xff] %v55
          $region18: #{decoder_forward.3} parent=12 // loop_footer
            %s22 = sadd.s32 1, %s18
          $region19: #{decoder_forward.3} parent=12 // loop_footer_branch
            %17 = sbr.rel target = $region15
          $region20: #{decoder_forward.3} parent=12 // loop_exit
            _
        $region13: #{decoder_forward.3} parent=8 // pred_fallthru
          _
        // Predicated region
        $region21: #{decoder_forward.3} parent=8 // pred_check
          _
        $region22: #{decoder_forward.3} parent=8 // pred_check_branch
          %58 = sbr.rel target = $region24
        $region23: #{decoder_forward.3} parent=8 // pred_region
          _
        $region24: #{decoder_forward.3} parent=8 // pred_fallthru
          _
      $region9: #{decoder_forward.3} parent=4 // pred_fallthru
        _
      %59 = vnop
    $region5: #{decoder_forward.3} parent=1 // pred_fallthru
      _
    // Predicated region
    $region25: #{decoder_forward.3} parent=1 // pred_check
      _
    $region26: #{decoder_forward.3} parent=1 // pred_check_branch
      %61 = sbr.rel (0) target = $region28
    $region27: #{decoder_forward.3} parent=1 // pred_region
      %s62 = ssub.s32 0, 0
      %s63 = smul.u32 8, %s62
      %s64 = smul.addr %s63, 8
      %s65 = sadd.s32 4, %s64
      %s66 = smul.addr %s65, 4
      %s67 = scalar_lea.vmem %s1, %s66
      // Predicated region
      $region29: #{decoder_forward.3} parent=27 // pred_check
        _
      $region30: #{decoder_forward.3} parent=27 // pred_check_branch
        %69 = sbr.rel (0) target = $region32
      $region31: #{decoder_forward.3} parent=27 // pred_region
        // Predicated region
        $region33: #{decoder_forward.3} parent=31 // pred_check
          _
        $region34: #{decoder_forward.3} parent=31 // pred_check_branch
          %71 = sbr.rel (0) target = $region36
        $region35: #{decoder_forward.3} parent=31 // pred_region
          loop: start=0, step=1, limit=1
          $region37: #{decoder_forward.3} parent=35 // loop_pre_header
            _
          $region38: #{decoder_forward.3} parent=35 // loop_header
            %s73 = sphi 0, %s77
            %p74 = scmp.ge.s32.totalorder %s73, 1
            %s78 = sphi %s67, %s67
            %s79 = sphi [#allocation7], [#allocation7]
          $region39: #{decoder_forward.3} parent=35 // loop_header_branch
            %76 = sbr.rel (%p74) target = $region43
          $region40: #{decoder_forward.3} parent=35 // loop_body
            %v80 = vld [vmem:[%s78] sm:$0xff]
            %81 = vst [vmem:[%s79] sm:$0xff] %v80
            %v82 = vld [vmem:[%s78 + $0x8] sm:$0xff]
            %83 = vst [vmem:[%s79 + $0x8] sm:$0xff] %v82
            %v84 = vld [vmem:[%s78 + $0x20] sm:$0xff]
            %85 = vst [vmem:[%s79 + $0x10] sm:$0xff] %v84
            %v86 = vld [vmem:[%s78 + $0x28] sm:$0xff]
            %87 = vst [vmem:[%s79 + $0x18] sm:$0xff] %v86
            %v88 = vld [vmem:[%s78 + $0x40] sm:$0xff]
            %89 = vst [vmem:[%s79 + $0x20] sm:$0xff] %v88
            %v90 = vld [vmem:[%s78 + $0x48] sm:$0xff]
            %91 = vst [vmem:[%s79 + $0x28] sm:$0xff] %v90
            %v92 = vld [vmem:[%s78 + $0x60] sm:$0xff]
            %93 = vst [vmem:[%s79 + $0x30] sm:$0xff] %v92
            %v94 = vld [vmem:[%s78 + $0x68] sm:$0xff]
            %95 = vst [vmem:[%s79 + $0x38] sm:$0xff] %v94
            %v96 = vld [vmem:[%s78 + $0x80] sm:$0xff]
            %97 = vst [vmem:[%s79 + $0x40] sm:$0xff] %v96
            %v98 = vld [vmem:[%s78 + $0x88] sm:$0xff]
            %99 = vst [vmem:[%s79 + $0x48] sm:$0xff] %v98
            %v100 = vld [vmem:[%s78 + $0xa0] sm:$0xff]
            %101 = vst [vmem:[%s79 + $0x50] sm:$0xff] %v100
            %v102 = vld [vmem:[%s78 + $0xa8] sm:$0xff]
            %103 = vst [vmem:[%s79 + $0x58] sm:$0xff] %v102
            %v104 = vld [vmem:[%s78 + $0xc0] sm:$0xff]
            %105 = vst [vmem:[%s79 + $0x60] sm:$0xff] %v104
            %v106 = vld [vmem:[%s78 + $0xc8] sm:$0xff]
            %107 = vst [vmem:[%s79 + $0x68] sm:$0xff] %v106
            %v108 = vld [vmem:[%s78 + $0xe0] sm:$0xff]
            %109 = vst [vmem:[%s79 + $0x70] sm:$0xff] %v108
            %v110 = vld [vmem:[%s78 + $0xe8] sm:$0xff]
            %111 = vst [vmem:[%s79 + $0x78] sm:$0xff] %v110
          $region41: #{decoder_forward.3} parent=35 // loop_footer
            %s77 = sadd.s32 1, %s73
          $region42: #{decoder_forward.3} parent=35 // loop_footer_branch
            %72 = sbr.rel target = $region38
          $region43: #{decoder_forward.3} parent=35 // loop_exit
            _
        $region36: #{decoder_forward.3} parent=31 // pred_fallthru
          _
        // Predicated region
        $region44: #{decoder_forward.3} parent=31 // pred_check
          _
        $region45: #{decoder_forward.3} parent=31 // pred_check_branch
          %113 = sbr.rel target = $region47
        $region46: #{decoder_forward.3} parent=31 // pred_region
          _
        $region47: #{decoder_forward.3} parent=31 // pred_fallthru
          _
      $region32: #{decoder_forward.3} parent=27 // pred_fallthru
        _
      %114 = vnop
    $region28: #{decoder_forward.3} parent=1 // pred_fallthru
      _
    // Predicated region
    $region48: #{decoder_forward.3} parent=1 // pred_check
      _
    $region49: #{decoder_forward.3} parent=1 // pred_check_branch
      %116 = sbr.rel (0) target = $region51
    $region50: #{decoder_forward.3} parent=1 // pred_region
      _
    $region51: #{decoder_forward.3} parent=1 // pred_fallthru
      _
    // Predicated region
    $region52: #{decoder_forward.3} parent=1 // pred_check
      _
    $region53: #{decoder_forward.3} parent=1 // pred_check_branch
      %118 = sbr.rel (0) target = $region55
    $region54: #{decoder_forward.3} parent=1 // pred_region
      _
    $region55: #{decoder_forward.3} parent=1 // pred_fallthru
      _
    // Predicated region
    $region56: #{decoder_forward.3} parent=1 // pred_check
      _
    $region57: #{decoder_forward.3} parent=1 // pred_check_branch
      %120 = sbr.rel (0) target = $region59
    $region58: #{decoder_forward.3} parent=1 // pred_region
      _
    $region59: #{decoder_forward.3} parent=1 // pred_fallthru
      _
    // Predicated region
    $region60: #{decoder_forward.3} parent=1 // pred_check
      _
    $region61: #{decoder_forward.3} parent=1 // pred_check_branch
      %122 = sbr.rel (0) target = $region63
    $region62: #{decoder_forward.3} parent=1 // pred_region
      _
    $region63: #{decoder_forward.3} parent=1 // pred_fallthru
      _
    %s123 = ssub.s32 0, 0
    %s124 = smul.u32 8, %s123
    %p125 = scmp.lt.s32.totalorder %s124, 7
    %s126 = scalar_select %p125, %s124, 7
    %s127 = smul.addr %s126, 4
    %s128 = scalar_lea.vmem %s5, %s127
    %s129 = ssub.s32 0, 0
    %s130 = smul.u32 8, %s129
    %s131 = ssub.s32 0, 0
    %s132 = smul.u32 8, %s131
    %p133 = scmp.lt.s32.totalorder %s132, 7
    %s134 = scalar_select %p133, %s132, 7
    %s135 = smul.addr %s134, 4
    %s136 = scalar_lea.vmem %s5, %s135
    %s137 = ssub.s32 0, 0
    %s138 = smul.u32 8, %s137
    %p140 = scmp.eq.s32.totalorder 0, 0
    // Predicated region
    $region64: #{decoder_forward.3} parent=1 // pred_check
      %p141 = pneg %p140
    $region65: #{decoder_forward.3} parent=1 // pred_check_branch
      %143 = sbr.rel (%p141) target = $region67
    $region66: #{decoder_forward.3} parent=1 // pred_region
      %144 = vst [vmem:[#allocation2] sm:$0xff] 0.0
      %145 = vst [vmem:[#allocation3] sm:$0xff] 0.0
      %146 = vst [vmem:[#allocation4] sm:$0xff] 0.0
      %147 = vst [vmem:[#allocation5] sm:$0xff] 0.0
    $region67: #{decoder_forward.3} parent=1 // pred_fallthru
      _
    %v148 = vld [vmem:[%s2] sm:$0xff]
    %v149 = vld [vmem:[%s2 + $0x8] sm:$0xff]
    %v150 = vld [vmem:[%s2 + $0x10] sm:$0xff]
    %v151 = vld [vmem:[%s2 + $0x18] sm:$0xff]
    %v152 = vld [vmem:[%s2 + $0x20] sm:$0xff]
    %v153 = vld [vmem:[%s2 + $0x28] sm:$0xff]
    %v154 = vld [vmem:[%s2 + $0x30] sm:$0xff]
    %v155 = vld [vmem:[%s2 + $0x38] sm:$0xff]
    %v156 = vld [vmem:[%s2 + $0x40] sm:$0xff]
    %v157 = vld [vmem:[%s2 + $0x48] sm:$0xff]
    %v158 = vld [vmem:[%s2 + $0x50] sm:$0xff]
    %v159 = vld [vmem:[%s2 + $0x58] sm:$0xff]
    %v160 = vld [vmem:[%s2 + $0x60] sm:$0xff]
    %v161 = vld [vmem:[%s2 + $0x68] sm:$0xff]
    %v162 = vld [vmem:[%s2 + $0x70] sm:$0xff]
    %v163 = vld [vmem:[%s2 + $0x78] sm:$0xff]
    %v164 = vld [vmem:[%s2 + $0x80] sm:$0xff]
    %v165 = vld [vmem:[%s2 + $0x88] sm:$0xff]
    %v166 = vld [vmem:[%s2 + $0x90] sm:$0xff]
    %v167 = vld [vmem:[%s2 + $0x98] sm:$0xff]
    %v168 = vld [vmem:[%s2 + $0xa0] sm:$0xff]
    %v169 = vld [vmem:[%s2 + $0xa8] sm:$0xff]
    %v170 = vld [vmem:[%s2 + $0xb0] sm:$0xff]
    %v171 = vld [vmem:[%s2 + $0xb8] sm:$0xff]
    %v172 = vld [vmem:[%s2 + $0xc0] sm:$0xff]
    %v173 = vld [vmem:[%s2 + $0xc8] sm:$0xff]
    %v174 = vld [vmem:[%s2 + $0xd0] sm:$0xff]
    %v175 = vld [vmem:[%s2 + $0xd8] sm:$0xff]
    %v176 = vld [vmem:[%s2 + $0xe0] sm:$0xff]
    %v177 = vld [vmem:[%s2 + $0xe8] sm:$0xff]
    %v178 = vld [vmem:[%s2 + $0xf0] sm:$0xff]
    %v179 = vld [vmem:[%s2 + $0xf8] sm:$0xff]
    %v180 = vld [vmem:[%s3] sm:$0xff]
    %v181 = vld [vmem:[%s3 + $0x8] sm:$0xff]
    %v182 = vld [vmem:[%s3 + $0x10] sm:$0xff]
    %v183 = vld [vmem:[%s3 + $0x18] sm:$0xff]
    %v184 = vld [vmem:[%s3 + $0x20] sm:$0xff]
    %v185 = vld [vmem:[%s3 + $0x28] sm:$0xff]
    %v186 = vld [vmem:[%s3 + $0x30] sm:$0xff]
    %v187 = vld [vmem:[%s3 + $0x38] sm:$0xff]
    %v188 = vld [vmem:[%s3 + $0x40] sm:$0xff]
    %v189 = vld [vmem:[%s3 + $0x48] sm:$0xff]
    %v190 = vld [vmem:[%s3 + $0x50] sm:$0xff]
    %v191 = vld [vmem:[%s3 + $0x58] sm:$0xff]
    %v192 = vld [vmem:[%s3 + $0x60] sm:$0xff]
    %v193 = vld [vmem:[%s3 + $0x68] sm:$0xff]
    %v194 = vld [vmem:[%s3 + $0x70] sm:$0xff]
    %v195 = vld [vmem:[%s3 + $0x78] sm:$0xff]
    %v196 = vld [vmem:[%s3 + $0x80] sm:$0xff]
    %v197 = vld [vmem:[%s3 + $0x88] sm:$0xff]
    %v198 = vld [vmem:[%s3 + $0x90] sm:$0xff]
    %v199 = vld [vmem:[%s3 + $0x98] sm:$0xff]
    %v200 = vld [vmem:[%s3 + $0xa0] sm:$0xff]
    %v201 = vld [vmem:[%s3 + $0xa8] sm:$0xff]
    %v202 = vld [vmem:[%s3 + $0xb0] sm:$0xff]
    %v203 = vld [vmem:[%s3 + $0xb8] sm:$0xff]
    %v204 = vld [vmem:[%s3 + $0xc0] sm:$0xff]
    %v205 = vld [vmem:[%s3 + $0xc8] sm:$0xff]
    %v206 = vld [vmem:[%s3 + $0xd0] sm:$0xff]
    %v207 = vld [vmem:[%s3 + $0xd8] sm:$0xff]
    %v208 = vld [vmem:[%s3 + $0xe0] sm:$0xff]
    %v209 = vld [vmem:[%s3 + $0xe8] sm:$0xff]
    %v210 = vld [vmem:[%s3 + $0xf0] sm:$0xff]
    %v211 = vld [vmem:[%s3 + $0xf8] sm:$0xff]
    %v212 = vld [vmem:[#allocation2] sm:$0xff]
    %v213 = vld [vmem:[#allocation3] sm:$0xff]
    %v214 = vld [vmem:[#allocation4] sm:$0xff]
    %v215 = vld [vmem:[#allocation5] sm:$0xff]
    %v216 = vld [vmem:[#allocation6] sm:$0xff]
    %v217 = vld [vmem:[#allocation6 + $0x8] sm:$0xff]
    %v218 = vunpack.c.l.bf16 %v216
    %v219 = vunpack.c.h.bf16 %v216
    %v220 = vunpack.c.l.bf16 %v217
    %v221 = vunpack.c.h.bf16 %v217
    %v222 = vpack.c.bf16 %v212, %v212
    %v255 = vunpack.c.l.b16 %v148
    %v256 = vunpack.c.h.b16 %v148
    %v257 = vunpack.c.l.b16 %v149
    %v258 = vunpack.c.h.b16 %v149
    %v259 = vunpack.c.l.b16 %v150
    %v260 = vunpack.c.h.b16 %v150
    %v261 = vunpack.c.l.b16 %v151
    %v262 = vunpack.c.h.b16 %v151
    %v263 = vunpack.c.l.b16 %v152
    %v264 = vunpack.c.h.b16 %v152
    %v265 = vunpack.c.l.b16 %v153
    %v266 = vunpack.c.h.b16 %v153
    %v267 = vunpack.c.l.b16 %v154
    %v268 = vunpack.c.h.b16 %v154
    %v269 = vunpack.c.l.b16 %v155
    %v270 = vunpack.c.h.b16 %v155
    %v271 = vunpack.c.l.b16 %v156
    %v272 = vunpack.c.h.b16 %v156
    %v273 = vunpack.c.l.b16 %v157
    %v274 = vunpack.c.h.b16 %v157
    %v275 = vunpack.c.l.b16 %v158
    %v276 = vunpack.c.h.b16 %v158
    %v277 = vunpack.c.l.b16 %v159
    %v278 = vunpack.c.h.b16 %v159
    %v279 = vunpack.c.l.b16 %v160
    %v280 = vunpack.c.h.b16 %v160
    %v281 = vunpack.c.l.b16 %v161
    %v282 = vunpack.c.h.b16 %v161
    %v283 = vunpack.c.l.b16 %v162
    %v284 = vunpack.c.h.b16 %v162
    %v285 = vunpack.c.l.b16 %v163
    %v286 = vunpack.c.h.b16 %v163
    %v287 = vunpack.c.l.b16 %v164
    %v288 = vunpack.c.h.b16 %v164
    %v289 = vunpack.c.l.b16 %v165
    %v290 = vunpack.c.h.b16 %v165
    %v291 = vunpack.c.l.b16 %v166
    %v292 = vunpack.c.h.b16 %v166
    %v293 = vunpack.c.l.b16 %v167
    %v294 = vunpack.c.h.b16 %v167
    %v295 = vunpack.c.l.b16 %v168
    %v296 = vunpack.c.h.b16 %v168
    %v297 = vunpack.c.l.b16 %v169
    %v298 = vunpack.c.h.b16 %v169
    %v299 = vunpack.c.l.b16 %v170
    %v300 = vunpack.c.h.b16 %v170
    %v301 = vunpack.c.l.b16 %v171
    %v302 = vunpack.c.h.b16 %v171
    %v303 = vunpack.c.l.b16 %v172
    %v304 = vunpack.c.h.b16 %v172
    %v305 = vunpack.c.l.b16 %v173
    %v306 = vunpack.c.h.b16 %v173
    %v307 = vunpack.c.l.b16 %v174
    %v308 = vunpack.c.h.b16 %v174
    %v309 = vunpack.c.l.b16 %v175
    %v310 = vunpack.c.h.b16 %v175
    %v311 = vunpack.c.l.b16 %v176
    %v312 = vunpack.c.h.b16 %v176
    %v313 = vunpack.c.l.b16 %v177
    %v314 = vunpack.c.h.b16 %v177
    %v315 = vunpack.c.l.b16 %v178
    %v316 = vunpack.c.h.b16 %v178
    %v317 = vunpack.c.l.b16 %v179
    %v318 = vunpack.c.h.b16 %v179
    %v319 = vpack.c.b16 %v259, %v255
    %v320 = vpack.c.b16 %v260, %v256
    %v321 = vpack.c.b16 %v261, %v257
    %v322 = vpack.c.b16 %v262, %v258
    %v323 = vpack.c.b16 %v267, %v263
    %v324 = vpack.c.b16 %v268, %v264
    %v325 = vpack.c.b16 %v269, %v265
    %v326 = vpack.c.b16 %v270, %v266
    %v327 = vpack.c.b16 %v275, %v271
    %v328 = vpack.c.b16 %v276, %v272
    %v329 = vpack.c.b16 %v277, %v273
    %v330 = vpack.c.b16 %v278, %v274
    %v331 = vpack.c.b16 %v283, %v279
    %v332 = vpack.c.b16 %v284, %v280
    %v333 = vpack.c.b16 %v285, %v281
    %v334 = vpack.c.b16 %v286, %v282
    %v335 = vpack.c.b16 %v291, %v287
    %v336 = vpack.c.b16 %v292, %v288
    %v337 = vpack.c.b16 %v293, %v289
    %v338 = vpack.c.b16 %v294, %v290
    %v339 = vpack.c.b16 %v299, %v295
    %v340 = vpack.c.b16 %v300, %v296
    %v341 = vpack.c.b16 %v301, %v297
    %v342 = vpack.c.b16 %v302, %v298
    %v343 = vpack.c.b16 %v307, %v303
    %v344 = vpack.c.b16 %v308, %v304
    %v345 = vpack.c.b16 %v309, %v305
    %v346 = vpack.c.b16 %v310, %v306
    %v347 = vpack.c.b16 %v315, %v311
    %v348 = vpack.c.b16 %v316, %v312
    %v349 = vpack.c.b16 %v317, %v313
    %v350 = vpack.c.b16 %v318, %v314
    %383 = vmatprep.subr.bf16.mxu0 %v348
    %384 = vmatpush1.bf16.msra.mxu0 %v347
    %385 = vmatprep.subr.bf16.mxu0 %v344
    %386 = vmatpush1.bf16.msra.mxu0 %v343
    %387 = vmatprep.subr.bf16.mxu0 %v340
    %388 = vmatpush1.bf16.msra.mxu0 %v339
    %389 = vmatprep.subr.bf16.mxu0 %v336
    %390 = vmatpush1.bf16.msra.mxu0 %v335
    %391 = vmatprep.subr.bf16.mxu0 %v332
    %392 = vmatpush1.bf16.msra.mxu0 %v331
    %393 = vmatprep.subr.bf16.mxu0 %v328
    %394 = vmatpush1.bf16.msra.mxu0 %v327
    %395 = vmatprep.subr.bf16.mxu0 %v324
    %396 = vmatpush1.bf16.msra.mxu0 %v323
    %397 = vmatprep.subr.bf16.mxu0 %v320
    %398 = vmatpush1.bf16.msra.mxu0 %v319
    %399 = vmatprep.subr.bf16.mxu0 0
    %400 = vmatpush2.bf16.msra.mxu0 0
    %401 = vmatprep.subr.bf16.mxu0 0
    %402 = vmatpush2.bf16.msra.mxu0 0
    %403 = vmatprep.subr.bf16.mxu0 0
    %404 = vmatpush2.bf16.msra.mxu0 0
    %405 = vmatprep.subr.bf16.mxu0 0
    %406 = vmatpush2.bf16.msra.mxu0 0
    %407 = vmatprep.subr.bf16.mxu0 0
    %408 = vmatpush2.bf16.msra.mxu0 0
    %409 = vmatprep.subr.bf16.mxu0 0
    %410 = vmatpush2.bf16.msra.mxu0 0
    %411 = vmatprep.subr.bf16.mxu0 0
    %412 = vmatpush2.bf16.msra.mxu0 0
    %413 = vmatprep.subr.bf16.mxu0 0
    %414 = vmatpush2.bf16.msra.mxu0 0
    %415 = vmatprep.mubr.bf16.mxu0 0
    %416 = vmatmul.mubr.bf16.gmra.mxu0 %v222
    %v417 = vpop.f32.mrf.mxu0
    %v418 = vadd.f32 0.0, %v417
    %v419 = vpop.f32.mrf.mxu0
    %v420 = vadd.f32 0.0, %v419
    %v421 = vpop.f32.mrf.mxu0
    %v422 = vpop.f32.mrf.mxu0
    %423 = vdwg.mxu0
    %424 = vmatprep.subr.bf16.mxu0 %v350
    %425 = vmatpush1.bf16.msra.mxu0 %v349
    %426 = vmatprep.subr.bf16.mxu0 %v346
    %427 = vmatpush1.bf16.msra.mxu0 %v345
    %428 = vmatprep.subr.bf16.mxu0 %v342
    %429 = vmatpush1.bf16.msra.mxu0 %v341
    %430 = vmatprep.subr.bf16.mxu0 %v338
    %431 = vmatpush1.bf16.msra.mxu0 %v337
    %432 = vmatprep.subr.bf16.mxu0 %v334
    %433 = vmatpush1.bf16.msra.mxu0 %v333
    %434 = vmatprep.subr.bf16.mxu0 %v330
    %435 = vmatpush1.bf16.msra.mxu0 %v329
    %436 = vmatprep.subr.bf16.mxu0 %v326
    %437 = vmatpush1.bf16.msra.mxu0 %v325
    %438 = vmatprep.subr.bf16.mxu0 %v322
    %439 = vmatpush1.bf16.msra.mxu0 %v321
    %440 = vmatprep.subr.bf16.mxu0 0
    %441 = vmatpush2.bf16.msra.mxu0 0
    %442 = vmatprep.subr.bf16.mxu0 0
    %443 = vmatpush2.bf16.msra.mxu0 0
    %444 = vmatprep.subr.bf16.mxu0 0
    %445 = vmatpush2.bf16.msra.mxu0 0
    %446 = vmatprep.subr.bf16.mxu0 0
    %447 = vmatpush2.bf16.msra.mxu0 0
    %448 = vmatprep.subr.bf16.mxu0 0
    %449 = vmatpush2.bf16.msra.mxu0 0
    %450 = vmatprep.subr.bf16.mxu0 0
    %451 = vmatpush2.bf16.msra.mxu0 0
    %452 = vmatprep.subr.bf16.mxu0 0
    %453 = vmatpush2.bf16.msra.mxu0 0
    %454 = vmatprep.subr.bf16.mxu0 0
    %455 = vmatpush2.bf16.msra.mxu0 0
    %456 = vmatprep.mubr.bf16.mxu0 0
    %457 = vmatmul.mubr.bf16.gmra.mxu0 %v222
    %v458 = vpop.f32.mrf.mxu0
    %v459 = vadd.f32 0.0, %v458
    %v460 = vpop.f32.mrf.mxu0
    %v461 = vadd.f32 0.0, %v460
    %v462 = vpop.f32.mrf.mxu0
    %v463 = vpop.f32.mrf.mxu0
    %464 = vdwg.mxu0
    %v465 = vadd.f32 %v218, %v418
    %v466 = vadd.f32 %v219, %v420
    %v467 = vadd.f32 %v220, %v459
    %v468 = vadd.f32 %v221, %v461
    %v469 = vxor.u32 %v465, 2147483648
    %v470 = vmul.f32 %v469, 1.442695
    %v471 = vpow.pop %v470
    %v472 = vadd.f32 %v471, 1.0
    %v473 = vrcp.pop %v472
    %v474 = vmul.f32 1.0, %v473
    %v475 = vxor.u32 %v466, 2147483648
    %v476 = vmul.f32 %v475, 1.442695
    %v477 = vpow.pop %v476
    %v478 = vadd.f32 %v477, 1.0
    %v479 = vrcp.pop %v478
    %v480 = vmul.f32 1.0, %v479
    %v481 = vtanh.pop %v467
    %v482 = vxor.u32 %v468, 2147483648
    %v483 = vmul.f32 %v482, 1.442695
    %v484 = vpow.pop %v483
    %v485 = vadd.f32 %v484, 1.0
    %v486 = vrcp.pop %v485
    %v487 = vmul.f32 1.0, %v486
    %v488 = vmul.f32 %v480, %v213
    %v489 = vmul.f32 %v474, %v481
    %v490 = vadd.f32 %v488, %v489
    %v491 = vtanh.pop %v490
    %v492 = vmul.f32 %v487, %v491
    %v493 = vpack.c.bf16 %v492, %v492
    %494 = vst [vmem:[%s4] sm:$0xf] %v493
    %s495 = scalar_lea.vmem [#allocation7], 112
    %v496 = vld [vmem:[%s495] sm:$0xff]
    %v497 = vld [vmem:[%s495 + $0x8] sm:$0xff]
    %v498 = vunpack.c.l.bf16 %v496
    %v499 = vunpack.c.h.bf16 %v496
    %v500 = vunpack.c.l.bf16 %v497
    %v501 = vunpack.c.h.bf16 %v497
    %v502 = vpack.c.bf16 %v214, %v214
    %v535 = vunpack.c.l.b16 %v180
    %v536 = vunpack.c.h.b16 %v180
    %v537 = vunpack.c.l.b16 %v181
    %v538 = vunpack.c.h.b16 %v181
    %v539 = vunpack.c.l.b16 %v182
    %v540 = vunpack.c.h.b16 %v182
    %v541 = vunpack.c.l.b16 %v183
    %v542 = vunpack.c.h.b16 %v183
    %v543 = vunpack.c.l.b16 %v184
    %v544 = vunpack.c.h.b16 %v184
    %v545 = vunpack.c.l.b16 %v185
    %v546 = vunpack.c.h.b16 %v185
    %v547 = vunpack.c.l.b16 %v186
    %v548 = vunpack.c.h.b16 %v186
    %v549 = vunpack.c.l.b16 %v187
    %v550 = vunpack.c.h.b16 %v187
    %v551 = vunpack.c.l.b16 %v188
    %v552 = vunpack.c.h.b16 %v188
    %v553 = vunpack.c.l.b16 %v189
    %v554 = vunpack.c.h.b16 %v189
    %v555 = vunpack.c.l.b16 %v190
    %v556 = vunpack.c.h.b16 %v190
    %v557 = vunpack.c.l.b16 %v191
    %v558 = vunpack.c.h.b16 %v191
    %v559 = vunpack.c.l.b16 %v192
    %v560 = vunpack.c.h.b16 %v192
    %v561 = vunpack.c.l.b16 %v193
    %v562 = vunpack.c.h.b16 %v193
    %v563 = vunpack.c.l.b16 %v194
    %v564 = vunpack.c.h.b16 %v194
    %v565 = vunpack.c.l.b16 %v195
    %v566 = vunpack.c.h.b16 %v195
    %v567 = vunpack.c.l.b16 %v196
    %v568 = vunpack.c.h.b16 %v196
    %v569 = vunpack.c.l.b16 %v197
    %v570 = vunpack.c.h.b16 %v197
    %v571 = vunpack.c.l.b16 %v198
    %v572 = vunpack.c.h.b16 %v198
    %v573 = vunpack.c.l.b16 %v199
    %v574 = vunpack.c.h.b16 %v199
    %v575 = vunpack.c.l.b16 %v200
    %v576 = vunpack.c.h.b16 %v200
    %v577 = vunpack.c.l.b16 %v201
    %v578 = vunpack.c.h.b16 %v201
    %v579 = vunpack.c.l.b16 %v202
    %v580 = vunpack.c.h.b16 %v202
    %v581 = vunpack.c.l.b16 %v203
    %v582 = vunpack.c.h.b16 %v203
    %v583 = vunpack.c.l.b16 %v204
    %v584 = vunpack.c.h.b16 %v204
    %v585 = vunpack.c.l.b16 %v205
    %v586 = vunpack.c.h.b16 %v205
    %v587 = vunpack.c.l.b16 %v206
    %v588 = vunpack.c.h.b16 %v206
    %v589 = vunpack.c.l.b16 %v207
    %v590 = vunpack.c.h.b16 %v207
    %v591 = vunpack.c.l.b16 %v208
    %v592 = vunpack.c.h.b16 %v208
    %v593 = vunpack.c.l.b16 %v209
    %v594 = vunpack.c.h.b16 %v209
    %v595 = vunpack.c.l.b16 %v210
    %v596 = vunpack.c.h.b16 %v210
    %v597 = vunpack.c.l.b16 %v211
    %v598 = vunpack.c.h.b16 %v211
    %v599 = vpack.c.b16 %v539, %v535
    %v600 = vpack.c.b16 %v540, %v536
    %v601 = vpack.c.b16 %v541, %v537
    %v602 = vpack.c.b16 %v542, %v538
    %v603 = vpack.c.b16 %v547, %v543
    %v604 = vpack.c.b16 %v548, %v544
    %v605 = vpack.c.b16 %v549, %v545
    %v606 = vpack.c.b16 %v550, %v546
    %v607 = vpack.c.b16 %v555, %v551
    %v608 = vpack.c.b16 %v556, %v552
    %v609 = vpack.c.b16 %v557, %v553
    %v610 = vpack.c.b16 %v558, %v554
    %v611 = vpack.c.b16 %v563, %v559
    %v612 = vpack.c.b16 %v564, %v560
    %v613 = vpack.c.b16 %v565, %v561
    %v614 = vpack.c.b16 %v566, %v562
    %v615 = vpack.c.b16 %v571, %v567
    %v616 = vpack.c.b16 %v572, %v568
    %v617 = vpack.c.b16 %v573, %v569
    %v618 = vpack.c.b16 %v574, %v570
    %v619 = vpack.c.b16 %v579, %v575
    %v620 = vpack.c.b16 %v580, %v576
    %v621 = vpack.c.b16 %v581, %v577
    %v622 = vpack.c.b16 %v582, %v578
    %v623 = vpack.c.b16 %v587, %v583
    %v624 = vpack.c.b16 %v588, %v584
    %v625 = vpack.c.b16 %v589, %v585
    %v626 = vpack.c.b16 %v590, %v586
    %v627 = vpack.c.b16 %v595, %v591
    %v628 = vpack.c.b16 %v596, %v592
    %v629 = vpack.c.b16 %v597, %v593
    %v630 = vpack.c.b16 %v598, %v594
    %663 = vmatprep.subr.bf16.mxu0 %v628
    %664 = vmatpush1.bf16.msra.mxu0 %v627
    %665 = vmatprep.subr.bf16.mxu0 %v624
    %666 = vmatpush1.bf16.msra.mxu0 %v623
    %667 = vmatprep.subr.bf16.mxu0 %v620
    %668 = vmatpush1.bf16.msra.mxu0 %v619
    %669 = vmatprep.subr.bf16.mxu0 %v616
    %670 = vmatpush1.bf16.msra.mxu0 %v615
    %671 = vmatprep.subr.bf16.mxu0 %v612
    %672 = vmatpush1.bf16.msra.mxu0 %v611
    %673 = vmatprep.subr.bf16.mxu0 %v608
    %674 = vmatpush1.bf16.msra.mxu0 %v607
    %675 = vmatprep.subr.bf16.mxu0 %v604
    %676 = vmatpush1.bf16.msra.mxu0 %v603
    %677 = vmatprep.subr.bf16.mxu0 %v600
    %678 = vmatpush1.bf16.msra.mxu0 %v599
    %679 = vmatprep.subr.bf16.mxu0 0
    %680 = vmatpush2.bf16.msra.mxu0 0
    %681 = vmatprep.subr.bf16.mxu0 0
    %682 = vmatpush2.bf16.msra.mxu0 0
    %683 = vmatprep.subr.bf16.mxu0 0
    %684 = vmatpush2.bf16.msra.mxu0 0
    %685 = vmatprep.subr.bf16.mxu0 0
    %686 = vmatpush2.bf16.msra.mxu0 0
    %687 = vmatprep.subr.bf16.mxu0 0
    %688 = vmatpush2.bf16.msra.mxu0 0
    %689 = vmatprep.subr.bf16.mxu0 0
    %690 = vmatpush2.bf16.msra.mxu0 0
    %691 = vmatprep.subr.bf16.mxu0 0
    %692 = vmatpush2.bf16.msra.mxu0 0
    %693 = vmatprep.subr.bf16.mxu0 0
    %694 = vmatpush2.bf16.msra.mxu0 0
    %695 = vmatprep.mubr.bf16.mxu0 0
    %696 = vmatmul.mubr.bf16.gmra.mxu0 %v502
    %v697 = vpop.f32.mrf.mxu0
    %v698 = vadd.f32 0.0, %v697
    %v699 = vpop.f32.mrf.mxu0
    %v700 = vadd.f32 0.0, %v699
    %v701 = vpop.f32.mrf.mxu0
    %v702 = vpop.f32.mrf.mxu0
    %703 = vdwg.mxu0
    %704 = vmatprep.subr.bf16.mxu0 %v630
    %705 = vmatpush1.bf16.msra.mxu0 %v629
    %706 = vmatprep.subr.bf16.mxu0 %v626
    %707 = vmatpush1.bf16.msra.mxu0 %v625
    %708 = vmatprep.subr.bf16.mxu0 %v622
    %709 = vmatpush1.bf16.msra.mxu0 %v621
    %710 = vmatprep.subr.bf16.mxu0 %v618
    %711 = vmatpush1.bf16.msra.mxu0 %v617
    %712 = vmatprep.subr.bf16.mxu0 %v614
    %713 = vmatpush1.bf16.msra.mxu0 %v613
    %714 = vmatprep.subr.bf16.mxu0 %v610
    %715 = vmatpush1.bf16.msra.mxu0 %v609
    %716 = vmatprep.subr.bf16.mxu0 %v606
    %717 = vmatpush1.bf16.msra.mxu0 %v605
    %718 = vmatprep.subr.bf16.mxu0 %v602
    %719 = vmatpush1.bf16.msra.mxu0 %v601
    %720 = vmatprep.subr.bf16.mxu0 0
    %721 = vmatpush2.bf16.msra.mxu0 0
    %722 = vmatprep.subr.bf16.mxu0 0
    %723 = vmatpush2.bf16.msra.mxu0 0
    %724 = vmatprep.subr.bf16.mxu0 0
    %725 = vmatpush2.bf16.msra.mxu0 0
    %726 = vmatprep.subr.bf16.mxu0 0
    %727 = vmatpush2.bf16.msra.mxu0 0
    %728 = vmatprep.subr.bf16.mxu0 0
    %729 = vmatpush2.bf16.msra.mxu0 0
    %730 = vmatprep.subr.bf16.mxu0 0
    %731 = vmatpush2.bf16.msra.mxu0 0
    %732 = vmatprep.subr.bf16.mxu0 0
    %733 = vmatpush2.bf16.msra.mxu0 0
    %734 = vmatprep.subr.bf16.mxu0 0
    %735 = vmatpush2.bf16.msra.mxu0 0
    %736 = vmatprep.mubr.bf16.mxu0 0
    %737 = vmatmul.mubr.bf16.gmra.mxu0 %v502
    %v738 = vpop.f32.mrf.mxu0
    %v739 = vadd.f32 0.0, %v738
    %v740 = vpop.f32.mrf.mxu0
    %v741 = vadd.f32 0.0, %v740
    %v742 = vpop.f32.mrf.mxu0
    %v743 = vpop.f32.mrf.mxu0
    %744 = vdwg.mxu0
    %v745 = vadd.f32 %v498, %v698
    %v746 = vadd.f32 %v499, %v700
    %v747 = vadd.f32 %v500, %v739
    %v748 = vadd.f32 %v501, %v741
    %v749 = vxor.u32 %v745, 2147483648
    %v750 = vmul.f32 %v749, 1.442695
    %v751 = vpow.pop %v750
    %v752 = vadd.f32 %v751, 1.0
    %v753 = vrcp.pop %v752
    %v754 = vmul.f32 1.0, %v753
    %v755 = vxor.u32 %v746, 2147483648
    %v756 = vmul.f32 %v755, 1.442695
    %v757 = vpow.pop %v756
    %v758 = vadd.f32 %v757, 1.0
    %v759 = vrcp.pop %v758
    %v760 = vmul.f32 1.0, %v759
    %v761 = vtanh.pop %v747
    %v762 = vxor.u32 %v748, 2147483648
    %v763 = vmul.f32 %v762, 1.442695
    %v764 = vpow.pop %v763
    %v765 = vadd.f32 %v764, 1.0
    %v766 = vrcp.pop %v765
    %v767 = vmul.f32 1.0, %v766
    %v768 = vmul.f32 %v760, %v215
    %v769 = vmul.f32 %v754, %v761
    %v770 = vadd.f32 %v768, %v769
    %v771 = vtanh.pop %v770
    %v772 = vmul.f32 %v767, %v771
    %v773 = vpack.c.bf16 %v772, %v772
    %s774 = scalar_lea.vmem %s136, 28
    %775 = vst [vmem:[%s774] sm:$0xf] %v773
    %s776 = scalar_lea.vmem [#allocation6], 16
    %v777 = vld [vmem:[%s776] sm:$0xff]
    %v778 = vld [vmem:[%s776 + $0x8] sm:$0xff]
    %v779 = vunpack.c.l.bf16 %v777
    %v780 = vunpack.c.h.bf16 %v777
    %v781 = vunpack.c.l.bf16 %v778
    %v782 = vunpack.c.h.bf16 %v778
    %783 = vmatprep.subr.bf16.mxu0 %v348
    %784 = vmatpush1.bf16.msra.mxu0 %v347
    %785 = vmatprep.subr.bf16.mxu0 %v344
    %786 = vmatpush1.bf16.msra.mxu0 %v343
    %787 = vmatprep.subr.bf16.mxu0 %v340
    %788 = vmatpush1.bf16.msra.mxu0 %v339
    %789 = vmatprep.subr.bf16.mxu0 %v336
    %790 = vmatpush1.bf16.msra.mxu0 %v335
    %791 = vmatprep.subr.bf16.mxu0 %v332
    %792 = vmatpush1.bf16.msra.mxu0 %v331
    %793 = vmatprep.subr.bf16.mxu0 %v328
    %794 = vmatpush1.bf16.msra.mxu0 %v327
    %795 = vmatprep.subr.bf16.mxu0 %v324
    %796 = vmatpush1.bf16.msra.mxu0 %v323
    %797 = vmatprep.subr.bf16.mxu0 %v320
    %798 = vmatpush1.bf16.msra.mxu0 %v319
    %799 = vmatprep.subr.bf16.mxu0 0
    %800 = vmatpush2.bf16.msra.mxu0 0
    %801 = vmatprep.subr.bf16.mxu0 0
    %802 = vmatpush2.bf16.msra.mxu0 0
    %803 = vmatprep.subr.bf16.mxu0 0
    %804 = vmatpush2.bf16.msra.mxu0 0
    %805 = vmatprep.subr.bf16.mxu0 0
    %806 = vmatpush2.bf16.msra.mxu0 0
    %807 = vmatprep.subr.bf16.mxu0 0
    %808 = vmatpush2.bf16.msra.mxu0 0
    %809 = vmatprep.subr.bf16.mxu0 0
    %810 = vmatpush2.bf16.msra.mxu0 0
    %811 = vmatprep.subr.bf16.mxu0 0
    %812 = vmatpush2.bf16.msra.mxu0 0
    %813 = vmatprep.subr.bf16.mxu0 0
    %814 = vmatpush2.bf16.msra.mxu0 0
    %815 = vmatprep.mubr.bf16.mxu0 0
    %816 = vmatmul.mubr.bf16.gmra.mxu0 %v493
    %v817 = vpop.f32.mrf.mxu0
    %v818 = vadd.f32 0.0, %v817
    %v819 = vpop.f32.mrf.mxu0
    %v820 = vadd.f32 0.0, %v819
    %v821 = vpop.f32.mrf.mxu0
    %v822 = vpop.f32.mrf.mxu0
    %823 = vdwg.mxu0
    %824 = vmatprep.subr.bf16.mxu0 %v350
    %825 = vmatpush1.bf16.msra.mxu0 %v349
    %826 = vmatprep.subr.bf16.mxu0 %v346
    %827 = vmatpush1.bf16.msra.mxu0 %v345
    %828 = vmatprep.subr.bf16.mxu0 %v342
    %829 = vmatpush1.bf16.msra.mxu0 %v341
    %830 = vmatprep.subr.bf16.mxu0 %v338
    %831 = vmatpush1.bf16.msra.mxu0 %v337
    %832 = vmatprep.subr.bf16.mxu0 %v334
    %833 = vmatpush1.bf16.msra.mxu0 %v333
    %834 = vmatprep.subr.bf16.mxu0 %v330
    %835 = vmatpush1.bf16.msra.mxu0 %v329
    %836 = vmatprep.subr.bf16.mxu0 %v326
    %837 = vmatpush1.bf16.msra.mxu0 %v325
    %838 = vmatprep.subr.bf16.mxu0 %v322
    %839 = vmatpush1.bf16.msra.mxu0 %v321
    %840 = vmatprep.subr.bf16.mxu0 0
    %841 = vmatpush2.bf16.msra.mxu0 0
    %842 = vmatprep.subr.bf16.mxu0 0
    %843 = vmatpush2.bf16.msra.mxu0 0
    %844 = vmatprep.subr.bf16.mxu0 0
    %845 = vmatpush2.bf16.msra.mxu0 0
    %846 = vmatprep.subr.bf16.mxu0 0
    %847 = vmatpush2.bf16.msra.mxu0 0
    %848 = vmatprep.subr.bf16.mxu0 0
    %849 = vmatpush2.bf16.msra.mxu0 0
    %850 = vmatprep.subr.bf16.mxu0 0
    %851 = vmatpush2.bf16.msra.mxu0 0
    %852 = vmatprep.subr.bf16.mxu0 0
    %853 = vmatpush2.bf16.msra.mxu0 0
    %854 = vmatprep.subr.bf16.mxu0 0
    %855 = vmatpush2.bf16.msra.mxu0 0
    %856 = vmatprep.mubr.bf16.mxu0 0
    %857 = vmatmul.mubr.bf16.gmra.mxu0 %v493
    %v858 = vpop.f32.mrf.mxu0
    %v859 = vadd.f32 0.0, %v858
    %v860 = vpop.f32.mrf.mxu0
    %v861 = vadd.f32 0.0, %v860
    %v862 = vpop.f32.mrf.mxu0
    %v863 = vpop.f32.mrf.mxu0
    %864 = vdwg.mxu0
    %v865 = vadd.f32 %v779, %v818
    %v866 = vadd.f32 %v780, %v820
    %v867 = vadd.f32 %v781, %v859
    %v868 = vadd.f32 %v782, %v861
    %v869 = vxor.u32 %v865, 2147483648
    %v870 = vmul.f32 %v869, 1.442695
    %v871 = vpow.pop %v870
    %v872 = vadd.f32 %v871, 1.0
    %v873 = vrcp.pop %v872
    %v874 = vmul.f32 1.0, %v873
    %v875 = vxor.u32 %v866, 2147483648
    %v876 = vmul.f32 %v875, 1.442695
    %v877 = vpow.pop %v876
    %v878 = vadd.f32 %v877, 1.0
    %v879 = vrcp.pop %v878
    %v880 = vmul.f32 1.0, %v879
    %v881 = vtanh.pop %v867
    %v882 = vxor.u32 %v868, 2147483648
    %v883 = vmul.f32 %v882, 1.442695
    %v884 = vpow.pop %v883
    %v885 = vadd.f32 %v884, 1.0
    %v886 = vrcp.pop %v885
    %v887 = vmul.f32 1.0, %v886
    %v888 = vmul.f32 %v880, %v490
    %v889 = vmul.f32 %v874, %v881
    %v890 = vadd.f32 %v888, %v889
    %v891 = vtanh.pop %v890
    %v892 = vmul.f32 %v887, %v891
    %v893 = vpack.c.bf16 %v892, %v892
    %s894 = scalar_lea.vmem %s4, 4
    %895 = vst [vmem:[%s894] sm:$0xf] %v893
    %s896 = scalar_lea.vmem [#allocation7], 96
    %v897 = vld [vmem:[%s896] sm:$0xff]
    %v898 = vld [vmem:[%s896 + $0x8] sm:$0xff]
    %v899 = vunpack.c.l.bf16 %v897
    %v900 = vunpack.c.h.bf16 %v897
    %v901 = vunpack.c.l.bf16 %v898
    %v902 = vunpack.c.h.bf16 %v898
    %903 = vmatprep.subr.bf16.mxu0 %v628
    %904 = vmatpush1.bf16.msra.mxu0 %v627
    %905 = vmatprep.subr.bf16.mxu0 %v624
    %906 = vmatpush1.bf16.msra.mxu0 %v623
    %907 = vmatprep.subr.bf16.mxu0 %v620
    %908 = vmatpush1.bf16.msra.mxu0 %v619
    %909 = vmatprep.subr.bf16.mxu0 %v616
    %910 = vmatpush1.bf16.msra.mxu0 %v615
    %911 = vmatprep.subr.bf16.mxu0 %v612
    %912 = vmatpush1.bf16.msra.mxu0 %v611
    %913 = vmatprep.subr.bf16.mxu0 %v608
    %914 = vmatpush1.bf16.msra.mxu0 %v607
    %915 = vmatprep.subr.bf16.mxu0 %v604
    %916 = vmatpush1.bf16.msra.mxu0 %v603
    %917 = vmatprep.subr.bf16.mxu0 %v600
    %918 = vmatpush1.bf16.msra.mxu0 %v599
    %919 = vmatprep.subr.bf16.mxu0 0
    %920 = vmatpush2.bf16.msra.mxu0 0
    %921 = vmatprep.subr.bf16.mxu0 0
    %922 = vmatpush2.bf16.msra.mxu0 0
    %923 = vmatprep.subr.bf16.mxu0 0
    %924 = vmatpush2.bf16.msra.mxu0 0
    %925 = vmatprep.subr.bf16.mxu0 0
    %926 = vmatpush2.bf16.msra.mxu0 0
    %927 = vmatprep.subr.bf16.mxu0 0
    %928 = vmatpush2.bf16.msra.mxu0 0
    %929 = vmatprep.subr.bf16.mxu0 0
    %930 = vmatpush2.bf16.msra.mxu0 0
    %931 = vmatprep.subr.bf16.mxu0 0
    %932 = vmatpush2.bf16.msra.mxu0 0
    %933 = vmatprep.subr.bf16.mxu0 0
    %934 = vmatpush2.bf16.msra.mxu0 0
    %935 = vmatprep.mubr.bf16.mxu0 0
    %936 = vmatmul.mubr.bf16.gmra.mxu0 %v773
    %v937 = vpop.f32.mrf.mxu0
    %v938 = vadd.f32 0.0, %v937
    %v939 = vpop.f32.mrf.mxu0
    %v940 = vadd.f32 0.0, %v939
    %v941 = vpop.f32.mrf.mxu0
    %v942 = vpop.f32.mrf.mxu0
    %943 = vdwg.mxu0
    %944 = vmatprep.subr.bf16.mxu0 %v630
    %945 = vmatpush1.bf16.msra.mxu0 %v629
    %946 = vmatprep.subr.bf16.mxu0 %v626
    %947 = vmatpush1.bf16.msra.mxu0 %v625
    %948 = vmatprep.subr.bf16.mxu0 %v622
    %949 = vmatpush1.bf16.msra.mxu0 %v621
    %950 = vmatprep.subr.bf16.mxu0 %v618
    %951 = vmatpush1.bf16.msra.mxu0 %v617
    %952 = vmatprep.subr.bf16.mxu0 %v614
    %953 = vmatpush1.bf16.msra.mxu0 %v613
    %954 = vmatprep.subr.bf16.mxu0 %v610
    %955 = vmatpush1.bf16.msra.mxu0 %v609
    %956 = vmatprep.subr.bf16.mxu0 %v606
    %957 = vmatpush1.bf16.msra.mxu0 %v605
    %958 = vmatprep.subr.bf16.mxu0 %v602
    %959 = vmatpush1.bf16.msra.mxu0 %v601
    %960 = vmatprep.subr.bf16.mxu0 0
    %961 = vmatpush2.bf16.msra.mxu0 0
    %962 = vmatprep.subr.bf16.mxu0 0
    %963 = vmatpush2.bf16.msra.mxu0 0
    %964 = vmatprep.subr.bf16.mxu0 0
    %965 = vmatpush2.bf16.msra.mxu0 0
    %966 = vmatprep.subr.bf16.mxu0 0
    %967 = vmatpush2.bf16.msra.mxu0 0
    %968 = vmatprep.subr.bf16.mxu0 0
    %969 = vmatpush2.bf16.msra.mxu0 0
    %970 = vmatprep.subr.bf16.mxu0 0
    %971 = vmatpush2.bf16.msra.mxu0 0
    %972 = vmatprep.subr.bf16.mxu0 0
    %973 = vmatpush2.bf16.msra.mxu0 0
    %974 = vmatprep.subr.bf16.mxu0 0
    %975 = vmatpush2.bf16.msra.mxu0 0
    %976 = vmatprep.mubr.bf16.mxu0 0
    %977 = vmatmul.mubr.bf16.gmra.mxu0 %v773
    %v978 = vpop.f32.mrf.mxu0
    %v979 = vadd.f32 0.0, %v978
    %v980 = vpop.f32.mrf.mxu0
    %v981 = vadd.f32 0.0, %v980
    %v982 = vpop.f32.mrf.mxu0
    %v983 = vpop.f32.mrf.mxu0
    %984 = vdwg.mxu0
    %v985 = vadd.f32 %v899, %v938
    %v986 = vadd.f32 %v900, %v940
    %v987 = vadd.f32 %v901, %v979
    %v988 = vadd.f32 %v902, %v981
    %v989 = vxor.u32 %v985, 2147483648
    %v990 = vmul.f32 %v989, 1.442695
    %v991 = vpow.pop %v990
    %v992 = vadd.f32 %v991, 1.0
    %v993 = vrcp.pop %v992
    %v994 = vmul.f32 1.0, %v993
    %v995 = vxor.u32 %v986, 2147483648
    %v996 = vmul.f32 %v995, 1.442695
    %v997 = vpow.pop %v996
    %v998 = vadd.f32 %v997, 1.0
    %v999 = vrcp.pop %v998
    %v1000 = vmul.f32 1.0, %v999
    %v1001 = vtanh.pop %v987
    %v1002 = vxor.u32 %v988, 2147483648
    %v1003 = vmul.f32 %v1002, 1.442695
    %v1004 = vpow.pop %v1003
    %v1005 = vadd.f32 %v1004, 1.0
    %v1006 = vrcp.pop %v1005
    %v1007 = vmul.f32 1.0, %v1006
    %v1008 = vmul.f32 %v1000, %v770
    %v1009 = vmul.f32 %v994, %v1001
    %v1010 = vadd.f32 %v1008, %v1009
    %v1011 = vtanh.pop %v1010
    %v1012 = vmul.f32 %v1007, %v1011
    %v1013 = vpack.c.bf16 %v1012, %v1012
    %s1014 = scalar_lea.vmem %s136, 24
    %1015 = vst [vmem:[%s1014] sm:$0xf] %v1013
    %s1016 = scalar_lea.vmem [#allocation6], 32
    %v1017 = vld [vmem:[%s1016] sm:$0xff]
    %v1018 = vld [vmem:[%s1016 + $0x8] sm:$0xff]
    %v1019 = vunpack.c.l.bf16 %v1017
    %v1020 = vunpack.c.h.bf16 %v1017
    %v1021 = vunpack.c.l.bf16 %v1018
    %v1022 = vunpack.c.h.bf16 %v1018
    %1023 = vmatprep.subr.bf16.mxu0 %v348
    %1024 = vmatpush1.bf16.msra.mxu0 %v347
    %1025 = vmatprep.subr.bf16.mxu0 %v344
    %1026 = vmatpush1.bf16.msra.mxu0 %v343
    %1027 = vmatprep.subr.bf16.mxu0 %v340
    %1028 = vmatpush1.bf16.msra.mxu0 %v339
    %1029 = vmatprep.subr.bf16.mxu0 %v336
    %1030 = vmatpush1.bf16.msra.mxu0 %v335
    %1031 = vmatprep.subr.bf16.mxu0 %v332
    %1032 = vmatpush1.bf16.msra.mxu0 %v331
    %1033 = vmatprep.subr.bf16.mxu0 %v328
    %1034 = vmatpush1.bf16.msra.mxu0 %v327
    %1035 = vmatprep.subr.bf16.mxu0 %v324
    %1036 = vmatpush1.bf16.msra.mxu0 %v323
    %1037 = vmatprep.subr.bf16.mxu0 %v320
    %1038 = vmatpush1.bf16.msra.mxu0 %v319
    %1039 = vmatprep.subr.bf16.mxu0 0
    %1040 = vmatpush2.bf16.msra.mxu0 0
    %1041 = vmatprep.subr.bf16.mxu0 0
    %1042 = vmatpush2.bf16.msra.mxu0 0
    %1043 = vmatprep.subr.bf16.mxu0 0
    %1044 = vmatpush2.bf16.msra.mxu0 0
    %1045 = vmatprep.subr.bf16.mxu0 0
    %1046 = vmatpush2.bf16.msra.mxu0 0
    %1047 = vmatprep.subr.bf16.mxu0 0
    %1048 = vmatpush2.bf16.msra.mxu0 0
    %1049 = vmatprep.subr.bf16.mxu0 0
    %1050 = vmatpush2.bf16.msra.mxu0 0
    %1051 = vmatprep.subr.bf16.mxu0 0
    %1052 = vmatpush2.bf16.msra.mxu0 0
    %1053 = vmatprep.subr.bf16.mxu0 0
    %1054 = vmatpush2.bf16.msra.mxu0 0
    %1055 = vmatprep.mubr.bf16.mxu0 0
    %1056 = vmatmul.mubr.bf16.gmra.mxu0 %v893
    %v1057 = vpop.f32.mrf.mxu0
    %v1058 = vadd.f32 0.0, %v1057
    %v1059 = vpop.f32.mrf.mxu0
    %v1060 = vadd.f32 0.0, %v1059
    %v1061 = vpop.f32.mrf.mxu0
    %v1062 = vpop.f32.mrf.mxu0
    %1063 = vdwg.mxu0
    %1064 = vmatprep.subr.bf16.mxu0 %v350
    %1065 = vmatpush1.bf16.msra.mxu0 %v349
    %1066 = vmatprep.subr.bf16.mxu0 %v346
    %1067 = vmatpush1.bf16.msra.mxu0 %v345
    %1068 = vmatprep.subr.bf16.mxu0 %v342
    %1069 = vmatpush1.bf16.msra.mxu0 %v341
    %1070 = vmatprep.subr.bf16.mxu0 %v338
    %1071 = vmatpush1.bf16.msra.mxu0 %v337
    %1072 = vmatprep.subr.bf16.mxu0 %v334
    %1073 = vmatpush1.bf16.msra.mxu0 %v333
    %1074 = vmatprep.subr.bf16.mxu0 %v330
    %1075 = vmatpush1.bf16.msra.mxu0 %v329
    %1076 = vmatprep.subr.bf16.mxu0 %v326
    %1077 = vmatpush1.bf16.msra.mxu0 %v325
    %1078 = vmatprep.subr.bf16.mxu0 %v322
    %1079 = vmatpush1.bf16.msra.mxu0 %v321
    %1080 = vmatprep.subr.bf16.mxu0 0
    %1081 = vmatpush2.bf16.msra.mxu0 0
    %1082 = vmatprep.subr.bf16.mxu0 0
    %1083 = vmatpush2.bf16.msra.mxu0 0
    %1084 = vmatprep.subr.bf16.mxu0 0
    %1085 = vmatpush2.bf16.msra.mxu0 0
    %1086 = vmatprep.subr.bf16.mxu0 0
    %1087 = vmatpush2.bf16.msra.mxu0 0
    %1088 = vmatprep.subr.bf16.mxu0 0
    %1089 = vmatpush2.bf16.msra.mxu0 0
    %1090 = vmatprep.subr.bf16.mxu0 0
    %1091 = vmatpush2.bf16.msra.mxu0 0
    %1092 = vmatprep.subr.bf16.mxu0 0
    %1093 = vmatpush2.bf16.msra.mxu0 0
    %1094 = vmatprep.subr.bf16.mxu0 0
    %1095 = vmatpush2.bf16.msra.mxu0 0
    %1096 = vmatprep.mubr.bf16.mxu0 0
    %1097 = vmatmul.mubr.bf16.gmra.mxu0 %v893
    %v1098 = vpop.f32.mrf.mxu0
    %v1099 = vadd.f32 0.0, %v1098
    %v1100 = vpop.f32.mrf.mxu0
    %v1101 = vadd.f32 0.0, %v1100
    %v1102 = vpop.f32.mrf.mxu0
    %v1103 = vpop.f32.mrf.mxu0
    %1104 = vdwg.mxu0
    %v1105 = vadd.f32 %v1019, %v1058
    %v1106 = vadd.f32 %v1020, %v1060
    %v1107 = vadd.f32 %v1021, %v1099
    %v1108 = vadd.f32 %v1022, %v1101
    %v1109 = vxor.u32 %v1105, 2147483648
    %v1110 = vmul.f32 %v1109, 1.442695
    %v1111 = vpow.pop %v1110
    %v1112 = vadd.f32 %v1111, 1.0
    %v1113 = vrcp.pop %v1112
    %v1114 = vmul.f32 1.0, %v1113
    %v1115 = vxor.u32 %v1106, 2147483648
    %v1116 = vmul.f32 %v1115, 1.442695
    %v1117 = vpow.pop %v1116
    %v1118 = vadd.f32 %v1117, 1.0
    %v1119 = vrcp.pop %v1118
    %v1120 = vmul.f32 1.0, %v1119
    %v1121 = vtanh.pop %v1107
    %v1122 = vxor.u32 %v1108, 2147483648
    %v1123 = vmul.f32 %v1122, 1.442695
    %v1124 = vpow.pop %v1123
    %v1125 = vadd.f32 %v1124, 1.0
    %v1126 = vrcp.pop %v1125
    %v1127 = vmul.f32 1.0, %v1126
    %v1128 = vmul.f32 %v1120, %v890
    %v1129 = vmul.f32 %v1114, %v1121
    %v1130 = vadd.f32 %v1128, %v1129
    %v1131 = vtanh.pop %v1130
    %v1132 = vmul.f32 %v1127, %v1131
    %v1133 = vpack.c.bf16 %v1132, %v1132
    %s1134 = scalar_lea.vmem %s4, 8
    %1135 = vst [vmem:[%s1134] sm:$0xf] %v1133
    %s1136 = scalar_lea.vmem [#allocation7], 80
    %v1137 = vld [vmem:[%s1136] sm:$0xff]
    %v1138 = vld [vmem:[%s1136 + $0x8] sm:$0xff]
    %v1139 = vunpack.c.l.bf16 %v1137
    %v1140 = vunpack.c.h.bf16 %v1137
    %v1141 = vunpack.c.l.bf16 %v1138
    %v1142 = vunpack.c.h.bf16 %v1138
    %1143 = vmatprep.subr.bf16.mxu0 %v628
    %1144 = vmatpush1.bf16.msra.mxu0 %v627
    %1145 = vmatprep.subr.bf16.mxu0 %v624
    %1146 = vmatpush1.bf16.msra.mxu0 %v623
    %1147 = vmatprep.subr.bf16.mxu0 %v620
    %1148 = vmatpush1.bf16.msra.mxu0 %v619
    %1149 = vmatprep.subr.bf16.mxu0 %v616
    %1150 = vmatpush1.bf16.msra.mxu0 %v615
    %1151 = vmatprep.subr.bf16.mxu0 %v612
    %1152 = vmatpush1.bf16.msra.mxu0 %v611
    %1153 = vmatprep.subr.bf16.mxu0 %v608
    %1154 = vmatpush1.bf16.msra.mxu0 %v607
    %1155 = vmatprep.subr.bf16.mxu0 %v604
    %1156 = vmatpush1.bf16.msra.mxu0 %v603
    %1157 = vmatprep.subr.bf16.mxu0 %v600
    %1158 = vmatpush1.bf16.msra.mxu0 %v599
    %1159 = vmatprep.subr.bf16.mxu0 0
    %1160 = vmatpush2.bf16.msra.mxu0 0
    %1161 = vmatprep.subr.bf16.mxu0 0
    %1162 = vmatpush2.bf16.msra.mxu0 0
    %1163 = vmatprep.subr.bf16.mxu0 0
    %1164 = vmatpush2.bf16.msra.mxu0 0
    %1165 = vmatprep.subr.bf16.mxu0 0
    %1166 = vmatpush2.bf16.msra.mxu0 0
    %1167 = vmatprep.subr.bf16.mxu0 0
    %1168 = vmatpush2.bf16.msra.mxu0 0
    %1169 = vmatprep.subr.bf16.mxu0 0
    %1170 = vmatpush2.bf16.msra.mxu0 0
    %1171 = vmatprep.subr.bf16.mxu0 0
    %1172 = vmatpush2.bf16.msra.mxu0 0
    %1173 = vmatprep.subr.bf16.mxu0 0
    %1174 = vmatpush2.bf16.msra.mxu0 0
    %1175 = vmatprep.mubr.bf16.mxu0 0
    %1176 = vmatmul.mubr.bf16.gmra.mxu0 %v1013
    %v1177 = vpop.f32.mrf.mxu0
    %v1178 = vadd.f32 0.0, %v1177
    %v1179 = vpop.f32.mrf.mxu0
    %v1180 = vadd.f32 0.0, %v1179
    %v1181 = vpop.f32.mrf.mxu0
    %v1182 = vpop.f32.mrf.mxu0
    %1183 = vdwg.mxu0
    %1184 = vmatprep.subr.bf16.mxu0 %v630
    %1185 = vmatpush1.bf16.msra.mxu0 %v629
    %1186 = vmatprep.subr.bf16.mxu0 %v626
    %1187 = vmatpush1.bf16.msra.mxu0 %v625
    %1188 = vmatprep.subr.bf16.mxu0 %v622
    %1189 = vmatpush1.bf16.msra.mxu0 %v621
    %1190 = vmatprep.subr.bf16.mxu0 %v618
    %1191 = vmatpush1.bf16.msra.mxu0 %v617
    %1192 = vmatprep.subr.bf16.mxu0 %v614
    %1193 = vmatpush1.bf16.msra.mxu0 %v613
    %1194 = vmatprep.subr.bf16.mxu0 %v610
    %1195 = vmatpush1.bf16.msra.mxu0 %v609
    %1196 = vmatprep.subr.bf16.mxu0 %v606
    %1197 = vmatpush1.bf16.msra.mxu0 %v605
    %1198 = vmatprep.subr.bf16.mxu0 %v602
    %1199 = vmatpush1.bf16.msra.mxu0 %v601
    %1200 = vmatprep.subr.bf16.mxu0 0
    %1201 = vmatpush2.bf16.msra.mxu0 0
    %1202 = vmatprep.subr.bf16.mxu0 0
    %1203 = vmatpush2.bf16.msra.mxu0 0
    %1204 = vmatprep.subr.bf16.mxu0 0
    %1205 = vmatpush2.bf16.msra.mxu0 0
    %1206 = vmatprep.subr.bf16.mxu0 0
    %1207 = vmatpush2.bf16.msra.mxu0 0
    %1208 = vmatprep.subr.bf16.mxu0 0
    %1209 = vmatpush2.bf16.msra.mxu0 0
    %1210 = vmatprep.subr.bf16.mxu0 0
    %1211 = vmatpush2.bf16.msra.mxu0 0
    %1212 = vmatprep.subr.bf16.mxu0 0
    %1213 = vmatpush2.bf16.msra.mxu0 0
    %1214 = vmatprep.subr.bf16.mxu0 0
    %1215 = vmatpush2.bf16.msra.mxu0 0
    %1216 = vmatprep.mubr.bf16.mxu0 0
    %1217 = vmatmul.mubr.bf16.gmra.mxu0 %v1013
    %v1218 = vpop.f32.mrf.mxu0
    %v1219 = vadd.f32 0.0, %v1218
    %v1220 = vpop.f32.mrf.mxu0
    %v1221 = vadd.f32 0.0, %v1220
    %v1222 = vpop.f32.mrf.mxu0
    %v1223 = vpop.f32.mrf.mxu0
    %1224 = vdwg.mxu0
    %v1225 = vadd.f32 %v1139, %v1178
    %v1226 = vadd.f32 %v1140, %v1180
    %v1227 = vadd.f32 %v1141, %v1219
    %v1228 = vadd.f32 %v1142, %v1221
    %v1229 = vxor.u32 %v1225, 2147483648
    %v1230 = vmul.f32 %v1229, 1.442695
    %v1231 = vpow.pop %v1230
    %v1232 = vadd.f32 %v1231, 1.0
    %v1233 = vrcp.pop %v1232
    %v1234 = vmul.f32 1.0, %v1233
    %v1235 = vxor.u32 %v1226, 2147483648
    %v1236 = vmul.f32 %v1235, 1.442695
    %v1237 = vpow.pop %v1236
    %v1238 = vadd.f32 %v1237, 1.0
    %v1239 = vrcp.pop %v1238
    %v1240 = vmul.f32 1.0, %v1239
    %v1241 = vtanh.pop %v1227
    %v1242 = vxor.u32 %v1228, 2147483648
    %v1243 = vmul.f32 %v1242, 1.442695
    %v1244 = vpow.pop %v1243
    %v1245 = vadd.f32 %v1244, 1.0
    %v1246 = vrcp.pop %v1245
    %v1247 = vmul.f32 1.0, %v1246
    %v1248 = vmul.f32 %v1240, %v1010
    %v1249 = vmul.f32 %v1234, %v1241
    %v1250 = vadd.f32 %v1248, %v1249
    %v1251 = vtanh.pop %v1250
    %v1252 = vmul.f32 %v1247, %v1251
    %v1253 = vpack.c.bf16 %v1252, %v1252
    %s1254 = scalar_lea.vmem %s136, 20
    %1255 = vst [vmem:[%s1254] sm:$0xf] %v1253
    %s1256 = scalar_lea.vmem [#allocation6], 48
    %v1257 = vld [vmem:[%s1256] sm:$0xff]
    %v1258 = vld [vmem:[%s1256 + $0x8] sm:$0xff]
    %v1259 = vunpack.c.l.bf16 %v1257
    %v1260 = vunpack.c.h.bf16 %v1257
    %v1261 = vunpack.c.l.bf16 %v1258
    %v1262 = vunpack.c.h.bf16 %v1258
    %1263 = vmatprep.subr.bf16.mxu0 %v348
    %1264 = vmatpush1.bf16.msra.mxu0 %v347
    %1265 = vmatprep.subr.bf16.mxu0 %v344
    %1266 = vmatpush1.bf16.msra.mxu0 %v343
    %1267 = vmatprep.subr.bf16.mxu0 %v340
    %1268 = vmatpush1.bf16.msra.mxu0 %v339
    %1269 = vmatprep.subr.bf16.mxu0 %v336
    %1270 = vmatpush1.bf16.msra.mxu0 %v335
    %1271 = vmatprep.subr.bf16.mxu0 %v332
    %1272 = vmatpush1.bf16.msra.mxu0 %v331
    %1273 = vmatprep.subr.bf16.mxu0 %v328
    %1274 = vmatpush1.bf16.msra.mxu0 %v327
    %1275 = vmatprep.subr.bf16.mxu0 %v324
    %1276 = vmatpush1.bf16.msra.mxu0 %v323
    %1277 = vmatprep.subr.bf16.mxu0 %v320
    %1278 = vmatpush1.bf16.msra.mxu0 %v319
    %1279 = vmatprep.subr.bf16.mxu0 0
    %1280 = vmatpush2.bf16.msra.mxu0 0
    %1281 = vmatprep.subr.bf16.mxu0 0
    %1282 = vmatpush2.bf16.msra.mxu0 0
    %1283 = vmatprep.subr.bf16.mxu0 0
    %1284 = vmatpush2.bf16.msra.mxu0 0
    %1285 = vmatprep.subr.bf16.mxu0 0
    %1286 = vmatpush2.bf16.msra.mxu0 0
    %1287 = vmatprep.subr.bf16.mxu0 0
    %1288 = vmatpush2.bf16.msra.mxu0 0
    %1289 = vmatprep.subr.bf16.mxu0 0
    %1290 = vmatpush2.bf16.msra.mxu0 0
    %1291 = vmatprep.subr.bf16.mxu0 0
    %1292 = vmatpush2.bf16.msra.mxu0 0
    %1293 = vmatprep.subr.bf16.mxu0 0
    %1294 = vmatpush2.bf16.msra.mxu0 0
    %1295 = vmatprep.mubr.bf16.mxu0 0
    %1296 = vmatmul.mubr.bf16.gmra.mxu0 %v1133
    %v1297 = vpop.f32.mrf.mxu0
    %v1298 = vadd.f32 0.0, %v1297
    %v1299 = vpop.f32.mrf.mxu0
    %v1300 = vadd.f32 0.0, %v1299
    %v1301 = vpop.f32.mrf.mxu0
    %v1302 = vpop.f32.mrf.mxu0
    %1303 = vdwg.mxu0
    %1304 = vmatprep.subr.bf16.mxu0 %v350
    %1305 = vmatpush1.bf16.msra.mxu0 %v349
    %1306 = vmatprep.subr.bf16.mxu0 %v346
    %1307 = vmatpush1.bf16.msra.mxu0 %v345
    %1308 = vmatprep.subr.bf16.mxu0 %v342
    %1309 = vmatpush1.bf16.msra.mxu0 %v341
    %1310 = vmatprep.subr.bf16.mxu0 %v338
    %1311 = vmatpush1.bf16.msra.mxu0 %v337
    %1312 = vmatprep.subr.bf16.mxu0 %v334
    %1313 = vmatpush1.bf16.msra.mxu0 %v333
    %1314 = vmatprep.subr.bf16.mxu0 %v330
    %1315 = vmatpush1.bf16.msra.mxu0 %v329
    %1316 = vmatprep.subr.bf16.mxu0 %v326
    %1317 = vmatpush1.bf16.msra.mxu0 %v325
    %1318 = vmatprep.subr.bf16.mxu0 %v322
    %1319 = vmatpush1.bf16.msra.mxu0 %v321
    %1320 = vmatprep.subr.bf16.mxu0 0
    %1321 = vmatpush2.bf16.msra.mxu0 0
    %1322 = vmatprep.subr.bf16.mxu0 0
    %1323 = vmatpush2.bf16.msra.mxu0 0
    %1324 = vmatprep.subr.bf16.mxu0 0
    %1325 = vmatpush2.bf16.msra.mxu0 0
    %1326 = vmatprep.subr.bf16.mxu0 0
    %1327 = vmatpush2.bf16.msra.mxu0 0
    %1328 = vmatprep.subr.bf16.mxu0 0
    %1329 = vmatpush2.bf16.msra.mxu0 0
    %1330 = vmatprep.subr.bf16.mxu0 0
    %1331 = vmatpush2.bf16.msra.mxu0 0
    %1332 = vmatprep.subr.bf16.mxu0 0
    %1333 = vmatpush2.bf16.msra.mxu0 0
    %1334 = vmatprep.subr.bf16.mxu0 0
    %1335 = vmatpush2.bf16.msra.mxu0 0
    %1336 = vmatprep.mubr.bf16.mxu0 0
    %1337 = vmatmul.mubr.bf16.gmra.mxu0 %v1133
    %v1338 = vpop.f32.mrf.mxu0
    %v1339 = vadd.f32 0.0, %v1338
    %v1340 = vpop.f32.mrf.mxu0
    %v1341 = vadd.f32 0.0, %v1340
    %v1342 = vpop.f32.mrf.mxu0
    %v1343 = vpop.f32.mrf.mxu0
    %1344 = vdwg.mxu0
    %v1345 = vadd.f32 %v1259, %v1298
    %v1346 = vadd.f32 %v1260, %v1300
    %v1347 = vadd.f32 %v1261, %v1339
    %v1348 = vadd.f32 %v1262, %v1341
    %v1349 = vxor.u32 %v1345, 2147483648
    %v1350 = vmul.f32 %v1349, 1.442695
    %v1351 = vpow.pop %v1350
    %v1352 = vadd.f32 %v1351, 1.0
    %v1353 = vrcp.pop %v1352
    %v1354 = vmul.f32 1.0, %v1353
    %v1355 = vxor.u32 %v1346, 2147483648
    %v1356 = vmul.f32 %v1355, 1.442695
    %v1357 = vpow.pop %v1356
    %v1358 = vadd.f32 %v1357, 1.0
    %v1359 = vrcp.pop %v1358
    %v1360 = vmul.f32 1.0, %v1359
    %v1361 = vtanh.pop %v1347
    %v1362 = vxor.u32 %v1348, 2147483648
    %v1363 = vmul.f32 %v1362, 1.442695
    %v1364 = vpow.pop %v1363
    %v1365 = vadd.f32 %v1364, 1.0
    %v1366 = vrcp.pop %v1365
    %v1367 = vmul.f32 1.0, %v1366
    %v1368 = vmul.f32 %v1360, %v1130
    %v1369 = vmul.f32 %v1354, %v1361
    %v1370 = vadd.f32 %v1368, %v1369
    %v1371 = vtanh.pop %v1370
    %v1372 = vmul.f32 %v1367, %v1371
    %v1373 = vpack.c.bf16 %v1372, %v1372
    %s1374 = scalar_lea.vmem %s4, 12
    %1375 = vst [vmem:[%s1374] sm:$0xf] %v1373
    %s1376 = scalar_lea.vmem [#allocation7], 64
    %v1377 = vld [vmem:[%s1376] sm:$0xff]
    %v1378 = vld [vmem:[%s1376 + $0x8] sm:$0xff]
    %v1379 = vunpack.c.l.bf16 %v1377
    %v1380 = vunpack.c.h.bf16 %v1377
    %v1381 = vunpack.c.l.bf16 %v1378
    %v1382 = vunpack.c.h.bf16 %v1378
    %1383 = vmatprep.subr.bf16.mxu0 %v628
    %1384 = vmatpush1.bf16.msra.mxu0 %v627
    %1385 = vmatprep.subr.bf16.mxu0 %v624
    %1386 = vmatpush1.bf16.msra.mxu0 %v623
    %1387 = vmatprep.subr.bf16.mxu0 %v620
    %1388 = vmatpush1.bf16.msra.mxu0 %v619
    %1389 = vmatprep.subr.bf16.mxu0 %v616
    %1390 = vmatpush1.bf16.msra.mxu0 %v615
    %1391 = vmatprep.subr.bf16.mxu0 %v612
    %1392 = vmatpush1.bf16.msra.mxu0 %v611
    %1393 = vmatprep.subr.bf16.mxu0 %v608
    %1394 = vmatpush1.bf16.msra.mxu0 %v607
    %1395 = vmatprep.subr.bf16.mxu0 %v604
    %1396 = vmatpush1.bf16.msra.mxu0 %v603
    %1397 = vmatprep.subr.bf16.mxu0 %v600
    %1398 = vmatpush1.bf16.msra.mxu0 %v599
    %1399 = vmatprep.subr.bf16.mxu0 0
    %1400 = vmatpush2.bf16.msra.mxu0 0
    %1401 = vmatprep.subr.bf16.mxu0 0
    %1402 = vmatpush2.bf16.msra.mxu0 0
    %1403 = vmatprep.subr.bf16.mxu0 0
    %1404 = vmatpush2.bf16.msra.mxu0 0
    %1405 = vmatprep.subr.bf16.mxu0 0
    %1406 = vmatpush2.bf16.msra.mxu0 0
    %1407 = vmatprep.subr.bf16.mxu0 0
    %1408 = vmatpush2.bf16.msra.mxu0 0
    %1409 = vmatprep.subr.bf16.mxu0 0
    %1410 = vmatpush2.bf16.msra.mxu0 0
    %1411 = vmatprep.subr.bf16.mxu0 0
    %1412 = vmatpush2.bf16.msra.mxu0 0
    %1413 = vmatprep.subr.bf16.mxu0 0
    %1414 = vmatpush2.bf16.msra.mxu0 0
    %1415 = vmatprep.mubr.bf16.mxu0 0
    %1416 = vmatmul.mubr.bf16.gmra.mxu0 %v1253
    %v1417 = vpop.f32.mrf.mxu0
    %v1418 = vadd.f32 0.0, %v1417
    %v1419 = vpop.f32.mrf.mxu0
    %v1420 = vadd.f32 0.0, %v1419
    %v1421 = vpop.f32.mrf.mxu0
    %v1422 = vpop.f32.mrf.mxu0
    %1423 = vdwg.mxu0
    %1424 = vmatprep.subr.bf16.mxu0 %v630
    %1425 = vmatpush1.bf16.msra.mxu0 %v629
    %1426 = vmatprep.subr.bf16.mxu0 %v626
    %1427 = vmatpush1.bf16.msra.mxu0 %v625
    %1428 = vmatprep.subr.bf16.mxu0 %v622
    %1429 = vmatpush1.bf16.msra.mxu0 %v621
    %1430 = vmatprep.subr.bf16.mxu0 %v618
    %1431 = vmatpush1.bf16.msra.mxu0 %v617
    %1432 = vmatprep.subr.bf16.mxu0 %v614
    %1433 = vmatpush1.bf16.msra.mxu0 %v613
    %1434 = vmatprep.subr.bf16.mxu0 %v610
    %1435 = vmatpush1.bf16.msra.mxu0 %v609
    %1436 = vmatprep.subr.bf16.mxu0 %v606
    %1437 = vmatpush1.bf16.msra.mxu0 %v605
    %1438 = vmatprep.subr.bf16.mxu0 %v602
    %1439 = vmatpush1.bf16.msra.mxu0 %v601
    %1440 = vmatprep.subr.bf16.mxu0 0
    %1441 = vmatpush2.bf16.msra.mxu0 0
    %1442 = vmatprep.subr.bf16.mxu0 0
    %1443 = vmatpush2.bf16.msra.mxu0 0
    %1444 = vmatprep.subr.bf16.mxu0 0
    %1445 = vmatpush2.bf16.msra.mxu0 0
    %1446 = vmatprep.subr.bf16.mxu0 0
    %1447 = vmatpush2.bf16.msra.mxu0 0
    %1448 = vmatprep.subr.bf16.mxu0 0
    %1449 = vmatpush2.bf16.msra.mxu0 0
    %1450 = vmatprep.subr.bf16.mxu0 0
    %1451 = vmatpush2.bf16.msra.mxu0 0
    %1452 = vmatprep.subr.bf16.mxu0 0
    %1453 = vmatpush2.bf16.msra.mxu0 0
    %1454 = vmatprep.subr.bf16.mxu0 0
    %1455 = vmatpush2.bf16.msra.mxu0 0
    %1456 = vmatprep.mubr.bf16.mxu0 0
    %1457 = vmatmul.mubr.bf16.gmra.mxu0 %v1253
    %v1458 = vpop.f32.mrf.mxu0
    %v1459 = vadd.f32 0.0, %v1458
    %v1460 = vpop.f32.mrf.mxu0
    %v1461 = vadd.f32 0.0, %v1460
    %v1462 = vpop.f32.mrf.mxu0
    %v1463 = vpop.f32.mrf.mxu0
    %1464 = vdwg.mxu0
    %v1465 = vadd.f32 %v1379, %v1418
    %v1466 = vadd.f32 %v1380, %v1420
    %v1467 = vadd.f32 %v1381, %v1459
    %v1468 = vadd.f32 %v1382, %v1461
    %v1469 = vxor.u32 %v1465, 2147483648
    %v1470 = vmul.f32 %v1469, 1.442695
    %v1471 = vpow.pop %v1470
    %v1472 = vadd.f32 %v1471, 1.0
    %v1473 = vrcp.pop %v1472
    %v1474 = vmul.f32 1.0, %v1473
    %v1475 = vxor.u32 %v1466, 2147483648
    %v1476 = vmul.f32 %v1475, 1.442695
    %v1477 = vpow.pop %v1476
    %v1478 = vadd.f32 %v1477, 1.0
    %v1479 = vrcp.pop %v1478
    %v1480 = vmul.f32 1.0, %v1479
    %v1481 = vtanh.pop %v1467
    %v1482 = vxor.u32 %v1468, 2147483648
    %v1483 = vmul.f32 %v1482, 1.442695
    %v1484 = vpow.pop %v1483
    %v1485 = vadd.f32 %v1484, 1.0
    %v1486 = vrcp.pop %v1485
    %v1487 = vmul.f32 1.0, %v1486
    %v1488 = vmul.f32 %v1480, %v1250
    %v1489 = vmul.f32 %v1474, %v1481
    %v1490 = vadd.f32 %v1488, %v1489
    %v1491 = vtanh.pop %v1490
    %v1492 = vmul.f32 %v1487, %v1491
    %v1493 = vpack.c.bf16 %v1492, %v1492
    %s1494 = scalar_lea.vmem %s136, 16
    %1495 = vst [vmem:[%s1494] sm:$0xf] %v1493
    %s1496 = scalar_lea.vmem [#allocation6], 64
    %v1497 = vld [vmem:[%s1496] sm:$0xff]
    %v1498 = vld [vmem:[%s1496 + $0x8] sm:$0xff]
    %v1499 = vunpack.c.l.bf16 %v1497
    %v1500 = vunpack.c.h.bf16 %v1497
    %v1501 = vunpack.c.l.bf16 %v1498
    %v1502 = vunpack.c.h.bf16 %v1498
    %1503 = vmatprep.subr.bf16.mxu0 %v348
    %1504 = vmatpush1.bf16.msra.mxu0 %v347
    %1505 = vmatprep.subr.bf16.mxu0 %v344
    %1506 = vmatpush1.bf16.msra.mxu0 %v343
    %1507 = vmatprep.subr.bf16.mxu0 %v340
    %1508 = vmatpush1.bf16.msra.mxu0 %v339
    %1509 = vmatprep.subr.bf16.mxu0 %v336
    %1510 = vmatpush1.bf16.msra.mxu0 %v335
    %1511 = vmatprep.subr.bf16.mxu0 %v332
    %1512 = vmatpush1.bf16.msra.mxu0 %v331
    %1513 = vmatprep.subr.bf16.mxu0 %v328
    %1514 = vmatpush1.bf16.msra.mxu0 %v327
    %1515 = vmatprep.subr.bf16.mxu0 %v324
    %1516 = vmatpush1.bf16.msra.mxu0 %v323
    %1517 = vmatprep.subr.bf16.mxu0 %v320
    %1518 = vmatpush1.bf16.msra.mxu0 %v319
    %1519 = vmatprep.subr.bf16.mxu0 0
    %1520 = vmatpush2.bf16.msra.mxu0 0
    %1521 = vmatprep.subr.bf16.mxu0 0
    %1522 = vmatpush2.bf16.msra.mxu0 0
    %1523 = vmatprep.subr.bf16.mxu0 0
    %1524 = vmatpush2.bf16.msra.mxu0 0
    %1525 = vmatprep.subr.bf16.mxu0 0
    %1526 = vmatpush2.bf16.msra.mxu0 0
    %1527 = vmatprep.subr.bf16.mxu0 0
    %1528 = vmatpush2.bf16.msra.mxu0 0
    %1529 = vmatprep.subr.bf16.mxu0 0
    %1530 = vmatpush2.bf16.msra.mxu0 0
    %1531 = vmatprep.subr.bf16.mxu0 0
    %1532 = vmatpush2.bf16.msra.mxu0 0
    %1533 = vmatprep.subr.bf16.mxu0 0
    %1534 = vmatpush2.bf16.msra.mxu0 0
    %1535 = vmatprep.mubr.bf16.mxu0 0
    %1536 = vmatmul.mubr.bf16.gmra.mxu0 %v1373
    %v1537 = vpop.f32.mrf.mxu0
    %v1538 = vadd.f32 0.0, %v1537
    %v1539 = vpop.f32.mrf.mxu0
    %v1540 = vadd.f32 0.0, %v1539
    %v1541 = vpop.f32.mrf.mxu0
    %v1542 = vpop.f32.mrf.mxu0
    %1543 = vdwg.mxu0
    %1544 = vmatprep.subr.bf16.mxu0 %v350
    %1545 = vmatpush1.bf16.msra.mxu0 %v349
    %1546 = vmatprep.subr.bf16.mxu0 %v346
    %1547 = vmatpush1.bf16.msra.mxu0 %v345
    %1548 = vmatprep.subr.bf16.mxu0 %v342
    %1549 = vmatpush1.bf16.msra.mxu0 %v341
    %1550 = vmatprep.subr.bf16.mxu0 %v338
    %1551 = vmatpush1.bf16.msra.mxu0 %v337
    %1552 = vmatprep.subr.bf16.mxu0 %v334
    %1553 = vmatpush1.bf16.msra.mxu0 %v333
    %1554 = vmatprep.subr.bf16.mxu0 %v330
    %1555 = vmatpush1.bf16.msra.mxu0 %v329
    %1556 = vmatprep.subr.bf16.mxu0 %v326
    %1557 = vmatpush1.bf16.msra.mxu0 %v325
    %1558 = vmatprep.subr.bf16.mxu0 %v322
    %1559 = vmatpush1.bf16.msra.mxu0 %v321
    %1560 = vmatprep.subr.bf16.mxu0 0
    %1561 = vmatpush2.bf16.msra.mxu0 0
    %1562 = vmatprep.subr.bf16.mxu0 0
    %1563 = vmatpush2.bf16.msra.mxu0 0
    %1564 = vmatprep.subr.bf16.mxu0 0
    %1565 = vmatpush2.bf16.msra.mxu0 0
    %1566 = vmatprep.subr.bf16.mxu0 0
    %1567 = vmatpush2.bf16.msra.mxu0 0
    %1568 = vmatprep.subr.bf16.mxu0 0
    %1569 = vmatpush2.bf16.msra.mxu0 0
    %1570 = vmatprep.subr.bf16.mxu0 0
    %1571 = vmatpush2.bf16.msra.mxu0 0
    %1572 = vmatprep.subr.bf16.mxu0 0
    %1573 = vmatpush2.bf16.msra.mxu0 0
    %1574 = vmatprep.subr.bf16.mxu0 0
    %1575 = vmatpush2.bf16.msra.mxu0 0
    %1576 = vmatprep.mubr.bf16.mxu0 0
    %1577 = vmatmul.mubr.bf16.gmra.mxu0 %v1373
    %v1578 = vpop.f32.mrf.mxu0
    %v1579 = vadd.f32 0.0, %v1578
    %v1580 = vpop.f32.mrf.mxu0
    %v1581 = vadd.f32 0.0, %v1580
    %v1582 = vpop.f32.mrf.mxu0
    %v1583 = vpop.f32.mrf.mxu0
    %1584 = vdwg.mxu0
    %v1585 = vadd.f32 %v1499, %v1538
    %v1586 = vadd.f32 %v1500, %v1540
    %v1587 = vadd.f32 %v1501, %v1579
    %v1588 = vadd.f32 %v1502, %v1581
    %v1589 = vxor.u32 %v1585, 2147483648
    %v1590 = vmul.f32 %v1589, 1.442695
    %v1591 = vpow.pop %v1590
    %v1592 = vadd.f32 %v1591, 1.0
    %v1593 = vrcp.pop %v1592
    %v1594 = vmul.f32 1.0, %v1593
    %v1595 = vxor.u32 %v1586, 2147483648
    %v1596 = vmul.f32 %v1595, 1.442695
    %v1597 = vpow.pop %v1596
    %v1598 = vadd.f32 %v1597, 1.0
    %v1599 = vrcp.pop %v1598
    %v1600 = vmul.f32 1.0, %v1599
    %v1601 = vtanh.pop %v1587
    %v1602 = vxor.u32 %v1588, 2147483648
    %v1603 = vmul.f32 %v1602, 1.442695
    %v1604 = vpow.pop %v1603
    %v1605 = vadd.f32 %v1604, 1.0
    %v1606 = vrcp.pop %v1605
    %v1607 = vmul.f32 1.0, %v1606
    %v1608 = vmul.f32 %v1600, %v1370
    %v1609 = vmul.f32 %v1594, %v1601
    %v1610 = vadd.f32 %v1608, %v1609
    %v1611 = vtanh.pop %v1610
    %v1612 = vmul.f32 %v1607, %v1611
    %v1613 = vpack.c.bf16 %v1612, %v1612
    %s1614 = scalar_lea.vmem %s4, 16
    %1615 = vst [vmem:[%s1614] sm:$0xf] %v1613
    %s1616 = scalar_lea.vmem [#allocation7], 48
    %v1617 = vld [vmem:[%s1616] sm:$0xff]
    %v1618 = vld [vmem:[%s1616 + $0x8] sm:$0xff]
    %v1619 = vunpack.c.l.bf16 %v1617
    %v1620 = vunpack.c.h.bf16 %v1617
    %v1621 = vunpack.c.l.bf16 %v1618
    %v1622 = vunpack.c.h.bf16 %v1618
    %1623 = vmatprep.subr.bf16.mxu0 %v628
    %1624 = vmatpush1.bf16.msra.mxu0 %v627
    %1625 = vmatprep.subr.bf16.mxu0 %v624
    %1626 = vmatpush1.bf16.msra.mxu0 %v623
    %1627 = vmatprep.subr.bf16.mxu0 %v620
    %1628 = vmatpush1.bf16.msra.mxu0 %v619
    %1629 = vmatprep.subr.bf16.mxu0 %v616
    %1630 = vmatpush1.bf16.msra.mxu0 %v615
    %1631 = vmatprep.subr.bf16.mxu0 %v612
    %1632 = vmatpush1.bf16.msra.mxu0 %v611
    %1633 = vmatprep.subr.bf16.mxu0 %v608
    %1634 = vmatpush1.bf16.msra.mxu0 %v607
    %1635 = vmatprep.subr.bf16.mxu0 %v604
    %1636 = vmatpush1.bf16.msra.mxu0 %v603
    %1637 = vmatprep.subr.bf16.mxu0 %v600
    %1638 = vmatpush1.bf16.msra.mxu0 %v599
    %1639 = vmatprep.subr.bf16.mxu0 0
    %1640 = vmatpush2.bf16.msra.mxu0 0
    %1641 = vmatprep.subr.bf16.mxu0 0
    %1642 = vmatpush2.bf16.msra.mxu0 0
    %1643 = vmatprep.subr.bf16.mxu0 0
    %1644 = vmatpush2.bf16.msra.mxu0 0
    %1645 = vmatprep.subr.bf16.mxu0 0
    %1646 = vmatpush2.bf16.msra.mxu0 0
    %1647 = vmatprep.subr.bf16.mxu0 0
    %1648 = vmatpush2.bf16.msra.mxu0 0
    %1649 = vmatprep.subr.bf16.mxu0 0
    %1650 = vmatpush2.bf16.msra.mxu0 0
    %1651 = vmatprep.subr.bf16.mxu0 0
    %1652 = vmatpush2.bf16.msra.mxu0 0
    %1653 = vmatprep.subr.bf16.mxu0 0
    %1654 = vmatpush2.bf16.msra.mxu0 0
    %1655 = vmatprep.mubr.bf16.mxu0 0
    %1656 = vmatmul.mubr.bf16.gmra.mxu0 %v1493
    %v1657 = vpop.f32.mrf.mxu0
    %v1658 = vadd.f32 0.0, %v1657
    %v1659 = vpop.f32.mrf.mxu0
    %v1660 = vadd.f32 0.0, %v1659
    %v1661 = vpop.f32.mrf.mxu0
    %v1662 = vpop.f32.mrf.mxu0
    %1663 = vdwg.mxu0
    %1664 = vmatprep.subr.bf16.mxu0 %v630
    %1665 = vmatpush1.bf16.msra.mxu0 %v629
    %1666 = vmatprep.subr.bf16.mxu0 %v626
    %1667 = vmatpush1.bf16.msra.mxu0 %v625
    %1668 = vmatprep.subr.bf16.mxu0 %v622
    %1669 = vmatpush1.bf16.msra.mxu0 %v621
    %1670 = vmatprep.subr.bf16.mxu0 %v618
    %1671 = vmatpush1.bf16.msra.mxu0 %v617
    %1672 = vmatprep.subr.bf16.mxu0 %v614
    %1673 = vmatpush1.bf16.msra.mxu0 %v613
    %1674 = vmatprep.subr.bf16.mxu0 %v610
    %1675 = vmatpush1.bf16.msra.mxu0 %v609
    %1676 = vmatprep.subr.bf16.mxu0 %v606
    %1677 = vmatpush1.bf16.msra.mxu0 %v605
    %1678 = vmatprep.subr.bf16.mxu0 %v602
    %1679 = vmatpush1.bf16.msra.mxu0 %v601
    %1680 = vmatprep.subr.bf16.mxu0 0
    %1681 = vmatpush2.bf16.msra.mxu0 0
    %1682 = vmatprep.subr.bf16.mxu0 0
    %1683 = vmatpush2.bf16.msra.mxu0 0
    %1684 = vmatprep.subr.bf16.mxu0 0
    %1685 = vmatpush2.bf16.msra.mxu0 0
    %1686 = vmatprep.subr.bf16.mxu0 0
    %1687 = vmatpush2.bf16.msra.mxu0 0
    %1688 = vmatprep.subr.bf16.mxu0 0
    %1689 = vmatpush2.bf16.msra.mxu0 0
    %1690 = vmatprep.subr.bf16.mxu0 0
    %1691 = vmatpush2.bf16.msra.mxu0 0
    %1692 = vmatprep.subr.bf16.mxu0 0
    %1693 = vmatpush2.bf16.msra.mxu0 0
    %1694 = vmatprep.subr.bf16.mxu0 0
    %1695 = vmatpush2.bf16.msra.mxu0 0
    %1696 = vmatprep.mubr.bf16.mxu0 0
    %1697 = vmatmul.mubr.bf16.gmra.mxu0 %v1493
    %v1698 = vpop.f32.mrf.mxu0
    %v1699 = vadd.f32 0.0, %v1698
    %v1700 = vpop.f32.mrf.mxu0
    %v1701 = vadd.f32 0.0, %v1700
    %v1702 = vpop.f32.mrf.mxu0
    %v1703 = vpop.f32.mrf.mxu0
    %1704 = vdwg.mxu0
    %v1705 = vadd.f32 %v1619, %v1658
    %v1706 = vadd.f32 %v1620, %v1660
    %v1707 = vadd.f32 %v1621, %v1699
    %v1708 = vadd.f32 %v1622, %v1701
    %v1709 = vxor.u32 %v1705, 2147483648
    %v1710 = vmul.f32 %v1709, 1.442695
    %v1711 = vpow.pop %v1710
    %v1712 = vadd.f32 %v1711, 1.0
    %v1713 = vrcp.pop %v1712
    %v1714 = vmul.f32 1.0, %v1713
    %v1715 = vxor.u32 %v1706, 2147483648
    %v1716 = vmul.f32 %v1715, 1.442695
    %v1717 = vpow.pop %v1716
    %v1718 = vadd.f32 %v1717, 1.0
    %v1719 = vrcp.pop %v1718
    %v1720 = vmul.f32 1.0, %v1719
    %v1721 = vtanh.pop %v1707
    %v1722 = vxor.u32 %v1708, 2147483648
    %v1723 = vmul.f32 %v1722, 1.442695
    %v1724 = vpow.pop %v1723
    %v1725 = vadd.f32 %v1724, 1.0
    %v1726 = vrcp.pop %v1725
    %v1727 = vmul.f32 1.0, %v1726
    %v1728 = vmul.f32 %v1720, %v1490
    %v1729 = vmul.f32 %v1714, %v1721
    %v1730 = vadd.f32 %v1728, %v1729
    %v1731 = vtanh.pop %v1730
    %v1732 = vmul.f32 %v1727, %v1731
    %v1733 = vpack.c.bf16 %v1732, %v1732
    %s1734 = scalar_lea.vmem %s136, 12
    %1735 = vst [vmem:[%s1734] sm:$0xf] %v1733
    %s1736 = scalar_lea.vmem [#allocation6], 80
    %v1737 = vld [vmem:[%s1736] sm:$0xff]
    %v1738 = vld [vmem:[%s1736 + $0x8] sm:$0xff]
    %v1739 = vunpack.c.l.bf16 %v1737
    %v1740 = vunpack.c.h.bf16 %v1737
    %v1741 = vunpack.c.l.bf16 %v1738
    %v1742 = vunpack.c.h.bf16 %v1738
    %1743 = vmatprep.subr.bf16.mxu0 %v348
    %1744 = vmatpush1.bf16.msra.mxu0 %v347
    %1745 = vmatprep.subr.bf16.mxu0 %v344
    %1746 = vmatpush1.bf16.msra.mxu0 %v343
    %1747 = vmatprep.subr.bf16.mxu0 %v340
    %1748 = vmatpush1.bf16.msra.mxu0 %v339
    %1749 = vmatprep.subr.bf16.mxu0 %v336
    %1750 = vmatpush1.bf16.msra.mxu0 %v335
    %1751 = vmatprep.subr.bf16.mxu0 %v332
    %1752 = vmatpush1.bf16.msra.mxu0 %v331
    %1753 = vmatprep.subr.bf16.mxu0 %v328
    %1754 = vmatpush1.bf16.msra.mxu0 %v327
    %1755 = vmatprep.subr.bf16.mxu0 %v324
    %1756 = vmatpush1.bf16.msra.mxu0 %v323
    %1757 = vmatprep.subr.bf16.mxu0 %v320
    %1758 = vmatpush1.bf16.msra.mxu0 %v319
    %1759 = vmatprep.subr.bf16.mxu0 0
    %1760 = vmatpush2.bf16.msra.mxu0 0
    %1761 = vmatprep.subr.bf16.mxu0 0
    %1762 = vmatpush2.bf16.msra.mxu0 0
    %1763 = vmatprep.subr.bf16.mxu0 0
    %1764 = vmatpush2.bf16.msra.mxu0 0
    %1765 = vmatprep.subr.bf16.mxu0 0
    %1766 = vmatpush2.bf16.msra.mxu0 0
    %1767 = vmatprep.subr.bf16.mxu0 0
    %1768 = vmatpush2.bf16.msra.mxu0 0
    %1769 = vmatprep.subr.bf16.mxu0 0
    %1770 = vmatpush2.bf16.msra.mxu0 0
    %1771 = vmatprep.subr.bf16.mxu0 0
    %1772 = vmatpush2.bf16.msra.mxu0 0
    %1773 = vmatprep.subr.bf16.mxu0 0
    %1774 = vmatpush2.bf16.msra.mxu0 0
    %1775 = vmatprep.mubr.bf16.mxu0 0
    %1776 = vmatmul.mubr.bf16.gmra.mxu0 %v1613
    %v1777 = vpop.f32.mrf.mxu0
    %v1778 = vadd.f32 0.0, %v1777
    %v1779 = vpop.f32.mrf.mxu0
    %v1780 = vadd.f32 0.0, %v1779
    %v1781 = vpop.f32.mrf.mxu0
    %v1782 = vpop.f32.mrf.mxu0
    %1783 = vdwg.mxu0
    %1784 = vmatprep.subr.bf16.mxu0 %v350
    %1785 = vmatpush1.bf16.msra.mxu0 %v349
    %1786 = vmatprep.subr.bf16.mxu0 %v346
    %1787 = vmatpush1.bf16.msra.mxu0 %v345
    %1788 = vmatprep.subr.bf16.mxu0 %v342
    %1789 = vmatpush1.bf16.msra.mxu0 %v341
    %1790 = vmatprep.subr.bf16.mxu0 %v338
    %1791 = vmatpush1.bf16.msra.mxu0 %v337
    %1792 = vmatprep.subr.bf16.mxu0 %v334
    %1793 = vmatpush1.bf16.msra.mxu0 %v333
    %1794 = vmatprep.subr.bf16.mxu0 %v330
    %1795 = vmatpush1.bf16.msra.mxu0 %v329
    %1796 = vmatprep.subr.bf16.mxu0 %v326
    %1797 = vmatpush1.bf16.msra.mxu0 %v325
    %1798 = vmatprep.subr.bf16.mxu0 %v322
    %1799 = vmatpush1.bf16.msra.mxu0 %v321
    %1800 = vmatprep.subr.bf16.mxu0 0
    %1801 = vmatpush2.bf16.msra.mxu0 0
    %1802 = vmatprep.subr.bf16.mxu0 0
    %1803 = vmatpush2.bf16.msra.mxu0 0
    %1804 = vmatprep.subr.bf16.mxu0 0
    %1805 = vmatpush2.bf16.msra.mxu0 0
    %1806 = vmatprep.subr.bf16.mxu0 0
    %1807 = vmatpush2.bf16.msra.mxu0 0
    %1808 = vmatprep.subr.bf16.mxu0 0
    %1809 = vmatpush2.bf16.msra.mxu0 0
    %1810 = vmatprep.subr.bf16.mxu0 0
    %1811 = vmatpush2.bf16.msra.mxu0 0
    %1812 = vmatprep.subr.bf16.mxu0 0
    %1813 = vmatpush2.bf16.msra.mxu0 0
    %1814 = vmatprep.subr.bf16.mxu0 0
    %1815 = vmatpush2.bf16.msra.mxu0 0
    %1816 = vmatprep.mubr.bf16.mxu0 0
    %1817 = vmatmul.mubr.bf16.gmra.mxu0 %v1613
    %v1818 = vpop.f32.mrf.mxu0
    %v1819 = vadd.f32 0.0, %v1818
    %v1820 = vpop.f32.mrf.mxu0
    %v1821 = vadd.f32 0.0, %v1820
    %v1822 = vpop.f32.mrf.mxu0
    %v1823 = vpop.f32.mrf.mxu0
    %1824 = vdwg.mxu0
    %v1825 = vadd.f32 %v1739, %v1778
    %v1826 = vadd.f32 %v1740, %v1780
    %v1827 = vadd.f32 %v1741, %v1819
    %v1828 = vadd.f32 %v1742, %v1821
    %v1829 = vxor.u32 %v1825, 2147483648
    %v1830 = vmul.f32 %v1829, 1.442695
    %v1831 = vpow.pop %v1830
    %v1832 = vadd.f32 %v1831, 1.0
    %v1833 = vrcp.pop %v1832
    %v1834 = vmul.f32 1.0, %v1833
    %v1835 = vxor.u32 %v1826, 2147483648
    %v1836 = vmul.f32 %v1835, 1.442695
    %v1837 = vpow.pop %v1836
    %v1838 = vadd.f32 %v1837, 1.0
    %v1839 = vrcp.pop %v1838
    %v1840 = vmul.f32 1.0, %v1839
    %v1841 = vtanh.pop %v1827
    %v1842 = vxor.u32 %v1828, 2147483648
    %v1843 = vmul.f32 %v1842, 1.442695
    %v1844 = vpow.pop %v1843
    %v1845 = vadd.f32 %v1844, 1.0
    %v1846 = vrcp.pop %v1845
    %v1847 = vmul.f32 1.0, %v1846
    %v1848 = vmul.f32 %v1840, %v1610
    %v1849 = vmul.f32 %v1834, %v1841
    %v1850 = vadd.f32 %v1848, %v1849
    %v1851 = vtanh.pop %v1850
    %v1852 = vmul.f32 %v1847, %v1851
    %v1853 = vpack.c.bf16 %v1852, %v1852
    %s1854 = scalar_lea.vmem %s4, 20
    %1855 = vst [vmem:[%s1854] sm:$0xf] %v1853
    %s1856 = scalar_lea.vmem [#allocation7], 32
    %v1857 = vld [vmem:[%s1856] sm:$0xff]
    %v1858 = vld [vmem:[%s1856 + $0x8] sm:$0xff]
    %v1859 = vunpack.c.l.bf16 %v1857
    %v1860 = vunpack.c.h.bf16 %v1857
    %v1861 = vunpack.c.l.bf16 %v1858
    %v1862 = vunpack.c.h.bf16 %v1858
    %1863 = vmatprep.subr.bf16.mxu0 %v628
    %1864 = vmatpush1.bf16.msra.mxu0 %v627
    %1865 = vmatprep.subr.bf16.mxu0 %v624
    %1866 = vmatpush1.bf16.msra.mxu0 %v623
    %1867 = vmatprep.subr.bf16.mxu0 %v620
    %1868 = vmatpush1.bf16.msra.mxu0 %v619
    %1869 = vmatprep.subr.bf16.mxu0 %v616
    %1870 = vmatpush1.bf16.msra.mxu0 %v615
    %1871 = vmatprep.subr.bf16.mxu0 %v612
    %1872 = vmatpush1.bf16.msra.mxu0 %v611
    %1873 = vmatprep.subr.bf16.mxu0 %v608
    %1874 = vmatpush1.bf16.msra.mxu0 %v607
    %1875 = vmatprep.subr.bf16.mxu0 %v604
    %1876 = vmatpush1.bf16.msra.mxu0 %v603
    %1877 = vmatprep.subr.bf16.mxu0 %v600
    %1878 = vmatpush1.bf16.msra.mxu0 %v599
    %1879 = vmatprep.subr.bf16.mxu0 0
    %1880 = vmatpush2.bf16.msra.mxu0 0
    %1881 = vmatprep.subr.bf16.mxu0 0
    %1882 = vmatpush2.bf16.msra.mxu0 0
    %1883 = vmatprep.subr.bf16.mxu0 0
    %1884 = vmatpush2.bf16.msra.mxu0 0
    %1885 = vmatprep.subr.bf16.mxu0 0
    %1886 = vmatpush2.bf16.msra.mxu0 0
    %1887 = vmatprep.subr.bf16.mxu0 0
    %1888 = vmatpush2.bf16.msra.mxu0 0
    %1889 = vmatprep.subr.bf16.mxu0 0
    %1890 = vmatpush2.bf16.msra.mxu0 0
    %1891 = vmatprep.subr.bf16.mxu0 0
    %1892 = vmatpush2.bf16.msra.mxu0 0
    %1893 = vmatprep.subr.bf16.mxu0 0
    %1894 = vmatpush2.bf16.msra.mxu0 0
    %1895 = vmatprep.mubr.bf16.mxu0 0
    %1896 = vmatmul.mubr.bf16.gmra.mxu0 %v1733
    %v1897 = vpop.f32.mrf.mxu0
    %v1898 = vadd.f32 0.0, %v1897
    %v1899 = vpop.f32.mrf.mxu0
    %v1900 = vadd.f32 0.0, %v1899
    %v1901 = vpop.f32.mrf.mxu0
    %v1902 = vpop.f32.mrf.mxu0
    %1903 = vdwg.mxu0
    %1904 = vmatprep.subr.bf16.mxu0 %v630
    %1905 = vmatpush1.bf16.msra.mxu0 %v629
    %1906 = vmatprep.subr.bf16.mxu0 %v626
    %1907 = vmatpush1.bf16.msra.mxu0 %v625
    %1908 = vmatprep.subr.bf16.mxu0 %v622
    %1909 = vmatpush1.bf16.msra.mxu0 %v621
    %1910 = vmatprep.subr.bf16.mxu0 %v618
    %1911 = vmatpush1.bf16.msra.mxu0 %v617
    %1912 = vmatprep.subr.bf16.mxu0 %v614
    %1913 = vmatpush1.bf16.msra.mxu0 %v613
    %1914 = vmatprep.subr.bf16.mxu0 %v610
    %1915 = vmatpush1.bf16.msra.mxu0 %v609
    %1916 = vmatprep.subr.bf16.mxu0 %v606
    %1917 = vmatpush1.bf16.msra.mxu0 %v605
    %1918 = vmatprep.subr.bf16.mxu0 %v602
    %1919 = vmatpush1.bf16.msra.mxu0 %v601
    %1920 = vmatprep.subr.bf16.mxu0 0
    %1921 = vmatpush2.bf16.msra.mxu0 0
    %1922 = vmatprep.subr.bf16.mxu0 0
    %1923 = vmatpush2.bf16.msra.mxu0 0
    %1924 = vmatprep.subr.bf16.mxu0 0
    %1925 = vmatpush2.bf16.msra.mxu0 0
    %1926 = vmatprep.subr.bf16.mxu0 0
    %1927 = vmatpush2.bf16.msra.mxu0 0
    %1928 = vmatprep.subr.bf16.mxu0 0
    %1929 = vmatpush2.bf16.msra.mxu0 0
    %1930 = vmatprep.subr.bf16.mxu0 0
    %1931 = vmatpush2.bf16.msra.mxu0 0
    %1932 = vmatprep.subr.bf16.mxu0 0
    %1933 = vmatpush2.bf16.msra.mxu0 0
    %1934 = vmatprep.subr.bf16.mxu0 0
    %1935 = vmatpush2.bf16.msra.mxu0 0
    %1936 = vmatprep.mubr.bf16.mxu0 0
    %1937 = vmatmul.mubr.bf16.gmra.mxu0 %v1733
    %v1938 = vpop.f32.mrf.mxu0
    %v1939 = vadd.f32 0.0, %v1938
    %v1940 = vpop.f32.mrf.mxu0
    %v1941 = vadd.f32 0.0, %v1940
    %v1942 = vpop.f32.mrf.mxu0
    %v1943 = vpop.f32.mrf.mxu0
    %1944 = vdwg.mxu0
    %v1945 = vadd.f32 %v1859, %v1898
    %v1946 = vadd.f32 %v1860, %v1900
    %v1947 = vadd.f32 %v1861, %v1939
    %v1948 = vadd.f32 %v1862, %v1941
    %v1949 = vxor.u32 %v1945, 2147483648
    %v1950 = vmul.f32 %v1949, 1.442695
    %v1951 = vpow.pop %v1950
    %v1952 = vadd.f32 %v1951, 1.0
    %v1953 = vrcp.pop %v1952
    %v1954 = vmul.f32 1.0, %v1953
    %v1955 = vxor.u32 %v1946, 2147483648
    %v1956 = vmul.f32 %v1955, 1.442695
    %v1957 = vpow.pop %v1956
    %v1958 = vadd.f32 %v1957, 1.0
    %v1959 = vrcp.pop %v1958
    %v1960 = vmul.f32 1.0, %v1959
    %v1961 = vtanh.pop %v1947
    %v1962 = vxor.u32 %v1948, 2147483648
    %v1963 = vmul.f32 %v1962, 1.442695
    %v1964 = vpow.pop %v1963
    %v1965 = vadd.f32 %v1964, 1.0
    %v1966 = vrcp.pop %v1965
    %v1967 = vmul.f32 1.0, %v1966
    %v1968 = vmul.f32 %v1960, %v1730
    %v1969 = vmul.f32 %v1954, %v1961
    %v1970 = vadd.f32 %v1968, %v1969
    %v1971 = vtanh.pop %v1970
    %v1972 = vmul.f32 %v1967, %v1971
    %v1973 = vpack.c.bf16 %v1972, %v1972
    %s1974 = scalar_lea.vmem %s136, 8
    %1975 = vst [vmem:[%s1974] sm:$0xf] %v1973
    %s1976 = scalar_lea.vmem [#allocation6], 96
    %v1977 = vld [vmem:[%s1976] sm:$0xff]
    %v1978 = vld [vmem:[%s1976 + $0x8] sm:$0xff]
    %v1979 = vunpack.c.l.bf16 %v1977
    %v1980 = vunpack.c.h.bf16 %v1977
    %v1981 = vunpack.c.l.bf16 %v1978
    %v1982 = vunpack.c.h.bf16 %v1978
    %1983 = vmatprep.subr.bf16.mxu0 %v348
    %1984 = vmatpush1.bf16.msra.mxu0 %v347
    %1985 = vmatprep.subr.bf16.mxu0 %v344
    %1986 = vmatpush1.bf16.msra.mxu0 %v343
    %1987 = vmatprep.subr.bf16.mxu0 %v340
    %1988 = vmatpush1.bf16.msra.mxu0 %v339
    %1989 = vmatprep.subr.bf16.mxu0 %v336
    %1990 = vmatpush1.bf16.msra.mxu0 %v335
    %1991 = vmatprep.subr.bf16.mxu0 %v332
    %1992 = vmatpush1.bf16.msra.mxu0 %v331
    %1993 = vmatprep.subr.bf16.mxu0 %v328
    %1994 = vmatpush1.bf16.msra.mxu0 %v327
    %1995 = vmatprep.subr.bf16.mxu0 %v324
    %1996 = vmatpush1.bf16.msra.mxu0 %v323
    %1997 = vmatprep.subr.bf16.mxu0 %v320
    %1998 = vmatpush1.bf16.msra.mxu0 %v319
    %1999 = vmatprep.subr.bf16.mxu0 0
    %2000 = vmatpush2.bf16.msra.mxu0 0
    %2001 = vmatprep.subr.bf16.mxu0 0
    %2002 = vmatpush2.bf16.msra.mxu0 0
    %2003 = vmatprep.subr.bf16.mxu0 0
    %2004 = vmatpush2.bf16.msra.mxu0 0
    %2005 = vmatprep.subr.bf16.mxu0 0
    %2006 = vmatpush2.bf16.msra.mxu0 0
    %2007 = vmatprep.subr.bf16.mxu0 0
    %2008 = vmatpush2.bf16.msra.mxu0 0
    %2009 = vmatprep.subr.bf16.mxu0 0
    %2010 = vmatpush2.bf16.msra.mxu0 0
    %2011 = vmatprep.subr.bf16.mxu0 0
    %2012 = vmatpush2.bf16.msra.mxu0 0
    %2013 = vmatprep.subr.bf16.mxu0 0
    %2014 = vmatpush2.bf16.msra.mxu0 0
    %2015 = vmatprep.mubr.bf16.mxu0 0
    %2016 = vmatmul.mubr.bf16.gmra.mxu0 %v1853
    %v2017 = vpop.f32.mrf.mxu0
    %v2018 = vadd.f32 0.0, %v2017
    %v2019 = vpop.f32.mrf.mxu0
    %v2020 = vadd.f32 0.0, %v2019
    %v2021 = vpop.f32.mrf.mxu0
    %v2022 = vpop.f32.mrf.mxu0
    %2023 = vdwg.mxu0
    %2024 = vmatprep.subr.bf16.mxu0 %v350
    %2025 = vmatpush1.bf16.msra.mxu0 %v349
    %2026 = vmatprep.subr.bf16.mxu0 %v346
    %2027 = vmatpush1.bf16.msra.mxu0 %v345
    %2028 = vmatprep.subr.bf16.mxu0 %v342
    %2029 = vmatpush1.bf16.msra.mxu0 %v341
    %2030 = vmatprep.subr.bf16.mxu0 %v338
    %2031 = vmatpush1.bf16.msra.mxu0 %v337
    %2032 = vmatprep.subr.bf16.mxu0 %v334
    %2033 = vmatpush1.bf16.msra.mxu0 %v333
    %2034 = vmatprep.subr.bf16.mxu0 %v330
    %2035 = vmatpush1.bf16.msra.mxu0 %v329
    %2036 = vmatprep.subr.bf16.mxu0 %v326
    %2037 = vmatpush1.bf16.msra.mxu0 %v325
    %2038 = vmatprep.subr.bf16.mxu0 %v322
    %2039 = vmatpush1.bf16.msra.mxu0 %v321
    %2040 = vmatprep.subr.bf16.mxu0 0
    %2041 = vmatpush2.bf16.msra.mxu0 0
    %2042 = vmatprep.subr.bf16.mxu0 0
    %2043 = vmatpush2.bf16.msra.mxu0 0
    %2044 = vmatprep.subr.bf16.mxu0 0
    %2045 = vmatpush2.bf16.msra.mxu0 0
    %2046 = vmatprep.subr.bf16.mxu0 0
    %2047 = vmatpush2.bf16.msra.mxu0 0
    %2048 = vmatprep.subr.bf16.mxu0 0
    %2049 = vmatpush2.bf16.msra.mxu0 0
    %2050 = vmatprep.subr.bf16.mxu0 0
    %2051 = vmatpush2.bf16.msra.mxu0 0
    %2052 = vmatprep.subr.bf16.mxu0 0
    %2053 = vmatpush2.bf16.msra.mxu0 0
    %2054 = vmatprep.subr.bf16.mxu0 0
    %2055 = vmatpush2.bf16.msra.mxu0 0
    %2056 = vmatprep.mubr.bf16.mxu0 0
    %2057 = vmatmul.mubr.bf16.gmra.mxu0 %v1853
    %v2058 = vpop.f32.mrf.mxu0
    %v2059 = vadd.f32 0.0, %v2058
    %v2060 = vpop.f32.mrf.mxu0
    %v2061 = vadd.f32 0.0, %v2060
    %v2062 = vpop.f32.mrf.mxu0
    %v2063 = vpop.f32.mrf.mxu0
    %2064 = vdwg.mxu0
    %v2065 = vadd.f32 %v1979, %v2018
    %v2066 = vadd.f32 %v1980, %v2020
    %v2067 = vadd.f32 %v1981, %v2059
    %v2068 = vadd.f32 %v1982, %v2061
    %v2069 = vxor.u32 %v2065, 2147483648
    %v2070 = vmul.f32 %v2069, 1.442695
    %v2071 = vpow.pop %v2070
    %v2072 = vadd.f32 %v2071, 1.0
    %v2073 = vrcp.pop %v2072
    %v2074 = vmul.f32 1.0, %v2073
    %v2075 = vxor.u32 %v2066, 2147483648
    %v2076 = vmul.f32 %v2075, 1.442695
    %v2077 = vpow.pop %v2076
    %v2078 = vadd.f32 %v2077, 1.0
    %v2079 = vrcp.pop %v2078
    %v2080 = vmul.f32 1.0, %v2079
    %v2081 = vtanh.pop %v2067
    %v2082 = vxor.u32 %v2068, 2147483648
    %v2083 = vmul.f32 %v2082, 1.442695
    %v2084 = vpow.pop %v2083
    %v2085 = vadd.f32 %v2084, 1.0
    %v2086 = vrcp.pop %v2085
    %v2087 = vmul.f32 1.0, %v2086
    %v2088 = vmul.f32 %v2080, %v1850
    %v2089 = vmul.f32 %v2074, %v2081
    %v2090 = vadd.f32 %v2088, %v2089
    %v2091 = vtanh.pop %v2090
    %v2092 = vmul.f32 %v2087, %v2091
    %v2093 = vpack.c.bf16 %v2092, %v2092
    %s2094 = scalar_lea.vmem %s4, 24
    %2095 = vst [vmem:[%s2094] sm:$0xf] %v2093
    %s2096 = scalar_lea.vmem [#allocation7], 16
    %v2097 = vld [vmem:[%s2096] sm:$0xff]
    %v2098 = vld [vmem:[%s2096 + $0x8] sm:$0xff]
    %v2099 = vunpack.c.l.bf16 %v2097
    %v2100 = vunpack.c.h.bf16 %v2097
    %v2101 = vunpack.c.l.bf16 %v2098
    %v2102 = vunpack.c.h.bf16 %v2098
    %2103 = vmatprep.subr.bf16.mxu0 %v628
    %2104 = vmatpush1.bf16.msra.mxu0 %v627
    %2105 = vmatprep.subr.bf16.mxu0 %v624
    %2106 = vmatpush1.bf16.msra.mxu0 %v623
    %2107 = vmatprep.subr.bf16.mxu0 %v620
    %2108 = vmatpush1.bf16.msra.mxu0 %v619
    %2109 = vmatprep.subr.bf16.mxu0 %v616
    %2110 = vmatpush1.bf16.msra.mxu0 %v615
    %2111 = vmatprep.subr.bf16.mxu0 %v612
    %2112 = vmatpush1.bf16.msra.mxu0 %v611
    %2113 = vmatprep.subr.bf16.mxu0 %v608
    %2114 = vmatpush1.bf16.msra.mxu0 %v607
    %2115 = vmatprep.subr.bf16.mxu0 %v604
    %2116 = vmatpush1.bf16.msra.mxu0 %v603
    %2117 = vmatprep.subr.bf16.mxu0 %v600
    %2118 = vmatpush1.bf16.msra.mxu0 %v599
    %2119 = vmatprep.subr.bf16.mxu0 0
    %2120 = vmatpush2.bf16.msra.mxu0 0
    %2121 = vmatprep.subr.bf16.mxu0 0
    %2122 = vmatpush2.bf16.msra.mxu0 0
    %2123 = vmatprep.subr.bf16.mxu0 0
    %2124 = vmatpush2.bf16.msra.mxu0 0
    %2125 = vmatprep.subr.bf16.mxu0 0
    %2126 = vmatpush2.bf16.msra.mxu0 0
    %2127 = vmatprep.subr.bf16.mxu0 0
    %2128 = vmatpush2.bf16.msra.mxu0 0
    %2129 = vmatprep.subr.bf16.mxu0 0
    %2130 = vmatpush2.bf16.msra.mxu0 0
    %2131 = vmatprep.subr.bf16.mxu0 0
    %2132 = vmatpush2.bf16.msra.mxu0 0
    %2133 = vmatprep.subr.bf16.mxu0 0
    %2134 = vmatpush2.bf16.msra.mxu0 0
    %2135 = vmatprep.mubr.bf16.mxu0 0
    %2136 = vmatmul.mubr.bf16.gmra.mxu0 %v1973
    %v2137 = vpop.f32.mrf.mxu0
    %v2138 = vadd.f32 0.0, %v2137
    %v2139 = vpop.f32.mrf.mxu0
    %v2140 = vadd.f32 0.0, %v2139
    %v2141 = vpop.f32.mrf.mxu0
    %v2142 = vpop.f32.mrf.mxu0
    %2143 = vdwg.mxu0
    %2144 = vmatprep.subr.bf16.mxu0 %v630
    %2145 = vmatpush1.bf16.msra.mxu0 %v629
    %2146 = vmatprep.subr.bf16.mxu0 %v626
    %2147 = vmatpush1.bf16.msra.mxu0 %v625
    %2148 = vmatprep.subr.bf16.mxu0 %v622
    %2149 = vmatpush1.bf16.msra.mxu0 %v621
    %2150 = vmatprep.subr.bf16.mxu0 %v618
    %2151 = vmatpush1.bf16.msra.mxu0 %v617
    %2152 = vmatprep.subr.bf16.mxu0 %v614
    %2153 = vmatpush1.bf16.msra.mxu0 %v613
    %2154 = vmatprep.subr.bf16.mxu0 %v610
    %2155 = vmatpush1.bf16.msra.mxu0 %v609
    %2156 = vmatprep.subr.bf16.mxu0 %v606
    %2157 = vmatpush1.bf16.msra.mxu0 %v605
    %2158 = vmatprep.subr.bf16.mxu0 %v602
    %2159 = vmatpush1.bf16.msra.mxu0 %v601
    %2160 = vmatprep.subr.bf16.mxu0 0
    %2161 = vmatpush2.bf16.msra.mxu0 0
    %2162 = vmatprep.subr.bf16.mxu0 0
    %2163 = vmatpush2.bf16.msra.mxu0 0
    %2164 = vmatprep.subr.bf16.mxu0 0
    %2165 = vmatpush2.bf16.msra.mxu0 0
    %2166 = vmatprep.subr.bf16.mxu0 0
    %2167 = vmatpush2.bf16.msra.mxu0 0
    %2168 = vmatprep.subr.bf16.mxu0 0
    %2169 = vmatpush2.bf16.msra.mxu0 0
    %2170 = vmatprep.subr.bf16.mxu0 0
    %2171 = vmatpush2.bf16.msra.mxu0 0
    %2172 = vmatprep.subr.bf16.mxu0 0
    %2173 = vmatpush2.bf16.msra.mxu0 0
    %2174 = vmatprep.subr.bf16.mxu0 0
    %2175 = vmatpush2.bf16.msra.mxu0 0
    %2176 = vmatprep.mubr.bf16.mxu0 0
    %2177 = vmatmul.mubr.bf16.gmra.mxu0 %v1973
    %v2178 = vpop.f32.mrf.mxu0
    %v2179 = vadd.f32 0.0, %v2178
    %v2180 = vpop.f32.mrf.mxu0
    %v2181 = vadd.f32 0.0, %v2180
    %v2182 = vpop.f32.mrf.mxu0
    %v2183 = vpop.f32.mrf.mxu0
    %2184 = vdwg.mxu0
    %v2185 = vadd.f32 %v2099, %v2138
    %v2186 = vadd.f32 %v2100, %v2140
    %v2187 = vadd.f32 %v2101, %v2179
    %v2188 = vadd.f32 %v2102, %v2181
    %v2189 = vxor.u32 %v2185, 2147483648
    %v2190 = vmul.f32 %v2189, 1.442695
    %v2191 = vpow.pop %v2190
    %v2192 = vadd.f32 %v2191, 1.0
    %v2193 = vrcp.pop %v2192
    %v2194 = vmul.f32 1.0, %v2193
    %v2195 = vxor.u32 %v2186, 2147483648
    %v2196 = vmul.f32 %v2195, 1.442695
    %v2197 = vpow.pop %v2196
    %v2198 = vadd.f32 %v2197, 1.0
    %v2199 = vrcp.pop %v2198
    %v2200 = vmul.f32 1.0, %v2199
    %v2201 = vtanh.pop %v2187
    %v2202 = vxor.u32 %v2188, 2147483648
    %v2203 = vmul.f32 %v2202, 1.442695
    %v2204 = vpow.pop %v2203
    %v2205 = vadd.f32 %v2204, 1.0
    %v2206 = vrcp.pop %v2205
    %v2207 = vmul.f32 1.0, %v2206
    %v2208 = vmul.f32 %v2200, %v1970
    %v2209 = vmul.f32 %v2194, %v2201
    %v2210 = vadd.f32 %v2208, %v2209
    %v2211 = vtanh.pop %v2210
    %v2212 = vmul.f32 %v2207, %v2211
    %v2213 = vpack.c.bf16 %v2212, %v2212
    %s2214 = scalar_lea.vmem %s136, 4
    %2215 = vst [vmem:[%s2214] sm:$0xf] %v2213
    %s2216 = scalar_lea.vmem [#allocation6], 112
    %v2217 = vld [vmem:[%s2216] sm:$0xff]
    %v2218 = vld [vmem:[%s2216 + $0x8] sm:$0xff]
    %v2219 = vunpack.c.l.bf16 %v2217
    %v2220 = vunpack.c.h.bf16 %v2217
    %v2221 = vunpack.c.l.bf16 %v2218
    %v2222 = vunpack.c.h.bf16 %v2218
    %2223 = vmatprep.subr.bf16.mxu0 %v348
    %2224 = vmatpush1.bf16.msra.mxu0 %v347
    %2225 = vmatprep.subr.bf16.mxu0 %v344
    %2226 = vmatpush1.bf16.msra.mxu0 %v343
    %2227 = vmatprep.subr.bf16.mxu0 %v340
    %2228 = vmatpush1.bf16.msra.mxu0 %v339
    %2229 = vmatprep.subr.bf16.mxu0 %v336
    %2230 = vmatpush1.bf16.msra.mxu0 %v335
    %2231 = vmatprep.subr.bf16.mxu0 %v332
    %2232 = vmatpush1.bf16.msra.mxu0 %v331
    %2233 = vmatprep.subr.bf16.mxu0 %v328
    %2234 = vmatpush1.bf16.msra.mxu0 %v327
    %2235 = vmatprep.subr.bf16.mxu0 %v324
    %2236 = vmatpush1.bf16.msra.mxu0 %v323
    %2237 = vmatprep.subr.bf16.mxu0 %v320
    %2238 = vmatpush1.bf16.msra.mxu0 %v319
    %2239 = vmatprep.subr.bf16.mxu0 0
    %2240 = vmatpush2.bf16.msra.mxu0 0
    %2241 = vmatprep.subr.bf16.mxu0 0
    %2242 = vmatpush2.bf16.msra.mxu0 0
    %2243 = vmatprep.subr.bf16.mxu0 0
    %2244 = vmatpush2.bf16.msra.mxu0 0
    %2245 = vmatprep.subr.bf16.mxu0 0
    %2246 = vmatpush2.bf16.msra.mxu0 0
    %2247 = vmatprep.subr.bf16.mxu0 0
    %2248 = vmatpush2.bf16.msra.mxu0 0
    %2249 = vmatprep.subr.bf16.mxu0 0
    %2250 = vmatpush2.bf16.msra.mxu0 0
    %2251 = vmatprep.subr.bf16.mxu0 0
    %2252 = vmatpush2.bf16.msra.mxu0 0
    %2253 = vmatprep.subr.bf16.mxu0 0
    %2254 = vmatpush2.bf16.msra.mxu0 0
    %2255 = vmatprep.mubr.bf16.mxu0 0
    %2256 = vmatmul.mubr.bf16.gmra.mxu0 %v2093
    %v2257 = vpop.f32.mrf.mxu0
    %v2258 = vadd.f32 0.0, %v2257
    %v2259 = vpop.f32.mrf.mxu0
    %v2260 = vadd.f32 0.0, %v2259
    %v2261 = vpop.f32.mrf.mxu0
    %v2262 = vpop.f32.mrf.mxu0
    %2263 = vdwg.mxu0
    %2264 = vmatprep.subr.bf16.mxu0 %v350
    %2265 = vmatpush1.bf16.msra.mxu0 %v349
    %2266 = vmatprep.subr.bf16.mxu0 %v346
    %2267 = vmatpush1.bf16.msra.mxu0 %v345
    %2268 = vmatprep.subr.bf16.mxu0 %v342
    %2269 = vmatpush1.bf16.msra.mxu0 %v341
    %2270 = vmatprep.subr.bf16.mxu0 %v338
    %2271 = vmatpush1.bf16.msra.mxu0 %v337
    %2272 = vmatprep.subr.bf16.mxu0 %v334
    %2273 = vmatpush1.bf16.msra.mxu0 %v333
    %2274 = vmatprep.subr.bf16.mxu0 %v330
    %2275 = vmatpush1.bf16.msra.mxu0 %v329
    %2276 = vmatprep.subr.bf16.mxu0 %v326
    %2277 = vmatpush1.bf16.msra.mxu0 %v325
    %2278 = vmatprep.subr.bf16.mxu0 %v322
    %2279 = vmatpush1.bf16.msra.mxu0 %v321
    %2280 = vmatprep.subr.bf16.mxu0 0
    %2281 = vmatpush2.bf16.msra.mxu0 0
    %2282 = vmatprep.subr.bf16.mxu0 0
    %2283 = vmatpush2.bf16.msra.mxu0 0
    %2284 = vmatprep.subr.bf16.mxu0 0
    %2285 = vmatpush2.bf16.msra.mxu0 0
    %2286 = vmatprep.subr.bf16.mxu0 0
    %2287 = vmatpush2.bf16.msra.mxu0 0
    %2288 = vmatprep.subr.bf16.mxu0 0
    %2289 = vmatpush2.bf16.msra.mxu0 0
    %2290 = vmatprep.subr.bf16.mxu0 0
    %2291 = vmatpush2.bf16.msra.mxu0 0
    %2292 = vmatprep.subr.bf16.mxu0 0
    %2293 = vmatpush2.bf16.msra.mxu0 0
    %2294 = vmatprep.subr.bf16.mxu0 0
    %2295 = vmatpush2.bf16.msra.mxu0 0
    %2296 = vmatprep.mubr.bf16.mxu0 0
    %2297 = vmatmul.mubr.bf16.gmra.mxu0 %v2093
    %v2298 = vpop.f32.mrf.mxu0
    %v2299 = vadd.f32 0.0, %v2298
    %v2300 = vpop.f32.mrf.mxu0
    %v2301 = vadd.f32 0.0, %v2300
    %v2302 = vpop.f32.mrf.mxu0
    %v2303 = vpop.f32.mrf.mxu0
    %2304 = vdwg.mxu0
    %v2305 = vadd.f32 %v2219, %v2258
    %v2306 = vadd.f32 %v2220, %v2260
    %v2307 = vadd.f32 %v2221, %v2299
    %v2308 = vadd.f32 %v2222, %v2301
    %v2309 = vxor.u32 %v2305, 2147483648
    %v2310 = vmul.f32 %v2309, 1.442695
    %v2311 = vpow.pop %v2310
    %v2312 = vadd.f32 %v2311, 1.0
    %v2313 = vrcp.pop %v2312
    %v2314 = vmul.f32 1.0, %v2313
    %v2315 = vxor.u32 %v2306, 2147483648
    %v2316 = vmul.f32 %v2315, 1.442695
    %v2317 = vpow.pop %v2316
    %v2318 = vadd.f32 %v2317, 1.0
    %v2319 = vrcp.pop %v2318
    %v2320 = vmul.f32 1.0, %v2319
    %v2321 = vtanh.pop %v2307
    %v2322 = vxor.u32 %v2308, 2147483648
    %v2323 = vmul.f32 %v2322, 1.442695
    %v2324 = vpow.pop %v2323
    %v2325 = vadd.f32 %v2324, 1.0
    %v2326 = vrcp.pop %v2325
    %v2327 = vmul.f32 1.0, %v2326
    %v2328 = vmul.f32 %v2320, %v2090
    %v2329 = vmul.f32 %v2314, %v2321
    %v2330 = vadd.f32 %v2328, %v2329
    %v2331 = vtanh.pop %v2330
    %v2332 = vmul.f32 %v2327, %v2331
    %v2333 = vpack.c.bf16 %v2332, %v2332
    %s2334 = scalar_lea.vmem %s4, 28
    %2335 = vst [vmem:[%s2334] sm:$0xf] %v2333
    %v2336 = vld [vmem:[#allocation7] sm:$0xff]
    %v2337 = vld [vmem:[#allocation7 + $0x8] sm:$0xff]
    %v2338 = vunpack.c.l.bf16 %v2336
    %v2339 = vunpack.c.h.bf16 %v2336
    %v2340 = vunpack.c.l.bf16 %v2337
    %v2341 = vunpack.c.h.bf16 %v2337
    %2342 = vmatprep.subr.bf16.mxu0 %v628
    %2343 = vmatpush1.bf16.msra.mxu0 %v627
    %2344 = vmatprep.subr.bf16.mxu0 %v624
    %2345 = vmatpush1.bf16.msra.mxu0 %v623
    %2346 = vmatprep.subr.bf16.mxu0 %v620
    %2347 = vmatpush1.bf16.msra.mxu0 %v619
    %2348 = vmatprep.subr.bf16.mxu0 %v616
    %2349 = vmatpush1.bf16.msra.mxu0 %v615
    %2350 = vmatprep.subr.bf16.mxu0 %v612
    %2351 = vmatpush1.bf16.msra.mxu0 %v611
    %2352 = vmatprep.subr.bf16.mxu0 %v608
    %2353 = vmatpush1.bf16.msra.mxu0 %v607
    %2354 = vmatprep.subr.bf16.mxu0 %v604
    %2355 = vmatpush1.bf16.msra.mxu0 %v603
    %2356 = vmatprep.subr.bf16.mxu0 %v600
    %2357 = vmatpush1.bf16.msra.mxu0 %v599
    %2358 = vmatprep.subr.bf16.mxu0 0
    %2359 = vmatpush2.bf16.msra.mxu0 0
    %2360 = vmatprep.subr.bf16.mxu0 0
    %2361 = vmatpush2.bf16.msra.mxu0 0
    %2362 = vmatprep.subr.bf16.mxu0 0
    %2363 = vmatpush2.bf16.msra.mxu0 0
    %2364 = vmatprep.subr.bf16.mxu0 0
    %2365 = vmatpush2.bf16.msra.mxu0 0
    %2366 = vmatprep.subr.bf16.mxu0 0
    %2367 = vmatpush2.bf16.msra.mxu0 0
    %2368 = vmatprep.subr.bf16.mxu0 0
    %2369 = vmatpush2.bf16.msra.mxu0 0
    %2370 = vmatprep.subr.bf16.mxu0 0
    %2371 = vmatpush2.bf16.msra.mxu0 0
    %2372 = vmatprep.subr.bf16.mxu0 0
    %2373 = vmatpush2.bf16.msra.mxu0 0
    %2374 = vmatprep.mubr.bf16.mxu0 0
    %2375 = vmatmul.mubr.bf16.gmra.mxu0 %v2213
    %v2376 = vpop.f32.mrf.mxu0
    %v2377 = vadd.f32 0.0, %v2376
    %v2378 = vpop.f32.mrf.mxu0
    %v2379 = vadd.f32 0.0, %v2378
    %v2380 = vpop.f32.mrf.mxu0
    %v2381 = vpop.f32.mrf.mxu0
    %2382 = vdwg.mxu0
    %2383 = vmatprep.subr.bf16.mxu0 %v630
    %2384 = vmatpush1.bf16.msra.mxu0 %v629
    %2385 = vmatprep.subr.bf16.mxu0 %v626
    %2386 = vmatpush1.bf16.msra.mxu0 %v625
    %2387 = vmatprep.subr.bf16.mxu0 %v622
    %2388 = vmatpush1.bf16.msra.mxu0 %v621
    %2389 = vmatprep.subr.bf16.mxu0 %v618
    %2390 = vmatpush1.bf16.msra.mxu0 %v617
    %2391 = vmatprep.subr.bf16.mxu0 %v614
    %2392 = vmatpush1.bf16.msra.mxu0 %v613
    %2393 = vmatprep.subr.bf16.mxu0 %v610
    %2394 = vmatpush1.bf16.msra.mxu0 %v609
    %2395 = vmatprep.subr.bf16.mxu0 %v606
    %2396 = vmatpush1.bf16.msra.mxu0 %v605
    %2397 = vmatprep.subr.bf16.mxu0 %v602
    %2398 = vmatpush1.bf16.msra.mxu0 %v601
    %2399 = vmatprep.subr.bf16.mxu0 0
    %2400 = vmatpush2.bf16.msra.mxu0 0
    %2401 = vmatprep.subr.bf16.mxu0 0
    %2402 = vmatpush2.bf16.msra.mxu0 0
    %2403 = vmatprep.subr.bf16.mxu0 0
    %2404 = vmatpush2.bf16.msra.mxu0 0
    %2405 = vmatprep.subr.bf16.mxu0 0
    %2406 = vmatpush2.bf16.msra.mxu0 0
    %2407 = vmatprep.subr.bf16.mxu0 0
    %2408 = vmatpush2.bf16.msra.mxu0 0
    %2409 = vmatprep.subr.bf16.mxu0 0
    %2410 = vmatpush2.bf16.msra.mxu0 0
    %2411 = vmatprep.subr.bf16.mxu0 0
    %2412 = vmatpush2.bf16.msra.mxu0 0
    %2413 = vmatprep.subr.bf16.mxu0 0
    %2414 = vmatpush2.bf16.msra.mxu0 0
    %2415 = vmatprep.mubr.bf16.mxu0 0
    %2416 = vmatmul.mubr.bf16.gmra.mxu0 %v2213
    %v2417 = vpop.f32.mrf.mxu0
    %v2418 = vadd.f32 0.0, %v2417
    %v2419 = vpop.f32.mrf.mxu0
    %v2420 = vadd.f32 0.0, %v2419
    %v2421 = vpop.f32.mrf.mxu0
    %v2422 = vpop.f32.mrf.mxu0
    %2423 = vdwg.mxu0
    %v2424 = vadd.f32 %v2338, %v2377
    %v2425 = vadd.f32 %v2339, %v2379
    %v2426 = vadd.f32 %v2340, %v2418
    %v2427 = vadd.f32 %v2341, %v2420
    %v2428 = vxor.u32 %v2424, 2147483648
    %v2429 = vmul.f32 %v2428, 1.442695
    %v2430 = vpow.pop %v2429
    %v2431 = vadd.f32 %v2430, 1.0
    %v2432 = vrcp.pop %v2431
    %v2433 = vmul.f32 1.0, %v2432
    %v2434 = vxor.u32 %v2425, 2147483648
    %v2435 = vmul.f32 %v2434, 1.442695
    %v2436 = vpow.pop %v2435
    %v2437 = vadd.f32 %v2436, 1.0
    %v2438 = vrcp.pop %v2437
    %v2439 = vmul.f32 1.0, %v2438
    %v2440 = vtanh.pop %v2426
    %v2441 = vxor.u32 %v2427, 2147483648
    %v2442 = vmul.f32 %v2441, 1.442695
    %v2443 = vpow.pop %v2442
    %v2444 = vadd.f32 %v2443, 1.0
    %v2445 = vrcp.pop %v2444
    %v2446 = vmul.f32 1.0, %v2445
    %v2447 = vmul.f32 %v2439, %v2210
    %v2448 = vmul.f32 %v2433, %v2440
    %v2449 = vadd.f32 %v2447, %v2448
    %v2450 = vtanh.pop %v2449
    %v2451 = vmul.f32 %v2446, %v2450
    %v2452 = vpack.c.bf16 %v2451, %v2451
    %2453 = vst [vmem:[%s136] sm:$0xf] %v2452
    %2454 = vst [vmem:[#allocation2] sm:$0xff] %v2332
    %2455 = vst [vmem:[#allocation3] sm:$0xff] %v2330
    %2456 = vst [vmem:[#allocation4] sm:$0xff] %v2451
    %2457 = vst [vmem:[#allocation5] sm:$0xff] %v2449
    %s2458 = ssub.s32 0, 0
    %s2459 = smul.u32 8, %s2458
    %p2460 = scmp.lt.s32.totalorder %s2459, 7
    %s2461 = scalar_select %p2460, %s2459, 7
    %s2462 = smul.addr %s2461, 4
    %s2463 = scalar_lea.vmem %s5, %s2462
    // Predicated region
    $region68: #{decoder_forward.3} parent=1 // pred_check
      _
    $region69: #{decoder_forward.3} parent=1 // pred_check_branch
      %2465 = sbr.rel (0) target = $region71
    $region70: #{decoder_forward.3} parent=1 // pred_region
      _
    $region71: #{decoder_forward.3} parent=1 // pred_fallthru
      _
    // Predicated region
    $region72: #{decoder_forward.3} parent=1 // pred_check
      _
    $region73: #{decoder_forward.3} parent=1 // pred_check_branch
      %2467 = sbr.rel (0) target = $region75
    $region74: #{decoder_forward.3} parent=1 // pred_region
      %s2468 = ssub.s32 0, 0
      %s2469 = smul.u32 8, %s2468
    $region75: #{decoder_forward.3} parent=1 // pred_fallthru
      _
    // Predicated region
    $region76: #{decoder_forward.3} parent=1 // pred_check
      _
    $region77: #{decoder_forward.3} parent=1 // pred_check_branch
      %2471 = sbr.rel (0) target = $region79
    $region78: #{decoder_forward.3} parent=1 // pred_region
      _
    $region79: #{decoder_forward.3} parent=1 // pred_fallthru
      _
    // Predicated region
    $region80: #{decoder_forward.3} parent=1 // pred_check
      _
    $region81: #{decoder_forward.3} parent=1 // pred_check_branch
      %2473 = sbr.rel (0) target = $region83
    $region82: #{decoder_forward.3} parent=1 // pred_region
      %s2474 = ssub.s32 0, 0
      %s2475 = smul.u32 8, %s2474
      %p2476 = scmp.lt.s32.totalorder %s2475, 7
      %s2477 = scalar_select %p2476, %s2475, 7
      %s2478 = smul.addr %s2477, 4
      %s2479 = scalar_lea.vmem %s5, %s2478
    $region83: #{decoder_forward.3} parent=1 // pred_fallthru
      _

</llo_original>
